<compile_context>
chip_gen: v6e
topology: v6e:2x2x1
jax: 0.10.0
libtpu: 0.0.40
codegen_flags: <defaults>
</compile_context>

<pallas_src>
import functools

import jax
import jax.numpy as jnp
from jax.experimental import pallas as pl
from jax.experimental.pallas import tpu as pltpu

# MXU input dtype for the big matmuls (accumulation is always f32).
MATMUL_DTYPE = jnp.bfloat16


def _pointnet_kernel(x_ref, w1_ref, b1_ref, w2_ref, b2_ref,
                     w3f_ref, w3g_ref, b3_ref, w4_ref, b4_ref, out_ref,
                     *, gb, n):
    m = gb * n
    x = x_ref[...]                                                   # [M, 3] f32

    # --- first_conv: Conv1d(3,128,1) + BN(eval, folded) + ReLU -----------------
    # K=3 would waste ~98% of the MXU K dimension -> run as 3 VPU broadcast-MACs.
    w1 = w1_ref[...]                                                 # [3, 128]
    h1 = (x[:, 0:1] * w1[0:1, :]
          + x[:, 1:2] * w1[1:2, :]
          + x[:, 2:3] * w1[2:3, :]
          + b1_ref[...])
    h1 = jnp.maximum(h1, 0.0)                                        # [M, 128] f32

    # --- first_conv: Conv1d(128,256,1) -----------------------------------------
    f = jnp.dot(h1.astype(w2_ref.dtype), w2_ref[...],
                preferred_element_type=jnp.float32) + b2_ref[...]    # [M, 256] f32

    # --- per-group max over points -> global feature ---------------------------
    g = jnp.max(f.reshape(gb, n, f.shape[1]), axis=1)                # [GB, 256]

    # --- second_conv: Conv1d(512,512,1)+BN+ReLU, concat-free -------------------
    #   cat([g_bcast, f], channel) @ w3 == g @ w3[:256] + f @ w3[256:]
    gproj = jnp.dot(g.astype(w3g_ref.dtype), w3g_ref[...],
                    preferred_element_type=jnp.float32)              # [GB, 512]
    fproj = jnp.dot(f.astype(w3f_ref.dtype), w3f_ref[...],
                    preferred_element_type=jnp.float32)              # [M, 512]
    c3 = fproj.shape[1]
    h2 = (fproj
          + jnp.broadcast_to(gproj[:, None, :], (gb, n, c3)).reshape(m, c3)
          + b3_ref[...])
    h2 = jnp.maximum(h2, 0.0)                                        # [M, 512] f32

    # --- second_conv: Conv1d(512, C, 1) -----------------------------------------
    o = jnp.dot(h2.astype(w4_ref.dtype), w4_ref[...],
                preferred_element_type=jnp.float32) + b4_ref[...]    # [M, C] f32

    # --- final per-group max over points ----------------------------------------
    out_ref[...] = jnp.max(o.reshape(gb, n, o.shape[1]), axis=1)     # [GB, C]


def pointnet_forward(point_groups, params, *, gb_tile=8):
    """point_groups: [B, G, N, 3] float32 -> [B, G, C] float32.

    gb_tile = groups per grid step.  Keep it a multiple of 8 (sublane-aligned
    output block); gb_tile*N >= 256 fills the v6e/v7x MXU.  Keep the resulting
    grid >= 2 steps so both v7x TensorCores get work.
    """
    B, G, N, three = point_groups.shape
    assert three == 3
    assert N % 8 == 0, "N must be a multiple of 8 for the in-kernel per-group reshapes"
    assert gb_tile % 8 == 0, "gb_tile must be a multiple of 8 (sublane-aligned output block)"

    w1, b1, w2, b2, w3f, w3g, b3, w4, b4 = params
    C = w4.shape[1]

    BG = B * G
    n_blocks = pl.cdiv(BG, gb_tile)
    BG_pad = n_blocks * gb_tile

    # Flatten points to [BG*N, 3] so each grid step gets a (gb_tile*N, 3) slab.
    x = point_groups.reshape(BG * N, 3).astype(jnp.float32)
    if BG_pad != BG:
        pad = jnp.zeros(((BG_pad - BG) * N, 3), jnp.float32)
        x = jnp.concatenate([x, pad], axis=0)

    # Weights/biases use a constant index_map -> DMA'd once, VMEM-resident.
    full = lambda a: pl.BlockSpec(a.shape, lambda i: (0,) * a.ndim)

    kernel = functools.partial(_pointnet_kernel, gb=gb_tile, n=N)

    out = pl.pallas_call(
        kernel,
        out_shape=jax.ShapeDtypeStruct((BG_pad, C), jnp.float32),
        grid_spec=pltpu.PrefetchScalarGridSpec(
            num_scalar_prefetch=0,
            grid=(n_blocks,),
            in_specs=[
                pl.BlockSpec((gb_tile * N, 3), lambda i: (i, 0)),    # gb_tile groups of points
                full(w1), full(b1),
                full(w2), full(b2),
                full(w3f), full(w3g), full(b3),
                full(w4), full(b4),
            ],
            out_specs=pl.BlockSpec((gb_tile, C), lambda i: (i, 0)),  # lane/sublane-dense
        ),
        compiler_params=pltpu.CompilerParams(
            dimension_semantics=("parallel",)),
    )(x, w1, b1, w2, b2, w3f, w3g, b3, w4, b4)

    return out[:BG].reshape(B, G, C)


def fold_bn(w, b, gamma, beta, mean, var, eps=1e-5):
    """Fold eval-mode BatchNorm1d into a preceding 1x1 conv (channels-last GEMM form).
    w: [Cin, Cout], b: [Cout]; BN params: [Cout]."""
    scale = gamma / jnp.sqrt(var + eps)
    return w * scale[None, :], (b - mean) * scale + beta


def make_params(encoder_channel, key):
    """Deterministic synthetic parameters matching the PyTorch module shapes.
    Conv1d(Cin, Cout, 1) weight [Cout, Cin, 1] is stored transposed as [Cin, Cout]."""
    ks = jax.random.split(key, 16)

    def conv(kw, kb, cin, cout):
        w = jax.random.normal(kw, (cin, cout), jnp.float32) * (1.0 / jnp.sqrt(cin))
        b = jax.random.normal(kb, (cout,), jnp.float32) * 0.01
        return w, b

    def bn(kg, kb, km, kv, c):
        gamma = 1.0 + 0.1 * jax.random.normal(kg, (c,), jnp.float32)
        beta = 0.05 * jax.random.normal(kb, (c,), jnp.float32)
        mean = 0.1 * jax.random.normal(km, (c,), jnp.float32)
        var = jnp.abs(jax.random.normal(kv, (c,), jnp.float32)) * 0.5 + 0.5
        return gamma, beta, mean, var

    # first_conv
    w1, b1 = conv(ks[0], ks[1], 3, 128)
    bn1 = bn(ks[2], ks[3], ks[4], ks[5], 128)
    w2, b2 = conv(ks[6], ks[7], 128, 256)
    # second_conv
    w3, b3 = conv(ks[8], ks[9], 512, 512)
    bn2 = bn(ks[10], ks[11], ks[12], ks[13], 512)
    w4, b4 = conv(ks[14], ks[15], 512, encoder_channel)

    # Fold BN (eval mode) into the conv it follows.
    # TODO(synk): train-mode BatchNorm (batch statistics) is not implemented.
    w1f, b1f = fold_bn(w1, b1, *bn1)
    w3fold, b3f = fold_bn(w3, b3, *bn2)

    # Split w3 along its input-channel axis so the kernel never builds the concat:
    # input rows [0:256) multiply the broadcast global feature, [256:512) multiply f.
    w3_g = w3fold[:256, :]
    w3_f = w3fold[256:, :]

    cast = lambda w: w.astype(MATMUL_DTYPE)
    # Biases as [1, C] rows for a lane-friendly broadcast add; VPU path stays f32.
    return (w1f, b1f[None, :],
            cast(w2), b2[None, :],
            cast(w3_f), cast(w3_g), b3f[None, :],
            cast(w4), b4[None, :])


def pointnet_reference(point_groups, params):
    """Pure-JAX f32 reference (same math, same parameter values) for validation."""
    B, G, N, _ = point_groups.shape
    w1, b1, w2, b2, w3f, w3g, b3, w4, b4 = [p.astype(jnp.float32) for p in params]
    x = point_groups.reshape(B * G, N, 3).astype(jnp.float32)
    h1 = jnp.maximum(x @ w1 + b1, 0.0)
    f = h1 @ w2 + b2                                   # [BG, N, 256]
    g = jnp.max(f, axis=1, keepdims=True)              # [BG, 1, 256]
    h2 = jnp.maximum(f @ w3f + g @ w3g + b3, 0.0)      # == cat([g,f]) @ w3 + b3
    o = h2 @ w4 + b4                                   # [BG, N, C]
    return jnp.max(o, axis=1).reshape(B, G, -1)


if __name__ == "__main__":
    B, G, N = 2, 8, 32            # BG = 16 groups -> grid of 2 steps at gb_tile=8
    encoder_channel = 128

    key = jax.random.PRNGKey(0)
    k_params, k_x = jax.random.split(key)
    params = make_params(encoder_channel, k_params)
    point_groups = jax.random.normal(k_x, (B, G, N, 3), jnp.float32)

    out = pointnet_forward(point_groups, params, gb_tile=8)
    out = jax.block_until_ready(out)

    ref = pointnet_reference(point_groups, params)
    assert out.shape == (B, G, encoder_channel), out.shape
    max_err = float(jnp.max(jnp.abs(out - ref)))
    # bf16 matmul inputs with f32 accumulation -> loosened tolerance vs the f32 reference.
    assert jnp.allclose(out, ref, atol=5e-2, rtol=5e-2), max_err

    print("KERNEL_OK")
</pallas_src>

<mosaic_0001>
module attributes {stable_mosaic.version = 11 : i64} {
  func.func @_pointnet_kernel(%arg0: i32, %arg1: memref<256x3xf32, #tpu.memory_space<vmem>>, %arg2: memref<3x128xf32, #tpu.memory_space<vmem>>, %arg3: memref<1x128xf32, #tpu.memory_space<vmem>>, %arg4: memref<128x256xbf16, #tpu.memory_space<vmem>>, %arg5: memref<1x256xf32, #tpu.memory_space<vmem>>, %arg6: memref<256x512xbf16, #tpu.memory_space<vmem>>, %arg7: memref<256x512xbf16, #tpu.memory_space<vmem>>, %arg8: memref<1x512xf32, #tpu.memory_space<vmem>>, %arg9: memref<512x128xbf16, #tpu.memory_space<vmem>>, %arg10: memref<1x128xf32, #tpu.memory_space<vmem>>, %arg11: memref<8x128xf32, #tpu.memory_space<vmem>>) attributes {dimension_semantics = [#tpu.dimension_semantics<parallel>], iteration_bounds = array<i64: 2>, scalar_prefetch = 0 : i64, scratch_operands = 0 : i64, tpu.core_type = #tpu.core_type<tc>, window_params = [{transform_indices = @transform_0, window_bounds = array<i64: 256, 3>}, {pipeline_mode = #tpu.pipeline_mode<synchronous>, transform_indices = @transform_1, window_bounds = array<i64: 3, 128>}, {pipeline_mode = #tpu.pipeline_mode<synchronous>, transform_indices = @transform_2, window_bounds = array<i64: 1, 128>}, {pipeline_mode = #tpu.pipeline_mode<synchronous>, transform_indices = @transform_3, window_bounds = array<i64: 128, 256>}, {pipeline_mode = #tpu.pipeline_mode<synchronous>, transform_indices = @transform_4, window_bounds = array<i64: 1, 256>}, {pipeline_mode = #tpu.pipeline_mode<synchronous>, transform_indices = @transform_5, window_bounds = array<i64: 256, 512>}, {pipeline_mode = #tpu.pipeline_mode<synchronous>, transform_indices = @transform_6, window_bounds = array<i64: 256, 512>}, {pipeline_mode = #tpu.pipeline_mode<synchronous>, transform_indices = @transform_7, window_bounds = array<i64: 1, 512>}, {pipeline_mode = #tpu.pipeline_mode<synchronous>, transform_indices = @transform_8, window_bounds = array<i64: 512, 128>}, {pipeline_mode = #tpu.pipeline_mode<synchronous>, transform_indices = @transform_9, window_bounds = array<i64: 1, 128>}, {transform_indices = @transform_10, window_bounds = array<i64: 8, 128>}]} {
    %c0 = arith.constant 0 : index
    %c0_0 = arith.constant 0 : index
    %0 = vector.load %arg1[%c0, %c0_0] : memref<256x3xf32, #tpu.memory_space<vmem>>, vector<256x3xf32>
    %c0_1 = arith.constant 0 : index
    %c0_2 = arith.constant 0 : index
    %1 = vector.load %arg2[%c0_1, %c0_2] : memref<3x128xf32, #tpu.memory_space<vmem>>, vector<3x128xf32>
    %2 = vector.extract_strided_slice %0 {offsets = [0, 0], sizes = [256, 1], strides = [1, 1]} : vector<256x3xf32> to vector<256x1xf32>
    %3 = vector.extract_strided_slice %1 {offsets = [0, 0], sizes = [1, 128], strides = [1, 1]} : vector<3x128xf32> to vector<1x128xf32>
    %4 = vector.broadcast %2 : vector<256x1xf32> to vector<256x128xf32>
    %5 = vector.broadcast %3 : vector<1x128xf32> to vector<256x128xf32>
    %6 = arith.mulf %4, %5 : vector<256x128xf32>
    %7 = vector.extract_strided_slice %0 {offsets = [0, 1], sizes = [256, 1], strides = [1, 1]} : vector<256x3xf32> to vector<256x1xf32>
    %8 = vector.extract_strided_slice %1 {offsets = [1, 0], sizes = [1, 128], strides = [1, 1]} : vector<3x128xf32> to vector<1x128xf32>
    %9 = vector.broadcast %7 : vector<256x1xf32> to vector<256x128xf32>
    %10 = vector.broadcast %8 : vector<1x128xf32> to vector<256x128xf32>
    %11 = arith.mulf %9, %10 : vector<256x128xf32>
    %12 = arith.addf %6, %11 : vector<256x128xf32>
    %13 = vector.extract_strided_slice %0 {offsets = [0, 2], sizes = [256, 1], strides = [1, 1]} : vector<256x3xf32> to vector<256x1xf32>
    %14 = vector.extract_strided_slice %1 {offsets = [2, 0], sizes = [1, 128], strides = [1, 1]} : vector<3x128xf32> to vector<1x128xf32>
    %15 = vector.broadcast %13 : vector<256x1xf32> to vector<256x128xf32>
    %16 = vector.broadcast %14 : vector<1x128xf32> to vector<256x128xf32>
    %17 = arith.mulf %15, %16 : vector<256x128xf32>
    %18 = arith.addf %12, %17 : vector<256x128xf32>
    %c0_3 = arith.constant 0 : index
    %c0_4 = arith.constant 0 : index
    %19 = vector.load %arg3[%c0_3, %c0_4] : memref<1x128xf32, #tpu.memory_space<vmem>>, vector<1x128xf32>
    %20 = vector.broadcast %19 : vector<1x128xf32> to vector<256x128xf32>
    %21 = arith.addf %18, %20 : vector<256x128xf32>
    %cst = arith.constant 0.000000e+00 : f32
    %22 = vector.broadcast %cst : f32 to vector<256x128xf32>
    %23 = arith.maximumf %21, %22 : vector<256x128xf32>
    %24 = arith.truncf %23 : vector<256x128xf32> to vector<256x128xbf16>
    %c0_5 = arith.constant 0 : index
    %c0_6 = arith.constant 0 : index
    %25 = vector.load %arg4[%c0_5, %c0_6] : memref<128x256xbf16, #tpu.memory_space<vmem>>, vector<128x256xbf16>
    %cst_7 = arith.constant dense<0.000000e+00> : vector<256x256xf32>
    %26 = tpu.matmul %24, %25, %cst_7 {dimension_numbers = #tpu.dot_dimension_numbers<[1], [0], [0], [1], [0, 0, 1, 1], [], []>} : vector<256x128xbf16>, vector<128x256xbf16>, vector<256x256xf32> -> vector<256x256xf32>
    %c0_8 = arith.constant 0 : index
    %c0_9 = arith.constant 0 : index
    %27 = vector.load %arg5[%c0_8, %c0_9] : memref<1x256xf32, #tpu.memory_space<vmem>>, vector<1x256xf32>
    %28 = vector.broadcast %27 : vector<1x256xf32> to vector<256x256xf32>
    %29 = arith.addf %26, %28 : vector<256x256xf32>
    %30 = vector.shape_cast %29 : vector<256x256xf32> to vector<8x32x256xf32>
    %cst_10 = arith.constant dense<0xFF800000> : vector<8x256xf32>
    %31 = vector.multi_reduction <maximumf>, %30, %cst_10 [1] : vector<8x32x256xf32> to vector<8x256xf32>
    %32 = arith.truncf %31 : vector<8x256xf32> to vector<8x256xbf16>
    %c0_11 = arith.constant 0 : index
    %c0_12 = arith.constant 0 : index
    %33 = vector.load %arg7[%c0_11, %c0_12] : memref<256x512xbf16, #tpu.memory_space<vmem>>, vector<256x512xbf16>
    %cst_13 = arith.constant dense<0.000000e+00> : vector<8x512xf32>
    %34 = tpu.matmul %32, %33, %cst_13 {dimension_numbers = #tpu.dot_dimension_numbers<[1], [0], [0], [1], [0, 0, 1, 1], [], []>} : vector<8x256xbf16>, vector<256x512xbf16>, vector<8x512xf32> -> vector<8x512xf32>
    %35 = arith.truncf %29 : vector<256x256xf32> to vector<256x256xbf16>
    %c0_14 = arith.constant 0 : index
    %c0_15 = arith.constant 0 : index
    %36 = vector.load %arg6[%c0_14, %c0_15] : memref<256x512xbf16, #tpu.memory_space<vmem>>, vector<256x512xbf16>
    %cst_16 = arith.constant dense<0.000000e+00> : vector<256x512xf32>
    %37 = tpu.matmul %35, %36, %cst_16 {dimension_numbers = #tpu.dot_dimension_numbers<[1], [0], [0], [1], [0, 0, 1, 1], [], []>} : vector<256x256xbf16>, vector<256x512xbf16>, vector<256x512xf32> -> vector<256x512xf32>
    %38 = vector.shape_cast %34 : vector<8x512xf32> to vector<8x1x512xf32>
    %39 = vector.shape_cast %38 : vector<8x1x512xf32> to vector<8x1x512xf32>
    %40 = vector.broadcast %39 : vector<8x1x512xf32> to vector<8x32x512xf32>
    %41 = vector.shape_cast %40 : vector<8x32x512xf32> to vector<256x512xf32>
    %42 = arith.addf %37, %41 : vector<256x512xf32>
    %c0_17 = arith.constant 0 : index
    %c0_18 = arith.constant 0 : index
    %43 = vector.load %arg8[%c0_17, %c0_18] : memref<1x512xf32, #tpu.memory_space<vmem>>, vector<1x512xf32>
    %44 = vector.broadcast %43 : vector<1x512xf32> to vector<256x512xf32>
    %45 = arith.addf %42, %44 : vector<256x512xf32>
    %cst_19 = arith.constant 0.000000e+00 : f32
    %46 = vector.broadcast %cst_19 : f32 to vector<256x512xf32>
    %47 = arith.maximumf %45, %46 : vector<256x512xf32>
    %48 = arith.truncf %47 : vector<256x512xf32> to vector<256x512xbf16>
    %c0_20 = arith.constant 0 : index
    %c0_21 = arith.constant 0 : index
    %49 = vector.load %arg9[%c0_20, %c0_21] : memref<512x128xbf16, #tpu.memory_space<vmem>>, vector<512x128xbf16>
    %cst_22 = arith.constant dense<0.000000e+00> : vector<256x128xf32>
    %50 = tpu.matmul %48, %49, %cst_22 {dimension_numbers = #tpu.dot_dimension_numbers<[1], [0], [0], [1], [0, 0, 1, 1], [], []>} : vector<256x512xbf16>, vector<512x128xbf16>, vector<256x128xf32> -> vector<256x128xf32>
    %c0_23 = arith.constant 0 : index
    %c0_24 = arith.constant 0 : index
    %51 = vector.load %arg10[%c0_23, %c0_24] : memref<1x128xf32, #tpu.memory_space<vmem>>, vector<1x128xf32>
    %52 = vector.broadcast %51 : vector<1x128xf32> to vector<256x128xf32>
    %53 = arith.addf %50, %52 : vector<256x128xf32>
    %54 = vector.shape_cast %53 : vector<256x128xf32> to vector<8x32x128xf32>
    %cst_25 = arith.constant dense<0xFF800000> : vector<8x128xf32>
    %55 = vector.multi_reduction <maximumf>, %54, %cst_25 [1] : vector<8x32x128xf32> to vector<8x128xf32>
    %c0_26 = arith.constant 0 : index
    %c0_27 = arith.constant 0 : index
    %56 = vector.load %arg11[%c0_26, %c0_27] : memref<8x128xf32, #tpu.memory_space<vmem>>, vector<8x128xf32>
    tpu.vector_store %arg11[%c0_26, %c0_27], %55 {strides = array<i32>} : memref<8x128xf32, #tpu.memory_space<vmem>>, vector<8x128xf32>,
    return
  }
  func.func @transform_0(%arg0: i32) -> (i32, i32) {
    %c0_i32 = arith.constant 0 : i32
    %c0_i32_0 = arith.constant 0 : i32
    return %arg0, %c0_i32 : i32, i32
  }
  func.func @transform_1(%arg0: i32) -> (i32, i32) {
    %c0_i32 = arith.constant 0 : i32
    %c0_i32_0 = arith.constant 0 : i32
    %c0_i32_1 = arith.constant 0 : i32
    return %c0_i32, %c0_i32_0 : i32, i32
  }
  func.func @transform_2(%arg0: i32) -> (i32, i32) {
    %c0_i32 = arith.constant 0 : i32
    %c0_i32_0 = arith.constant 0 : i32
    %c0_i32_1 = arith.constant 0 : i32
    return %c0_i32, %c0_i32_0 : i32, i32
  }
  func.func @transform_3(%arg0: i32) -> (i32, i32) {
    %c0_i32 = arith.constant 0 : i32
    %c0_i32_0 = arith.constant 0 : i32
    %c0_i32_1 = arith.constant 0 : i32
    return %c0_i32, %c0_i32_0 : i32, i32
  }
  func.func @transform_4(%arg0: i32) -> (i32, i32) {
    %c0_i32 = arith.constant 0 : i32
    %c0_i32_0 = arith.constant 0 : i32
    %c0_i32_1 = arith.constant 0 : i32
    return %c0_i32, %c0_i32_0 : i32, i32
  }
  func.func @transform_5(%arg0: i32) -> (i32, i32) {
    %c0_i32 = arith.constant 0 : i32
    %c0_i32_0 = arith.constant 0 : i32
    %c0_i32_1 = arith.constant 0 : i32
    return %c0_i32, %c0_i32_0 : i32, i32
  }
  func.func @transform_6(%arg0: i32) -> (i32, i32) {
    %c0_i32 = arith.constant 0 : i32
    %c0_i32_0 = arith.constant 0 : i32
    %c0_i32_1 = arith.constant 0 : i32
    return %c0_i32, %c0_i32_0 : i32, i32
  }
  func.func @transform_7(%arg0: i32) -> (i32, i32) {
    %c0_i32 = arith.constant 0 : i32
    %c0_i32_0 = arith.constant 0 : i32
    %c0_i32_1 = arith.constant 0 : i32
    return %c0_i32, %c0_i32_0 : i32, i32
  }
  func.func @transform_8(%arg0: i32) -> (i32, i32) {
    %c0_i32 = arith.constant 0 : i32
    %c0_i32_0 = arith.constant 0 : i32
    %c0_i32_1 = arith.constant 0 : i32
    return %c0_i32, %c0_i32_0 : i32, i32
  }
  func.func @transform_9(%arg0: i32) -> (i32, i32) {
    %c0_i32 = arith.constant 0 : i32
    %c0_i32_0 = arith.constant 0 : i32
    %c0_i32_1 = arith.constant 0 : i32
    return %c0_i32, %c0_i32_0 : i32, i32
  }
  func.func @transform_10(%arg0: i32) -> (i32, i32) {
    %c0_i32 = arith.constant 0 : i32
    %c0_i32_0 = arith.constant 0 : i32
    return %arg0, %c0_i32 : i32, i32
  }
}

</mosaic_0001>

<llo_original>
// kernel: tpu_custom_call.1
$region0: #{tpu_custom_call.1}
  #allocation0 [shape = 'u32[]', space=smem, size = 0x4, offset = 0x4, fixed_abs, tag = 'smem constant byte address 0x4 - core index']
  #allocation1 [shape = 'u32[144,128]{1,0:T(1,128)}', space=vmem, size = 0x12000, scoped, tag = 'internal scratch']
  %s0 = inlined_call_operand.vmem [shape: f32[512,3], index: 0, kind: input, shape index: {}]
  %s1 = inlined_call_operand.vmem [shape: f32[3,128], index: 1, kind: input, shape index: {}]
  %s2 = inlined_call_operand.vmem [shape: f32[1,128], index: 2, kind: input, shape index: {}]
  %s3 = inlined_call_operand.hbm [shape: bf16[128,256], index: 3, kind: input, shape index: {}]
  %s4 = inlined_call_operand.vmem [shape: f32[1,256], index: 4, kind: input, shape index: {}]
  %s5 = inlined_call_operand.vmem [shape: bf16[256,512], index: 5, kind: input, shape index: {}]
  %s6 = inlined_call_operand.hbm [shape: bf16[256,512], index: 6, kind: input, shape index: {}]
  %s7 = inlined_call_operand.vmem [shape: f32[1,512], index: 7, kind: input, shape index: {}]
  %s8 = inlined_call_operand.hbm [shape: bf16[512,128], index: 8, kind: input, shape index: {}]
  %s9 = inlined_call_operand.vmem [shape: f32[1,128], index: 9, kind: input, shape index: {}]
  %s10 = inlined_call_operand.hbm [shape: f32[16,128], index: 10, kind: output, shape index: {}]
  %s11 = sld [smem:[#allocation0]]
  $region85: #{tpu_custom_call.1} parent=0
    _
  %s13 = ssub.s32 1, %s11
  %s14 = scalar_select 0, %s13, %s11
  $region1: #{tpu_custom_call.1} parent=0
    #allocation2 [shape = 'u8[65536]{0}', space=vmem, size = 0x10000, scoped, tag = 'input window, operand 3, single buffered']
    #allocation3 [shape = 's32[2]{0}', space=sflag, size = 0x8, scoped, tag = 'scoped memory for tpu_custom_call.1']
    #allocation4 [shape = 's32[2]{0}', space=sflag, size = 0x8, scoped, tag = 'scoped memory for tpu_custom_call.1']
    #allocation5 [shape = 'u8[262144]{0}', space=vmem, size = 0x40000, scoped, tag = 'input window, operand 6, single buffered']
    #allocation6 [shape = 's32[1]{0}', space=sflag, size = 0x4, scoped, tag = 'scoped memory for tpu_custom_call.1']
    #allocation7 [shape = 'u8[131072]{0}', space=vmem, size = 0x20000, scoped, tag = 'input window, operand 8, single buffered']
    #allocation8 [shape = 'u8[8192]{0}', space=vmem, size = 0x2000, scoped, tag = 'output window, operand 0']
    %15 = vsyncpa [#allocation3], 0
    %16 = vsyncpa [#allocation6], 0
    %17 = vsyncpa [#allocation4], 0
    %s18 = scalar_lea.sflag [#allocation4], 1
    %19 = vsyncpa %s18, 0
    loop: start=0, step=1, limit=4
    $region2: #{tpu_custom_call.1} parent=1 // loop_pre_header
      _
    $region3: #{tpu_custom_call.1} parent=1 // loop_header
      %s21 = sphi 0, %s25
      %p22 = scmp.ge.s32.totalorder %s21, 4
      %s31 = sphi 0, %s33
      %s34 = sphi 0, %s31
      %s35 = sphi 0, %s34
      %s51 = sphi 0, %s35
      %s55 = sphi 0, %s55
      %s57 = sphi 0, %s55
      %s58 = sphi 0, %s57
      %s72 = sphi 0, %s58
      %s76 = sphi 0, %s76
      %s78 = sphi 0, %s76
      %s79 = sphi 0, %s78
      %s93 = sphi 0, %s79
      %s97 = sphi 0, %s97
      %s99 = sphi 0, %s97
      %s100 = sphi 0, %s99
      %s114 = sphi 0, %s100
      %s118 = sphi 0, %s118
      %s120 = sphi 0, %s118
      %s121 = sphi 0, %s120
      %s135 = sphi 0, %s121
      %s139 = sphi 0, %s139
      %s141 = sphi 0, %s139
      %s142 = sphi 0, %s141
      %s156 = sphi 0, %s142
      %s160 = sphi 0, %s160
      %s162 = sphi 0, %s160
      %s163 = sphi 0, %s162
      %s177 = sphi 0, %s163
      %s181 = sphi 0, %s181
      %s183 = sphi 0, %s181
      %s184 = sphi 0, %s183
      %s198 = sphi 0, %s184
      %s202 = sphi 0, %s202
      %s204 = sphi 0, %s202
      %s205 = sphi 0, %s204
      %s219 = sphi 0, %s205
      %s223 = sphi 0, %s223
      %s225 = sphi 0, %s223
      %s226 = sphi 0, %s225
      %s240 = sphi 0, %s226
      %s246 = sphi 0, %s248
      %s249 = sphi 0, %s246
      %s250 = sphi 0, %s249
      %s266 = sphi 0, %s250
    $region4: #{tpu_custom_call.1} parent=1 // loop_header_branch
      %24 = sbr.rel (%p22) target = $region8
    $region5: #{tpu_custom_call.1} parent=1 // loop_body
      %s26 = ssub.s32 %s21, 1
      %s27 = ssub.s32 %s21, 2
      %s28 = sadd.s32 %s21, 1
      %s29 = ssub.s32 %s21, %s28
      %p30 = scmp.eq.s32.totalorder %s29, 0
      %s32 = sadd.s32 %s31, 1
      %s33 = scalar_select %p30, %s31, %s32
      %p36 = pneg %p30
      %p37 = scmp.eq.s32.totalorder %s21, 1
      %p38 = por %p36, %p37
      %p39 = scmp.ne.s32.totalorder %s31, %s34
      %p40 = scmp.eq.s32.totalorder %s21, 0
      %p41 = por %p39, %p40
      %p42 = scmp.ne.s32.totalorder %s31, %s34
      %p43 = scmp.eq.s32.totalorder %s26, 1
      %p44 = por %p42, %p43
      %p45 = scmp.ne.s32.totalorder %s34, %s35
      %p46 = scmp.eq.s32.totalorder %s26, 0
      %p47 = por %p45, %p46
      %p48 = scmp.ne.s32.totalorder %s34, %s35
      %p49 = scmp.eq.s32.totalorder %s27, 1
      %p50 = por %p48, %p49
      %p52 = scmp.ne.s32.totalorder %s35, %s51
      %p53 = scmp.eq.s32.totalorder %s27, 0
      %p54 = por %p52, %p53
      %s56 = sadd.s32 %s55, 1
      %p59 = scmp.eq.s32.totalorder %s21, 1
      %p60 = scmp.ne.s32.totalorder %s55, %s57
      %p61 = scmp.eq.s32.totalorder %s21, 0
      %p62 = por %p60, %p61
      %p63 = scmp.ne.s32.totalorder %s55, %s57
      %p64 = scmp.eq.s32.totalorder %s26, 1
      %p65 = por %p63, %p64
      %p66 = scmp.ne.s32.totalorder %s57, %s58
      %p67 = scmp.eq.s32.totalorder %s26, 0
      %p68 = por %p66, %p67
      %p69 = scmp.ne.s32.totalorder %s57, %s58
      %p70 = scmp.eq.s32.totalorder %s27, 1
      %p71 = por %p69, %p70
      %p73 = scmp.ne.s32.totalorder %s58, %s72
      %p74 = scmp.eq.s32.totalorder %s27, 0
      %p75 = por %p73, %p74
      %s77 = sadd.s32 %s76, 1
      %p80 = scmp.eq.s32.totalorder %s21, 1
      %p81 = scmp.ne.s32.totalorder %s76, %s78
      %p82 = scmp.eq.s32.totalorder %s21, 0
      %p83 = por %p81, %p82
      %p84 = scmp.ne.s32.totalorder %s76, %s78
      %p85 = scmp.eq.s32.totalorder %s26, 1
      %p86 = por %p84, %p85
      %p87 = scmp.ne.s32.totalorder %s78, %s79
      %p88 = scmp.eq.s32.totalorder %s26, 0
      %p89 = por %p87, %p88
      %p90 = scmp.ne.s32.totalorder %s78, %s79
      %p91 = scmp.eq.s32.totalorder %s27, 1
      %p92 = por %p90, %p91
      %p94 = scmp.ne.s32.totalorder %s79, %s93
      %p95 = scmp.eq.s32.totalorder %s27, 0
      %p96 = por %p94, %p95
      %s98 = sadd.s32 %s97, 1
      %p101 = scmp.eq.s32.totalorder %s21, 1
      %p102 = scmp.ne.s32.totalorder %s97, %s99
      %p103 = scmp.eq.s32.totalorder %s21, 0
      %p104 = por %p102, %p103
      %p105 = scmp.ne.s32.totalorder %s97, %s99
      %p106 = scmp.eq.s32.totalorder %s26, 1
      %p107 = por %p105, %p106
      %p108 = scmp.ne.s32.totalorder %s99, %s100
      %p109 = scmp.eq.s32.totalorder %s26, 0
      %p110 = por %p108, %p109
      %p111 = scmp.ne.s32.totalorder %s99, %s100
      %p112 = scmp.eq.s32.totalorder %s27, 1
      %p113 = por %p111, %p112
      %p115 = scmp.ne.s32.totalorder %s100, %s114
      %p116 = scmp.eq.s32.totalorder %s27, 0
      %p117 = por %p115, %p116
      %s119 = sadd.s32 %s118, 1
      %p122 = scmp.eq.s32.totalorder %s21, 1
      %p123 = scmp.ne.s32.totalorder %s118, %s120
      %p124 = scmp.eq.s32.totalorder %s21, 0
      %p125 = por %p123, %p124
      %p126 = scmp.ne.s32.totalorder %s118, %s120
      %p127 = scmp.eq.s32.totalorder %s26, 1
      %p128 = por %p126, %p127
      %p129 = scmp.ne.s32.totalorder %s120, %s121
      %p130 = scmp.eq.s32.totalorder %s26, 0
      %p131 = por %p129, %p130
      %p132 = scmp.ne.s32.totalorder %s120, %s121
      %p133 = scmp.eq.s32.totalorder %s27, 1
      %p134 = por %p132, %p133
      %p136 = scmp.ne.s32.totalorder %s121, %s135
      %p137 = scmp.eq.s32.totalorder %s27, 0
      %p138 = por %p136, %p137
      %s140 = sadd.s32 %s139, 1
      %p143 = scmp.eq.s32.totalorder %s21, 1
      %p144 = scmp.ne.s32.totalorder %s139, %s141
      %p145 = scmp.eq.s32.totalorder %s21, 0
      %p146 = por %p144, %p145
      %p147 = scmp.ne.s32.totalorder %s139, %s141
      %p148 = scmp.eq.s32.totalorder %s26, 1
      %p149 = por %p147, %p148
      %p150 = scmp.ne.s32.totalorder %s141, %s142
      %p151 = scmp.eq.s32.totalorder %s26, 0
      %p152 = por %p150, %p151
      %p153 = scmp.ne.s32.totalorder %s141, %s142
      %p154 = scmp.eq.s32.totalorder %s27, 1
      %p155 = por %p153, %p154
      %p157 = scmp.ne.s32.totalorder %s142, %s156
      %p158 = scmp.eq.s32.totalorder %s27, 0
      %p159 = por %p157, %p158
      %s161 = sadd.s32 %s160, 1
      %p164 = scmp.eq.s32.totalorder %s21, 1
      %p165 = scmp.ne.s32.totalorder %s160, %s162
      %p166 = scmp.eq.s32.totalorder %s21, 0
      %p167 = por %p165, %p166
      %p168 = scmp.ne.s32.totalorder %s160, %s162
      %p169 = scmp.eq.s32.totalorder %s26, 1
      %p170 = por %p168, %p169
      %p171 = scmp.ne.s32.totalorder %s162, %s163
      %p172 = scmp.eq.s32.totalorder %s26, 0
      %p173 = por %p171, %p172
      %p174 = scmp.ne.s32.totalorder %s162, %s163
      %p175 = scmp.eq.s32.totalorder %s27, 1
      %p176 = por %p174, %p175
      %p178 = scmp.ne.s32.totalorder %s163, %s177
      %p179 = scmp.eq.s32.totalorder %s27, 0
      %p180 = por %p178, %p179
      %s182 = sadd.s32 %s181, 1
      %p185 = scmp.eq.s32.totalorder %s21, 1
      %p186 = scmp.ne.s32.totalorder %s181, %s183
      %p187 = scmp.eq.s32.totalorder %s21, 0
      %p188 = por %p186, %p187
      %p189 = scmp.ne.s32.totalorder %s181, %s183
      %p190 = scmp.eq.s32.totalorder %s26, 1
      %p191 = por %p189, %p190
      %p192 = scmp.ne.s32.totalorder %s183, %s184
      %p193 = scmp.eq.s32.totalorder %s26, 0
      %p194 = por %p192, %p193
      %p195 = scmp.ne.s32.totalorder %s183, %s184
      %p196 = scmp.eq.s32.totalorder %s27, 1
      %p197 = por %p195, %p196
      %p199 = scmp.ne.s32.totalorder %s184, %s198
      %p200 = scmp.eq.s32.totalorder %s27, 0
      %p201 = por %p199, %p200
      %s203 = sadd.s32 %s202, 1
      %p206 = scmp.eq.s32.totalorder %s21, 1
      %p207 = scmp.ne.s32.totalorder %s202, %s204
      %p208 = scmp.eq.s32.totalorder %s21, 0
      %p209 = por %p207, %p208
      %p210 = scmp.ne.s32.totalorder %s202, %s204
      %p211 = scmp.eq.s32.totalorder %s26, 1
      %p212 = por %p210, %p211
      %p213 = scmp.ne.s32.totalorder %s204, %s205
      %p214 = scmp.eq.s32.totalorder %s26, 0
      %p215 = por %p213, %p214
      %p216 = scmp.ne.s32.totalorder %s204, %s205
      %p217 = scmp.eq.s32.totalorder %s27, 1
      %p218 = por %p216, %p217
      %p220 = scmp.ne.s32.totalorder %s205, %s219
      %p221 = scmp.eq.s32.totalorder %s27, 0
      %p222 = por %p220, %p221
      %s224 = sadd.s32 %s223, 1
      %p227 = scmp.eq.s32.totalorder %s21, 1
      %p228 = scmp.ne.s32.totalorder %s223, %s225
      %p229 = scmp.eq.s32.totalorder %s21, 0
      %p230 = por %p228, %p229
      %p231 = scmp.ne.s32.totalorder %s223, %s225
      %p232 = scmp.eq.s32.totalorder %s26, 1
      %p233 = por %p231, %p232
      %p234 = scmp.ne.s32.totalorder %s225, %s226
      %p235 = scmp.eq.s32.totalorder %s26, 0
      %p236 = por %p234, %p235
      %p237 = scmp.ne.s32.totalorder %s225, %s226
      %p238 = scmp.eq.s32.totalorder %s27, 1
      %p239 = por %p237, %p238
      %p241 = scmp.ne.s32.totalorder %s226, %s240
      %p242 = scmp.eq.s32.totalorder %s27, 0
      %p243 = por %p241, %p242
      %s244 = ssub.s32 %s21, %s28
      %p245 = scmp.eq.s32.totalorder %s244, 0
      %s247 = sadd.s32 %s246, 1
      %s248 = scalar_select %p245, %s246, %s247
      %p251 = pneg %p245
      %p252 = scmp.eq.s32.totalorder %s21, 1
      %p253 = por %p251, %p252
      %p254 = scmp.ne.s32.totalorder %s246, %s249
      %p255 = scmp.eq.s32.totalorder %s21, 0
      %p256 = por %p254, %p255
      %p257 = scmp.ne.s32.totalorder %s246, %s249
      %p258 = scmp.eq.s32.totalorder %s26, 1
      %p259 = por %p257, %p258
      %p260 = scmp.ne.s32.totalorder %s249, %s250
      %p261 = scmp.eq.s32.totalorder %s26, 0
      %p262 = por %p260, %p261
      %p263 = scmp.ne.s32.totalorder %s249, %s250
      %p264 = scmp.eq.s32.totalorder %s27, 1
      %p265 = por %p263, %p264
      %p267 = scmp.ne.s32.totalorder %s250, %s266
      %p268 = scmp.eq.s32.totalorder %s27, 0
      %p269 = por %p267, %p268
      %p270 = scmp.le.s32.totalorder 1, %s21
      %p271 = scmp.lt.s32.totalorder %s21, 3
      %p272 = pnand %p270, %p271
      %p273 = pneg %p272
      // Predicated region
      $region9: #{tpu_custom_call.1} parent=5 // pred_check
        _
      $region10: #{tpu_custom_call.1} parent=5 // pred_check_branch
        %275 = sbr.rel (%p272) target = $region12
      $region11: #{tpu_custom_call.1} parent=5 // pred_region
        %s276 = ssub.s32 %s21, 1
        // Predicated region
        $region13: #{tpu_custom_call.1} parent=11 // pred_check
          %p277 = pneg %p68
        $region14: #{tpu_custom_call.1} parent=11 // pred_check_branch
          %279 = sbr.rel (%p277) target = $region16
        $region15: #{tpu_custom_call.1} parent=11 // pred_region
          _
        $region16: #{tpu_custom_call.1} parent=11 // pred_fallthru
          _
        // Predicated region
        $region17: #{tpu_custom_call.1} parent=11 // pred_check
          %p280 = pneg %p89
        $region18: #{tpu_custom_call.1} parent=11 // pred_check_branch
          %282 = sbr.rel (%p280) target = $region20
        $region19: #{tpu_custom_call.1} parent=11 // pred_region
          _
        $region20: #{tpu_custom_call.1} parent=11 // pred_fallthru
          _
        // Predicated region
        $region21: #{tpu_custom_call.1} parent=11 // pred_check
          %p283 = pneg %p110
        $region22: #{tpu_custom_call.1} parent=11 // pred_check_branch
          %285 = sbr.rel (%p283) target = $region24
        $region23: #{tpu_custom_call.1} parent=11 // pred_region
          %s287 = ssub.s32 2048, 2048
          %288 = vsyncadd [#allocation3], %s287
          %s289 = sshll.u32 [#allocation2], 4
          %s290 = int_to_ptr.vmem [resolvable:$true] %s289
          %295 = dma.hbm_to_vmem [thread:$0]  %s3, 2048, %s290, [#allocation3], 128, 128, 8
        $region24: #{tpu_custom_call.1} parent=11 // pred_fallthru
          _
        // Predicated region
        $region25: #{tpu_custom_call.1} parent=11 // pred_check
          %p296 = pneg %p131
        $region26: #{tpu_custom_call.1} parent=11 // pred_check_branch
          %298 = sbr.rel (%p296) target = $region28
        $region27: #{tpu_custom_call.1} parent=11 // pred_region
          _
        $region28: #{tpu_custom_call.1} parent=11 // pred_fallthru
          _
        // Predicated region
        $region29: #{tpu_custom_call.1} parent=11 // pred_check
          %p299 = pneg %p152
        $region30: #{tpu_custom_call.1} parent=11 // pred_check_branch
          %301 = sbr.rel (%p299) target = $region32
        $region31: #{tpu_custom_call.1} parent=11 // pred_region
          _
        $region32: #{tpu_custom_call.1} parent=11 // pred_fallthru
          _
        // Predicated region
        $region33: #{tpu_custom_call.1} parent=11 // pred_check
          %p302 = pneg %p173
        $region34: #{tpu_custom_call.1} parent=11 // pred_check_branch
          %304 = sbr.rel (%p302) target = $region36
        $region35: #{tpu_custom_call.1} parent=11 // pred_region
          %s306 = ssub.s32 8192, 8192
          %307 = vsyncadd [#allocation6], %s306
          %s308 = sshll.u32 [#allocation5], 4
          %s309 = int_to_ptr.vmem [resolvable:$true] %s308
          %314 = dma.hbm_to_vmem [thread:$0]  %s6, 8192, %s309, [#allocation6], 256, 256, 16
        $region36: #{tpu_custom_call.1} parent=11 // pred_fallthru
          _
        // Predicated region
        $region37: #{tpu_custom_call.1} parent=11 // pred_check
          %p315 = pneg %p194
        $region38: #{tpu_custom_call.1} parent=11 // pred_check_branch
          %317 = sbr.rel (%p315) target = $region40
        $region39: #{tpu_custom_call.1} parent=11 // pred_region
          _
        $region40: #{tpu_custom_call.1} parent=11 // pred_fallthru
          _
        // Predicated region
        $region41: #{tpu_custom_call.1} parent=11 // pred_check
          %p318 = pneg %p215
        $region42: #{tpu_custom_call.1} parent=11 // pred_check_branch
          %320 = sbr.rel (%p318) target = $region44
        $region43: #{tpu_custom_call.1} parent=11 // pred_region
          %s322 = ssub.s32 4096, 4096
          %323 = vsyncadd [#allocation6], %s322
          %s324 = sshll.u32 [#allocation7], 4
          %s325 = int_to_ptr.vmem [resolvable:$true] %s324
          %330 = dma.hbm_to_vmem [thread:$0]  %s8, 4096, %s325, [#allocation6], 64, 64, 4
        $region44: #{tpu_custom_call.1} parent=11 // pred_fallthru
          _
        // Predicated region
        $region45: #{tpu_custom_call.1} parent=11 // pred_check
          %p331 = pneg %p236
        $region46: #{tpu_custom_call.1} parent=11 // pred_check_branch
          %333 = sbr.rel (%p331) target = $region48
        $region47: #{tpu_custom_call.1} parent=11 // pred_region
          _
        $region48: #{tpu_custom_call.1} parent=11 // pred_fallthru
          _
      $region12: #{tpu_custom_call.1} parent=5 // pred_fallthru
        _
      %p334 = scmp.lt.s32.totalorder %s21, 2
      // Predicated region
      $region49: #{tpu_custom_call.1} parent=5 // pred_check
        %p335 = pneg %p334
      $region50: #{tpu_custom_call.1} parent=5 // pred_check_branch
        %337 = sbr.rel (%p335) target = $region52
      $region51: #{tpu_custom_call.1} parent=5 // pred_region
        // Predicated region
        $region53: #{tpu_custom_call.1} parent=51 // pred_check
          %p338 = pneg %p41
        $region54: #{tpu_custom_call.1} parent=51 // pred_check_branch
          %340 = sbr.rel (%p338) target = $region56
        $region55: #{tpu_custom_call.1} parent=51 // pred_region
          %s341 = smul.u32 32, %s21
          %p342 = scmp.lt.s32.totalorder %s341, 63
          %s343 = scalar_select %p342, %s341, 63
          %s344 = smul.addr %s343, 8
          %s345 = scalar_lea.vmem %s0, %s344
          %s346 = smul.u32 32, %s21
        $region56: #{tpu_custom_call.1} parent=51 // pred_fallthru
          _
      $region52: #{tpu_custom_call.1} parent=5 // pred_fallthru
        _
      %p347 = scmp.le.s32.totalorder 1, %s21
      %p348 = scmp.lt.s32.totalorder %s21, 3
      %p349 = pnand %p347, %p348
      %p350 = pneg %p349
      // Predicated region
      $region57: #{tpu_custom_call.1} parent=5 // pred_check
        _
      $region58: #{tpu_custom_call.1} parent=5 // pred_check_branch
        %352 = sbr.rel (%p349) target = $region60
      $region59: #{tpu_custom_call.1} parent=5 // pred_region
        %s353 = ssub.s32 %s21, 1
        // Predicated region
        $region61: #{tpu_custom_call.1} parent=59 // pred_check
          %p354 = pneg %p110
        $region62: #{tpu_custom_call.1} parent=59 // pred_check_branch
          %356 = sbr.rel (%p354) target = $region64
        $region63: #{tpu_custom_call.1} parent=59 // pred_region
          %357 = dma.done [#allocation3], 2048
        $region64: #{tpu_custom_call.1} parent=59 // pred_fallthru
          _
        // Predicated region
        $region65: #{tpu_custom_call.1} parent=59 // pred_check
          %p358 = pneg %p173
        $region66: #{tpu_custom_call.1} parent=59 // pred_check_branch
          %360 = sbr.rel (%p358) target = $region68
        $region67: #{tpu_custom_call.1} parent=59 // pred_region
          %361 = dma.done [#allocation6], 8192
        $region68: #{tpu_custom_call.1} parent=59 // pred_fallthru
          _
        // Predicated region
        $region69: #{tpu_custom_call.1} parent=59 // pred_check
          %p362 = pneg %p215
        $region70: #{tpu_custom_call.1} parent=59 // pred_check_branch
          %364 = sbr.rel (%p362) target = $region72
        $region71: #{tpu_custom_call.1} parent=59 // pred_region
          %365 = dma.done [#allocation6], 4096
        $region72: #{tpu_custom_call.1} parent=59 // pred_fallthru
          _
        %s366 = smul.u32 32, %s26
        %p367 = scmp.lt.s32.totalorder %s366, 63
        %s368 = scalar_select %p367, %s366, 63
        %s369 = smul.addr %s368, 8
        %s370 = scalar_lea.vmem %s0, %s369
        %p371 = pneg %p47
        %p372 = pneg %p44
        %p373 = pneg %p68
        %p374 = pneg %p65
        %p375 = pneg %p89
        %p376 = pneg %p86
        %p377 = pneg %p110
        %p378 = pneg %p107
        %p379 = pneg %p131
        %p380 = pneg %p128
        %p381 = pneg %p152
        %p382 = pneg %p149
        %p383 = pneg %p173
        %p384 = pneg %p170
        %p385 = pneg %p194
        %p386 = pneg %p191
        %p387 = pneg %p215
        %p388 = pneg %p212
        %p389 = pneg %p236
        %p390 = pneg %p233
        %p391 = pneg %p262
        %p392 = pneg %p259
        %s393 = sand.u32 %s249, 1
        %s394 = scalar_lea.sflag [#allocation4], %s393
        %s395 = sand.u32 %s249, 1
        %s396 = smul.addr %s395, 8
        %s397 = scalar_lea.vmem [#allocation8], %s396
        %s398 = smul.u32 32, %s26
        %p399 = scmp.lt.s32.totalorder %s398, 63
        %s400 = scalar_select %p399, %s398, 63
        %s401 = smul.addr %s400, 8
        %s402 = scalar_lea.vmem %s0, %s401
        %s403 = smul.u32 32, %s26
        %v405 = vld [vmem:[%s402] sm:$0xff]
        %v406 = vld [vmem:[%s402 + $0x8] sm:$0xff]
        %v407 = vld [vmem:[%s402 + $0x10] sm:$0xff]
        %v408 = vld [vmem:[%s402 + $0x18] sm:$0xff]
        %v409 = vld [vmem:[%s402 + $0x20] sm:$0xff]
        %v410 = vld [vmem:[%s402 + $0x28] sm:$0xff]
        %v411 = vld [vmem:[%s402 + $0x30] sm:$0xff]
        %v412 = vld [vmem:[%s402 + $0x38] sm:$0xff]
        %v413 = vld [vmem:[%s402 + $0x40] sm:$0xff]
        %v414 = vld [vmem:[%s402 + $0x48] sm:$0xff]
        %v415 = vld [vmem:[%s402 + $0x50] sm:$0xff]
        %v416 = vld [vmem:[%s402 + $0x58] sm:$0xff]
        %v417 = vld [vmem:[%s402 + $0x60] sm:$0xff]
        %v418 = vld [vmem:[%s402 + $0x68] sm:$0xff]
        %v419 = vld [vmem:[%s402 + $0x70] sm:$0xff]
        %v420 = vld [vmem:[%s402 + $0x78] sm:$0xff]
        %v421 = vld [vmem:[%s402 + $0x80] sm:$0xff]
        %v422 = vld [vmem:[%s402 + $0x88] sm:$0xff]
        %v423 = vld [vmem:[%s402 + $0x90] sm:$0xff]
        %v424 = vld [vmem:[%s402 + $0x98] sm:$0xff]
        %v425 = vld [vmem:[%s402 + $0xa0] sm:$0xff]
        %v426 = vld [vmem:[%s402 + $0xa8] sm:$0xff]
        %v427 = vld [vmem:[%s402 + $0xb0] sm:$0xff]
        %v428 = vld [vmem:[%s402 + $0xb8] sm:$0xff]
        %v429 = vld [vmem:[%s402 + $0xc0] sm:$0xff]
        %v430 = vld [vmem:[%s402 + $0xc8] sm:$0xff]
        %v431 = vld [vmem:[%s402 + $0xd0] sm:$0xff]
        %v432 = vld [vmem:[%s402 + $0xd8] sm:$0xff]
        %v433 = vld [vmem:[%s402 + $0xe0] sm:$0xff]
        %v434 = vld [vmem:[%s402 + $0xe8] sm:$0xff]
        %v435 = vld [vmem:[%s402 + $0xf0] sm:$0xff]
        %v436 = vld [vmem:[%s402 + $0xf8] sm:$0xff]
        %v437 = vld [vmem:[%s1] sm:$0x7]
        %439 = vset.pattern.permute.xlu0 0
        %440 = vperm.xlu0 %439, %v405
        %v441 = vpop.permute.xlu0 %440
        %444 = vset.pattern.permute.xlu0 0
        %445 = vperm.xlu0 %444, %v406
        %v446 = vpop.permute.xlu0 %445
        %449 = vset.pattern.permute.xlu0 0
        %450 = vperm.xlu0 %449, %v407
        %v451 = vpop.permute.xlu0 %450
        %454 = vset.pattern.permute.xlu0 0
        %455 = vperm.xlu0 %454, %v408
        %v456 = vpop.permute.xlu0 %455
        %459 = vset.pattern.permute.xlu0 0
        %460 = vperm.xlu0 %459, %v409
        %v461 = vpop.permute.xlu0 %460
        %464 = vset.pattern.permute.xlu0 0
        %465 = vperm.xlu0 %464, %v410
        %v466 = vpop.permute.xlu0 %465
        %469 = vset.pattern.permute.xlu0 0
        %470 = vperm.xlu0 %469, %v411
        %v471 = vpop.permute.xlu0 %470
        %474 = vset.pattern.permute.xlu0 0
        %475 = vperm.xlu0 %474, %v412
        %v476 = vpop.permute.xlu0 %475
        %479 = vset.pattern.permute.xlu0 0
        %480 = vperm.xlu0 %479, %v413
        %v481 = vpop.permute.xlu0 %480
        %484 = vset.pattern.permute.xlu0 0
        %485 = vperm.xlu0 %484, %v414
        %v486 = vpop.permute.xlu0 %485
        %489 = vset.pattern.permute.xlu0 0
        %490 = vperm.xlu0 %489, %v415
        %v491 = vpop.permute.xlu0 %490
        %494 = vset.pattern.permute.xlu0 0
        %495 = vperm.xlu0 %494, %v416
        %v496 = vpop.permute.xlu0 %495
        %499 = vset.pattern.permute.xlu0 0
        %500 = vperm.xlu0 %499, %v417
        %v501 = vpop.permute.xlu0 %500
        %504 = vset.pattern.permute.xlu0 0
        %505 = vperm.xlu0 %504, %v418
        %v506 = vpop.permute.xlu0 %505
        %509 = vset.pattern.permute.xlu0 0
        %510 = vperm.xlu0 %509, %v419
        %v511 = vpop.permute.xlu0 %510
        %514 = vset.pattern.permute.xlu0 0
        %515 = vperm.xlu0 %514, %v420
        %v516 = vpop.permute.xlu0 %515
        %519 = vset.pattern.permute.xlu0 0
        %520 = vperm.xlu0 %519, %v421
        %v521 = vpop.permute.xlu0 %520
        %524 = vset.pattern.permute.xlu0 0
        %525 = vperm.xlu0 %524, %v422
        %v526 = vpop.permute.xlu0 %525
        %529 = vset.pattern.permute.xlu0 0
        %530 = vperm.xlu0 %529, %v423
        %v531 = vpop.permute.xlu0 %530
        %534 = vset.pattern.permute.xlu0 0
        %535 = vperm.xlu0 %534, %v424
        %v536 = vpop.permute.xlu0 %535
        %539 = vset.pattern.permute.xlu0 0
        %540 = vperm.xlu0 %539, %v425
        %v541 = vpop.permute.xlu0 %540
        %544 = vset.pattern.permute.xlu0 0
        %545 = vperm.xlu0 %544, %v426
        %v546 = vpop.permute.xlu0 %545
        %549 = vset.pattern.permute.xlu0 0
        %550 = vperm.xlu0 %549, %v427
        %v551 = vpop.permute.xlu0 %550
        %554 = vset.pattern.permute.xlu0 0
        %555 = vperm.xlu0 %554, %v428
        %v556 = vpop.permute.xlu0 %555
        %559 = vset.pattern.permute.xlu0 0
        %560 = vperm.xlu0 %559, %v429
        %v561 = vpop.permute.xlu0 %560
        %564 = vset.pattern.permute.xlu0 0
        %565 = vperm.xlu0 %564, %v430
        %v566 = vpop.permute.xlu0 %565
        %569 = vset.pattern.permute.xlu0 0
        %570 = vperm.xlu0 %569, %v431
        %v571 = vpop.permute.xlu0 %570
        %574 = vset.pattern.permute.xlu0 0
        %575 = vperm.xlu0 %574, %v432
        %v576 = vpop.permute.xlu0 %575
        %579 = vset.pattern.permute.xlu0 0
        %580 = vperm.xlu0 %579, %v433
        %v581 = vpop.permute.xlu0 %580
        %584 = vset.pattern.permute.xlu0 0
        %585 = vperm.xlu0 %584, %v434
        %v586 = vpop.permute.xlu0 %585
        %589 = vset.pattern.permute.xlu0 0
        %590 = vperm.xlu0 %589, %v435
        %v591 = vpop.permute.xlu0 %590
        %594 = vset.pattern.permute.xlu0 0
        %595 = vperm.xlu0 %594, %v436
        %v596 = vpop.permute.xlu0 %595
        %v598 = vlaneseq
        %v599 = vshrl.u32 %v598, 7
        %v600 = vsub.s32 0, %v599
        %v601 = vrot.slane %v437, %v600
        %v602 = vmul.f32 %v441, %v601
        %v603 = vmul.f32 %v446, %v601
        %v604 = vmul.f32 %v451, %v601
        %v605 = vmul.f32 %v456, %v601
        %v606 = vmul.f32 %v461, %v601
        %v607 = vmul.f32 %v466, %v601
        %v608 = vmul.f32 %v471, %v601
        %v609 = vmul.f32 %v476, %v601
        %v610 = vmul.f32 %v481, %v601
        %v611 = vmul.f32 %v486, %v601
        %v612 = vmul.f32 %v491, %v601
        %v613 = vmul.f32 %v496, %v601
        %v614 = vmul.f32 %v501, %v601
        %v615 = vmul.f32 %v506, %v601
        %v616 = vmul.f32 %v511, %v601
        %v617 = vmul.f32 %v516, %v601
        %v618 = vmul.f32 %v521, %v601
        %v619 = vmul.f32 %v526, %v601
        %v620 = vmul.f32 %v531, %v601
        %v621 = vmul.f32 %v536, %v601
        %v622 = vmul.f32 %v541, %v601
        %v623 = vmul.f32 %v546, %v601
        %v624 = vmul.f32 %v551, %v601
        %v625 = vmul.f32 %v556, %v601
        %v626 = vmul.f32 %v561, %v601
        %v627 = vmul.f32 %v566, %v601
        %v628 = vmul.f32 %v571, %v601
        %v629 = vmul.f32 %v576, %v601
        %v630 = vmul.f32 %v581, %v601
        %v631 = vmul.f32 %v586, %v601
        %v632 = vmul.f32 %v591, %v601
        %v633 = vmul.f32 %v596, %v601
        %634 = vset.pattern.permute.xlu0 1
        %635 = vperm.xlu0 %634, %v405
        %v636 = vpop.permute.xlu0 %635
        %638 = vset.pattern.permute.xlu0 1
        %639 = vperm.xlu0 %638, %v406
        %v640 = vpop.permute.xlu0 %639
        %642 = vset.pattern.permute.xlu0 1
        %643 = vperm.xlu0 %642, %v407
        %v644 = vpop.permute.xlu0 %643
        %646 = vset.pattern.permute.xlu0 1
        %647 = vperm.xlu0 %646, %v408
        %v648 = vpop.permute.xlu0 %647
        %650 = vset.pattern.permute.xlu0 1
        %651 = vperm.xlu0 %650, %v409
        %v652 = vpop.permute.xlu0 %651
        %654 = vset.pattern.permute.xlu0 1
        %655 = vperm.xlu0 %654, %v410
        %v656 = vpop.permute.xlu0 %655
        %658 = vset.pattern.permute.xlu0 1
        %659 = vperm.xlu0 %658, %v411
        %v660 = vpop.permute.xlu0 %659
        %662 = vset.pattern.permute.xlu0 1
        %663 = vperm.xlu0 %662, %v412
        %v664 = vpop.permute.xlu0 %663
        %666 = vset.pattern.permute.xlu0 1
        %667 = vperm.xlu0 %666, %v413
        %v668 = vpop.permute.xlu0 %667
        %670 = vset.pattern.permute.xlu0 1
        %671 = vperm.xlu0 %670, %v414
        %v672 = vpop.permute.xlu0 %671
        %674 = vset.pattern.permute.xlu0 1
        %675 = vperm.xlu0 %674, %v415
        %v676 = vpop.permute.xlu0 %675
        %678 = vset.pattern.permute.xlu0 1
        %679 = vperm.xlu0 %678, %v416
        %v680 = vpop.permute.xlu0 %679
        %682 = vset.pattern.permute.xlu0 1
        %683 = vperm.xlu0 %682, %v417
        %v684 = vpop.permute.xlu0 %683
        %686 = vset.pattern.permute.xlu0 1
        %687 = vperm.xlu0 %686, %v418
        %v688 = vpop.permute.xlu0 %687
        %690 = vset.pattern.permute.xlu0 1
        %691 = vperm.xlu0 %690, %v419
        %v692 = vpop.permute.xlu0 %691
        %694 = vset.pattern.permute.xlu0 1
        %695 = vperm.xlu0 %694, %v420
        %v696 = vpop.permute.xlu0 %695
        %698 = vset.pattern.permute.xlu0 1
        %699 = vperm.xlu0 %698, %v421
        %v700 = vpop.permute.xlu0 %699
        %702 = vset.pattern.permute.xlu0 1
        %703 = vperm.xlu0 %702, %v422
        %v704 = vpop.permute.xlu0 %703
        %706 = vset.pattern.permute.xlu0 1
        %707 = vperm.xlu0 %706, %v423
        %v708 = vpop.permute.xlu0 %707
        %710 = vset.pattern.permute.xlu0 1
        %711 = vperm.xlu0 %710, %v424
        %v712 = vpop.permute.xlu0 %711
        %714 = vset.pattern.permute.xlu0 1
        %715 = vperm.xlu0 %714, %v425
        %v716 = vpop.permute.xlu0 %715
        %718 = vset.pattern.permute.xlu0 1
        %719 = vperm.xlu0 %718, %v426
        %v720 = vpop.permute.xlu0 %719
        %722 = vset.pattern.permute.xlu0 1
        %723 = vperm.xlu0 %722, %v427
        %v724 = vpop.permute.xlu0 %723
        %726 = vset.pattern.permute.xlu0 1
        %727 = vperm.xlu0 %726, %v428
        %v728 = vpop.permute.xlu0 %727
        %730 = vset.pattern.permute.xlu0 1
        %731 = vperm.xlu0 %730, %v429
        %v732 = vpop.permute.xlu0 %731
        %734 = vset.pattern.permute.xlu0 1
        %735 = vperm.xlu0 %734, %v430
        %v736 = vpop.permute.xlu0 %735
        %738 = vset.pattern.permute.xlu0 1
        %739 = vperm.xlu0 %738, %v431
        %v740 = vpop.permute.xlu0 %739
        %742 = vset.pattern.permute.xlu0 1
        %743 = vperm.xlu0 %742, %v432
        %v744 = vpop.permute.xlu0 %743
        %746 = vset.pattern.permute.xlu0 1
        %747 = vperm.xlu0 %746, %v433
        %v748 = vpop.permute.xlu0 %747
        %750 = vset.pattern.permute.xlu0 1
        %751 = vperm.xlu0 %750, %v434
        %v752 = vpop.permute.xlu0 %751
        %754 = vset.pattern.permute.xlu0 1
        %755 = vperm.xlu0 %754, %v435
        %v756 = vpop.permute.xlu0 %755
        %758 = vset.pattern.permute.xlu0 1
        %759 = vperm.xlu0 %758, %v436
        %v760 = vpop.permute.xlu0 %759
        %v762 = vlaneseq
        %v763 = vshrl.u32 %v762, 7
        %v764 = vsub.s32 1, %v763
        %v765 = vrot.slane %v437, %v764
        %v766 = vmul.f32 %v636, %v765
        %v767 = vmul.f32 %v640, %v765
        %v768 = vmul.f32 %v644, %v765
        %v769 = vmul.f32 %v648, %v765
        %v770 = vmul.f32 %v652, %v765
        %v771 = vmul.f32 %v656, %v765
        %v772 = vmul.f32 %v660, %v765
        %v773 = vmul.f32 %v664, %v765
        %v774 = vmul.f32 %v668, %v765
        %v775 = vmul.f32 %v672, %v765
        %v776 = vmul.f32 %v676, %v765
        %v777 = vmul.f32 %v680, %v765
        %v778 = vmul.f32 %v684, %v765
        %v779 = vmul.f32 %v688, %v765
        %v780 = vmul.f32 %v692, %v765
        %v781 = vmul.f32 %v696, %v765
        %v782 = vmul.f32 %v700, %v765
        %v783 = vmul.f32 %v704, %v765
        %v784 = vmul.f32 %v708, %v765
        %v785 = vmul.f32 %v712, %v765
        %v786 = vmul.f32 %v716, %v765
        %v787 = vmul.f32 %v720, %v765
        %v788 = vmul.f32 %v724, %v765
        %v789 = vmul.f32 %v728, %v765
        %v790 = vmul.f32 %v732, %v765
        %v791 = vmul.f32 %v736, %v765
        %v792 = vmul.f32 %v740, %v765
        %v793 = vmul.f32 %v744, %v765
        %v794 = vmul.f32 %v748, %v765
        %v795 = vmul.f32 %v752, %v765
        %v796 = vmul.f32 %v756, %v765
        %v797 = vmul.f32 %v760, %v765
        %v798 = vadd.f32 %v602, %v766
        %v799 = vadd.f32 %v603, %v767
        %v800 = vadd.f32 %v604, %v768
        %v801 = vadd.f32 %v605, %v769
        %v802 = vadd.f32 %v606, %v770
        %v803 = vadd.f32 %v607, %v771
        %v804 = vadd.f32 %v608, %v772
        %v805 = vadd.f32 %v609, %v773
        %v806 = vadd.f32 %v610, %v774
        %v807 = vadd.f32 %v611, %v775
        %v808 = vadd.f32 %v612, %v776
        %v809 = vadd.f32 %v613, %v777
        %v810 = vadd.f32 %v614, %v778
        %v811 = vadd.f32 %v615, %v779
        %v812 = vadd.f32 %v616, %v780
        %v813 = vadd.f32 %v617, %v781
        %v814 = vadd.f32 %v618, %v782
        %v815 = vadd.f32 %v619, %v783
        %v816 = vadd.f32 %v620, %v784
        %v817 = vadd.f32 %v621, %v785
        %v818 = vadd.f32 %v622, %v786
        %v819 = vadd.f32 %v623, %v787
        %v820 = vadd.f32 %v624, %v788
        %v821 = vadd.f32 %v625, %v789
        %v822 = vadd.f32 %v626, %v790
        %v823 = vadd.f32 %v627, %v791
        %v824 = vadd.f32 %v628, %v792
        %v825 = vadd.f32 %v629, %v793
        %v826 = vadd.f32 %v630, %v794
        %v827 = vadd.f32 %v631, %v795
        %v828 = vadd.f32 %v632, %v796
        %v829 = vadd.f32 %v633, %v797
        %830 = vset.pattern.permute.xlu0 2
        %831 = vperm.xlu0 %830, %v405
        %v832 = vpop.permute.xlu0 %831
        %834 = vset.pattern.permute.xlu0 2
        %835 = vperm.xlu0 %834, %v406
        %v836 = vpop.permute.xlu0 %835
        %838 = vset.pattern.permute.xlu0 2
        %839 = vperm.xlu0 %838, %v407
        %v840 = vpop.permute.xlu0 %839
        %842 = vset.pattern.permute.xlu0 2
        %843 = vperm.xlu0 %842, %v408
        %v844 = vpop.permute.xlu0 %843
        %846 = vset.pattern.permute.xlu0 2
        %847 = vperm.xlu0 %846, %v409
        %v848 = vpop.permute.xlu0 %847
        %850 = vset.pattern.permute.xlu0 2
        %851 = vperm.xlu0 %850, %v410
        %v852 = vpop.permute.xlu0 %851
        %854 = vset.pattern.permute.xlu0 2
        %855 = vperm.xlu0 %854, %v411
        %v856 = vpop.permute.xlu0 %855
        %858 = vset.pattern.permute.xlu0 2
        %859 = vperm.xlu0 %858, %v412
        %v860 = vpop.permute.xlu0 %859
        %862 = vset.pattern.permute.xlu0 2
        %863 = vperm.xlu0 %862, %v413
        %v864 = vpop.permute.xlu0 %863
        %866 = vset.pattern.permute.xlu0 2
        %867 = vperm.xlu0 %866, %v414
        %v868 = vpop.permute.xlu0 %867
        %870 = vset.pattern.permute.xlu0 2
        %871 = vperm.xlu0 %870, %v415
        %v872 = vpop.permute.xlu0 %871
        %874 = vset.pattern.permute.xlu0 2
        %875 = vperm.xlu0 %874, %v416
        %v876 = vpop.permute.xlu0 %875
        %878 = vset.pattern.permute.xlu0 2
        %879 = vperm.xlu0 %878, %v417
        %v880 = vpop.permute.xlu0 %879
        %882 = vset.pattern.permute.xlu0 2
        %883 = vperm.xlu0 %882, %v418
        %v884 = vpop.permute.xlu0 %883
        %886 = vset.pattern.permute.xlu0 2
        %887 = vperm.xlu0 %886, %v419
        %v888 = vpop.permute.xlu0 %887
        %890 = vset.pattern.permute.xlu0 2
        %891 = vperm.xlu0 %890, %v420
        %v892 = vpop.permute.xlu0 %891
        %894 = vset.pattern.permute.xlu0 2
        %895 = vperm.xlu0 %894, %v421
        %v896 = vpop.permute.xlu0 %895
        %898 = vset.pattern.permute.xlu0 2
        %899 = vperm.xlu0 %898, %v422
        %v900 = vpop.permute.xlu0 %899
        %902 = vset.pattern.permute.xlu0 2
        %903 = vperm.xlu0 %902, %v423
        %v904 = vpop.permute.xlu0 %903
        %906 = vset.pattern.permute.xlu0 2
        %907 = vperm.xlu0 %906, %v424
        %v908 = vpop.permute.xlu0 %907
        %910 = vset.pattern.permute.xlu0 2
        %911 = vperm.xlu0 %910, %v425
        %v912 = vpop.permute.xlu0 %911
        %914 = vset.pattern.permute.xlu0 2
        %915 = vperm.xlu0 %914, %v426
        %v916 = vpop.permute.xlu0 %915
        %918 = vset.pattern.permute.xlu0 2
        %919 = vperm.xlu0 %918, %v427
        %v920 = vpop.permute.xlu0 %919
        %922 = vset.pattern.permute.xlu0 2
        %923 = vperm.xlu0 %922, %v428
        %v924 = vpop.permute.xlu0 %923
        %926 = vset.pattern.permute.xlu0 2
        %927 = vperm.xlu0 %926, %v429
        %v928 = vpop.permute.xlu0 %927
        %930 = vset.pattern.permute.xlu0 2
        %931 = vperm.xlu0 %930, %v430
        %v932 = vpop.permute.xlu0 %931
        %934 = vset.pattern.permute.xlu0 2
        %935 = vperm.xlu0 %934, %v431
        %v936 = vpop.permute.xlu0 %935
        %938 = vset.pattern.permute.xlu0 2
        %939 = vperm.xlu0 %938, %v432
        %v940 = vpop.permute.xlu0 %939
        %942 = vset.pattern.permute.xlu0 2
        %943 = vperm.xlu0 %942, %v433
        %v944 = vpop.permute.xlu0 %943
        %946 = vset.pattern.permute.xlu0 2
        %947 = vperm.xlu0 %946, %v434
        %v948 = vpop.permute.xlu0 %947
        %950 = vset.pattern.permute.xlu0 2
        %951 = vperm.xlu0 %950, %v435
        %v952 = vpop.permute.xlu0 %951
        %954 = vset.pattern.permute.xlu0 2
        %955 = vperm.xlu0 %954, %v436
        %v956 = vpop.permute.xlu0 %955
        %v958 = vlaneseq
        %v959 = vshrl.u32 %v958, 7
        %v960 = vsub.s32 2, %v959
        %v961 = vrot.slane %v437, %v960
        %v962 = vmul.f32 %v832, %v961
        %v963 = vmul.f32 %v836, %v961
        %v964 = vmul.f32 %v840, %v961
        %v965 = vmul.f32 %v844, %v961
        %v966 = vmul.f32 %v848, %v961
        %v967 = vmul.f32 %v852, %v961
        %v968 = vmul.f32 %v856, %v961
        %v969 = vmul.f32 %v860, %v961
        %v970 = vmul.f32 %v864, %v961
        %v971 = vmul.f32 %v868, %v961
        %v972 = vmul.f32 %v872, %v961
        %v973 = vmul.f32 %v876, %v961
        %v974 = vmul.f32 %v880, %v961
        %v975 = vmul.f32 %v884, %v961
        %v976 = vmul.f32 %v888, %v961
        %v977 = vmul.f32 %v892, %v961
        %v978 = vmul.f32 %v896, %v961
        %v979 = vmul.f32 %v900, %v961
        %v980 = vmul.f32 %v904, %v961
        %v981 = vmul.f32 %v908, %v961
        %v982 = vmul.f32 %v912, %v961
        %v983 = vmul.f32 %v916, %v961
        %v984 = vmul.f32 %v920, %v961
        %v985 = vmul.f32 %v924, %v961
        %v986 = vmul.f32 %v928, %v961
        %v987 = vmul.f32 %v932, %v961
        %v988 = vmul.f32 %v936, %v961
        %v989 = vmul.f32 %v940, %v961
        %v990 = vmul.f32 %v944, %v961
        %v991 = vmul.f32 %v948, %v961
        %v992 = vmul.f32 %v952, %v961
        %v993 = vmul.f32 %v956, %v961
        %v994 = vadd.f32 %v798, %v962
        %v995 = vadd.f32 %v799, %v963
        %v996 = vadd.f32 %v800, %v964
        %v997 = vadd.f32 %v801, %v965
        %v998 = vadd.f32 %v802, %v966
        %v999 = vadd.f32 %v803, %v967
        %v1000 = vadd.f32 %v804, %v968
        %v1001 = vadd.f32 %v805, %v969
        %v1002 = vadd.f32 %v806, %v970
        %v1003 = vadd.f32 %v807, %v971
        %v1004 = vadd.f32 %v808, %v972
        %v1005 = vadd.f32 %v809, %v973
        %v1006 = vadd.f32 %v810, %v974
        %v1007 = vadd.f32 %v811, %v975
        %v1008 = vadd.f32 %v812, %v976
        %v1009 = vadd.f32 %v813, %v977
        %v1010 = vadd.f32 %v814, %v978
        %v1011 = vadd.f32 %v815, %v979
        %v1012 = vadd.f32 %v816, %v980
        %v1013 = vadd.f32 %v817, %v981
        %v1014 = vadd.f32 %v818, %v982
        %v1015 = vadd.f32 %v819, %v983
        %v1016 = vadd.f32 %v820, %v984
        %v1017 = vadd.f32 %v821, %v985
        %v1018 = vadd.f32 %v822, %v986
        %v1019 = vadd.f32 %v823, %v987
        %v1020 = vadd.f32 %v824, %v988
        %v1021 = vadd.f32 %v825, %v989
        %v1022 = vadd.f32 %v826, %v990
        %v1023 = vadd.f32 %v827, %v991
        %v1024 = vadd.f32 %v828, %v992
        %v1025 = vadd.f32 %v829, %v993
        %v1026 = vld [vmem:[%s2] sm:$0x1]
        %v1028 = vlaneseq
        %v1029 = vshrl.u32 %v1028, 7
        %v1030 = vsub.s32 0, %v1029
        %v1031 = vrot.slane %v1026, %v1030
        %v1033 = vadd.f32 %v994, %v1031
        %v1034 = vadd.f32 %v995, %v1031
        %v1035 = vadd.f32 %v996, %v1031
        %v1036 = vadd.f32 %v997, %v1031
        %v1037 = vadd.f32 %v998, %v1031
        %v1038 = vadd.f32 %v999, %v1031
        %v1039 = vadd.f32 %v1000, %v1031
        %v1040 = vadd.f32 %v1001, %v1031
        %v1041 = vadd.f32 %v1002, %v1031
        %v1042 = vadd.f32 %v1003, %v1031
        %v1043 = vadd.f32 %v1004, %v1031
        %v1044 = vadd.f32 %v1005, %v1031
        %v1045 = vadd.f32 %v1006, %v1031
        %v1046 = vadd.f32 %v1007, %v1031
        %v1047 = vadd.f32 %v1008, %v1031
        %v1048 = vadd.f32 %v1009, %v1031
        %v1049 = vadd.f32 %v1010, %v1031
        %v1050 = vadd.f32 %v1011, %v1031
        %v1051 = vadd.f32 %v1012, %v1031
        %v1052 = vadd.f32 %v1013, %v1031
        %v1053 = vadd.f32 %v1014, %v1031
        %v1054 = vadd.f32 %v1015, %v1031
        %v1055 = vadd.f32 %v1016, %v1031
        %v1056 = vadd.f32 %v1017, %v1031
        %v1057 = vadd.f32 %v1018, %v1031
        %v1058 = vadd.f32 %v1019, %v1031
        %v1059 = vadd.f32 %v1020, %v1031
        %v1060 = vadd.f32 %v1021, %v1031
        %v1061 = vadd.f32 %v1022, %v1031
        %v1062 = vadd.f32 %v1023, %v1031
        %v1063 = vadd.f32 %v1024, %v1031
        %v1064 = vadd.f32 %v1025, %v1031
        %v1065 = vmax.f32 %v1033, 0.0
        %v1066 = vmax.f32 %v1034, 0.0
        %v1067 = vmax.f32 %v1035, 0.0
        %v1068 = vmax.f32 %v1036, 0.0
        %v1069 = vmax.f32 %v1037, 0.0
        %v1070 = vmax.f32 %v1038, 0.0
        %v1071 = vmax.f32 %v1039, 0.0
        %v1072 = vmax.f32 %v1040, 0.0
        %v1073 = vmax.f32 %v1041, 0.0
        %v1074 = vmax.f32 %v1042, 0.0
        %v1075 = vmax.f32 %v1043, 0.0
        %v1076 = vmax.f32 %v1044, 0.0
        %v1077 = vmax.f32 %v1045, 0.0
        %v1078 = vmax.f32 %v1046, 0.0
        %v1079 = vmax.f32 %v1047, 0.0
        %v1080 = vmax.f32 %v1048, 0.0
        %v1081 = vmax.f32 %v1049, 0.0
        %v1082 = vmax.f32 %v1050, 0.0
        %v1083 = vmax.f32 %v1051, 0.0
        %v1084 = vmax.f32 %v1052, 0.0
        %v1085 = vmax.f32 %v1053, 0.0
        %v1086 = vmax.f32 %v1054, 0.0
        %v1087 = vmax.f32 %v1055, 0.0
        %v1088 = vmax.f32 %v1056, 0.0
        %v1089 = vmax.f32 %v1057, 0.0
        %v1090 = vmax.f32 %v1058, 0.0
        %v1091 = vmax.f32 %v1059, 0.0
        %v1092 = vmax.f32 %v1060, 0.0
        %v1093 = vmax.f32 %v1061, 0.0
        %v1094 = vmax.f32 %v1062, 0.0
        %v1095 = vmax.f32 %v1063, 0.0
        %v1096 = vmax.f32 %v1064, 0.0
        %v1097 = vpack.c.bf16 %v1066, %v1065
        %v1098 = vpack.c.bf16 %v1068, %v1067
        %v1099 = vpack.c.bf16 %v1070, %v1069
        %v1100 = vpack.c.bf16 %v1072, %v1071
        %v1101 = vpack.c.bf16 %v1074, %v1073
        %v1102 = vpack.c.bf16 %v1076, %v1075
        %v1103 = vpack.c.bf16 %v1078, %v1077
        %v1104 = vpack.c.bf16 %v1080, %v1079
        %v1105 = vpack.c.bf16 %v1082, %v1081
        %v1106 = vpack.c.bf16 %v1084, %v1083
        %v1107 = vpack.c.bf16 %v1086, %v1085
        %v1108 = vpack.c.bf16 %v1088, %v1087
        %v1109 = vpack.c.bf16 %v1090, %v1089
        %v1110 = vpack.c.bf16 %v1092, %v1091
        %v1111 = vpack.c.bf16 %v1094, %v1093
        %v1112 = vpack.c.bf16 %v1096, %v1095
        %v1113 = vld [vmem:[#allocation2] sm:$0xff]
        %v1114 = vld [vmem:[#allocation2 + $0x8] sm:$0xff]
        %v1115 = vld [vmem:[#allocation2 + $0x10] sm:$0xff]
        %v1116 = vld [vmem:[#allocation2 + $0x18] sm:$0xff]
        %v1117 = vld [vmem:[#allocation2 + $0x20] sm:$0xff]
        %v1118 = vld [vmem:[#allocation2 + $0x28] sm:$0xff]
        %v1119 = vld [vmem:[#allocation2 + $0x30] sm:$0xff]
        %v1120 = vld [vmem:[#allocation2 + $0x38] sm:$0xff]
        %v1121 = vld [vmem:[#allocation2 + $0x40] sm:$0xff]
        %v1122 = vld [vmem:[#allocation2 + $0x48] sm:$0xff]
        %v1123 = vld [vmem:[#allocation2 + $0x50] sm:$0xff]
        %v1124 = vld [vmem:[#allocation2 + $0x58] sm:$0xff]
        %v1125 = vld [vmem:[#allocation2 + $0x60] sm:$0xff]
        %v1126 = vld [vmem:[#allocation2 + $0x68] sm:$0xff]
        %v1127 = vld [vmem:[#allocation2 + $0x70] sm:$0xff]
        %v1128 = vld [vmem:[#allocation2 + $0x78] sm:$0xff]
        %v1129 = vld [vmem:[%s4] sm:$0x3]
        %v1131 = vlaneseq
        %v1132 = vshrl.u32 %v1131, 7
        %v1133 = vsub.s32 0, %v1132
        %v1134 = vrot.slane %v1129, %v1133
        %v1135 = vlaneseq
        %v1136 = vshrl.u32 %v1135, 7
        %v1137 = vsub.s32 1, %v1136
        %v1138 = vrot.slane %v1129, %v1137
        %v1157 = vunpack.c.l.b16 %v1113
        %v1158 = vunpack.c.h.b16 %v1113
        %v1159 = vunpack.c.l.b16 %v1114
        %v1160 = vunpack.c.h.b16 %v1114
        %v1161 = vunpack.c.l.b16 %v1115
        %v1162 = vunpack.c.h.b16 %v1115
        %v1163 = vunpack.c.l.b16 %v1116
        %v1164 = vunpack.c.h.b16 %v1116
        %v1165 = vunpack.c.l.b16 %v1117
        %v1166 = vunpack.c.h.b16 %v1117
        %v1167 = vunpack.c.l.b16 %v1118
        %v1168 = vunpack.c.h.b16 %v1118
        %v1169 = vunpack.c.l.b16 %v1119
        %v1170 = vunpack.c.h.b16 %v1119
        %v1171 = vunpack.c.l.b16 %v1120
        %v1172 = vunpack.c.h.b16 %v1120
        %v1173 = vunpack.c.l.b16 %v1121
        %v1174 = vunpack.c.h.b16 %v1121
        %v1175 = vunpack.c.l.b16 %v1122
        %v1176 = vunpack.c.h.b16 %v1122
        %v1177 = vunpack.c.l.b16 %v1123
        %v1178 = vunpack.c.h.b16 %v1123
        %v1179 = vunpack.c.l.b16 %v1124
        %v1180 = vunpack.c.h.b16 %v1124
        %v1181 = vunpack.c.l.b16 %v1125
        %v1182 = vunpack.c.h.b16 %v1125
        %v1183 = vunpack.c.l.b16 %v1126
        %v1184 = vunpack.c.h.b16 %v1126
        %v1185 = vunpack.c.l.b16 %v1127
        %v1186 = vunpack.c.h.b16 %v1127
        %v1187 = vunpack.c.l.b16 %v1128
        %v1188 = vunpack.c.h.b16 %v1128
        %v1189 = vpack.c.b16 %v1159, %v1157
        %v1190 = vpack.c.b16 %v1160, %v1158
        %v1191 = vpack.c.b16 %v1163, %v1161
        %v1192 = vpack.c.b16 %v1164, %v1162
        %v1193 = vpack.c.b16 %v1167, %v1165
        %v1194 = vpack.c.b16 %v1168, %v1166
        %v1195 = vpack.c.b16 %v1171, %v1169
        %v1196 = vpack.c.b16 %v1172, %v1170
        %v1197 = vpack.c.b16 %v1175, %v1173
        %v1198 = vpack.c.b16 %v1176, %v1174
        %v1199 = vpack.c.b16 %v1179, %v1177
        %v1200 = vpack.c.b16 %v1180, %v1178
        %v1201 = vpack.c.b16 %v1183, %v1181
        %v1202 = vpack.c.b16 %v1184, %v1182
        %v1203 = vpack.c.b16 %v1187, %v1185
        %v1204 = vpack.c.b16 %v1188, %v1186
        %1221 = vmatprep.subr.bf16.mxu0 %v1204
        %1222 = vmatpush1.bf16.msra.mxu0 %v1203
        %1223 = vmatprep.subr.bf16.mxu0 %v1202
        %1224 = vmatpush1.bf16.msra.mxu0 %v1201
        %1225 = vmatprep.subr.bf16.mxu0 %v1200
        %1226 = vmatpush1.bf16.msra.mxu0 %v1199
        %1227 = vmatprep.subr.bf16.mxu0 %v1198
        %1228 = vmatpush1.bf16.msra.mxu0 %v1197
        %1229 = vmatprep.subr.bf16.mxu0 %v1196
        %1230 = vmatpush1.bf16.msra.mxu0 %v1195
        %1231 = vmatprep.subr.bf16.mxu0 %v1194
        %1232 = vmatpush1.bf16.msra.mxu0 %v1193
        %1233 = vmatprep.subr.bf16.mxu0 %v1192
        %1234 = vmatpush1.bf16.msra.mxu0 %v1191
        %1235 = vmatprep.subr.bf16.mxu0 %v1190
        %1236 = vmatpush1.bf16.msra.mxu0 %v1189
        %1237 = vmatprep.subr.bf16.mxu0 0
        %1238 = vmatpush2.bf16.msra.mxu0 0
        %1239 = vmatprep.subr.bf16.mxu0 0
        %1240 = vmatpush2.bf16.msra.mxu0 0
        %1241 = vmatprep.subr.bf16.mxu0 0
        %1242 = vmatpush2.bf16.msra.mxu0 0
        %1243 = vmatprep.subr.bf16.mxu0 0
        %1244 = vmatpush2.bf16.msra.mxu0 0
        %1245 = vmatprep.subr.bf16.mxu0 0
        %1246 = vmatpush2.bf16.msra.mxu0 0
        %1247 = vmatprep.subr.bf16.mxu0 0
        %1248 = vmatpush2.bf16.msra.mxu0 0
        %1249 = vmatprep.subr.bf16.mxu0 0
        %1250 = vmatpush2.bf16.msra.mxu0 0
        %1251 = vmatprep.subr.bf16.mxu0 0
        %1252 = vmatpush2.bf16.msra.mxu0 0
        %1253 = vmatprep.mubr.bf16.mxu0 0
        %1254 = vmatmul.mubr.bf16.gmra.mxu0 %v1097
        %v1255 = vpop.f32.mrf.mxu0
        %v1256 = vadd.f32 %v1134, %v1255
        %v1257 = vpop.f32.mrf.mxu0
        %v1258 = vadd.f32 %v1138, %v1257
        %v1259 = vpop.f32.mrf.mxu0
        %v1260 = vadd.f32 %v1134, %v1259
        %v1261 = vpop.f32.mrf.mxu0
        %v1262 = vadd.f32 %v1138, %v1261
        %1263 = vmatprep.mubr.bf16.mxu0 0
        %1264 = vmatmul.mubr.bf16.gmra.mxu0 %v1098
        %v1265 = vpop.f32.mrf.mxu0
        %v1266 = vadd.f32 %v1134, %v1265
        %v1267 = vpop.f32.mrf.mxu0
        %v1268 = vadd.f32 %v1138, %v1267
        %v1269 = vpop.f32.mrf.mxu0
        %v1270 = vadd.f32 %v1134, %v1269
        %v1271 = vpop.f32.mrf.mxu0
        %v1272 = vadd.f32 %v1138, %v1271
        %1273 = vmatprep.mubr.bf16.mxu0 0
        %1274 = vmatmul.mubr.bf16.gmra.mxu0 %v1099
        %v1275 = vpop.f32.mrf.mxu0
        %v1276 = vadd.f32 %v1134, %v1275
        %v1277 = vpop.f32.mrf.mxu0
        %v1278 = vadd.f32 %v1138, %v1277
        %v1279 = vpop.f32.mrf.mxu0
        %v1280 = vadd.f32 %v1134, %v1279
        %v1281 = vpop.f32.mrf.mxu0
        %v1282 = vadd.f32 %v1138, %v1281
        %1283 = vmatprep.mubr.bf16.mxu0 0
        %1284 = vmatmul.mubr.bf16.gmra.mxu0 %v1100
        %v1285 = vpop.f32.mrf.mxu0
        %v1286 = vadd.f32 %v1134, %v1285
        %v1287 = vpop.f32.mrf.mxu0
        %v1288 = vadd.f32 %v1138, %v1287
        %v1289 = vpop.f32.mrf.mxu0
        %v1290 = vadd.f32 %v1134, %v1289
        %v1291 = vpop.f32.mrf.mxu0
        %v1292 = vadd.f32 %v1138, %v1291
        %1293 = vmatprep.mubr.bf16.mxu0 0
        %1294 = vmatmul.mubr.bf16.gmra.mxu0 %v1101
        %v1295 = vpop.f32.mrf.mxu0
        %v1296 = vadd.f32 %v1134, %v1295
        %v1297 = vpop.f32.mrf.mxu0
        %v1298 = vadd.f32 %v1138, %v1297
        %v1299 = vpop.f32.mrf.mxu0
        %v1300 = vadd.f32 %v1134, %v1299
        %v1301 = vpop.f32.mrf.mxu0
        %v1302 = vadd.f32 %v1138, %v1301
        %1303 = vmatprep.mubr.bf16.mxu0 0
        %1304 = vmatmul.mubr.bf16.gmra.mxu0 %v1102
        %v1305 = vpop.f32.mrf.mxu0
        %v1306 = vadd.f32 %v1134, %v1305
        %v1307 = vpop.f32.mrf.mxu0
        %v1308 = vadd.f32 %v1138, %v1307
        %v1309 = vpop.f32.mrf.mxu0
        %v1310 = vadd.f32 %v1134, %v1309
        %v1311 = vpop.f32.mrf.mxu0
        %v1312 = vadd.f32 %v1138, %v1311
        %1313 = vmatprep.mubr.bf16.mxu0 0
        %1314 = vmatmul.mubr.bf16.gmra.mxu0 %v1103
        %v1315 = vpop.f32.mrf.mxu0
        %v1316 = vadd.f32 %v1134, %v1315
        %v1317 = vpop.f32.mrf.mxu0
        %v1318 = vadd.f32 %v1138, %v1317
        %v1319 = vpop.f32.mrf.mxu0
        %v1320 = vadd.f32 %v1134, %v1319
        %v1321 = vpop.f32.mrf.mxu0
        %v1322 = vadd.f32 %v1138, %v1321
        %1323 = vmatprep.mubr.bf16.mxu0 0
        %1324 = vmatmul.mubr.bf16.gmra.mxu0 %v1104
        %v1325 = vpop.f32.mrf.mxu0
        %v1326 = vadd.f32 %v1134, %v1325
        %v1327 = vpop.f32.mrf.mxu0
        %v1328 = vadd.f32 %v1138, %v1327
        %v1329 = vpop.f32.mrf.mxu0
        %v1330 = vadd.f32 %v1134, %v1329
        %v1331 = vpop.f32.mrf.mxu0
        %v1332 = vadd.f32 %v1138, %v1331
        %1333 = vmatprep.mubr.bf16.mxu0 0
        %1334 = vmatmul.mubr.bf16.gmra.mxu0 %v1105
        %v1335 = vpop.f32.mrf.mxu0
        %v1336 = vadd.f32 %v1134, %v1335
        %v1337 = vpop.f32.mrf.mxu0
        %v1338 = vadd.f32 %v1138, %v1337
        %v1339 = vpop.f32.mrf.mxu0
        %v1340 = vadd.f32 %v1134, %v1339
        %v1341 = vpop.f32.mrf.mxu0
        %v1342 = vadd.f32 %v1138, %v1341
        %1343 = vmatprep.mubr.bf16.mxu0 0
        %1344 = vmatmul.mubr.bf16.gmra.mxu0 %v1106
        %v1345 = vpop.f32.mrf.mxu0
        %v1346 = vadd.f32 %v1134, %v1345
        %v1347 = vpop.f32.mrf.mxu0
        %v1348 = vadd.f32 %v1138, %v1347
        %v1349 = vpop.f32.mrf.mxu0
        %v1350 = vadd.f32 %v1134, %v1349
        %v1351 = vpop.f32.mrf.mxu0
        %v1352 = vadd.f32 %v1138, %v1351
        %1353 = vmatprep.mubr.bf16.mxu0 0
        %1354 = vmatmul.mubr.bf16.gmra.mxu0 %v1107
        %v1355 = vpop.f32.mrf.mxu0
        %v1356 = vadd.f32 %v1134, %v1355
        %v1357 = vpop.f32.mrf.mxu0
        %v1358 = vadd.f32 %v1138, %v1357
        %v1359 = vpop.f32.mrf.mxu0
        %v1360 = vadd.f32 %v1134, %v1359
        %v1361 = vpop.f32.mrf.mxu0
        %v1362 = vadd.f32 %v1138, %v1361
        %1363 = vmatprep.mubr.bf16.mxu0 0
        %1364 = vmatmul.mubr.bf16.gmra.mxu0 %v1108
        %v1365 = vpop.f32.mrf.mxu0
        %v1366 = vadd.f32 %v1134, %v1365
        %v1367 = vpop.f32.mrf.mxu0
        %v1368 = vadd.f32 %v1138, %v1367
        %v1369 = vpop.f32.mrf.mxu0
        %v1370 = vadd.f32 %v1134, %v1369
        %v1371 = vpop.f32.mrf.mxu0
        %v1372 = vadd.f32 %v1138, %v1371
        %1373 = vmatprep.mubr.bf16.mxu0 0
        %1374 = vmatmul.mubr.bf16.gmra.mxu0 %v1109
        %v1375 = vpop.f32.mrf.mxu0
        %v1376 = vadd.f32 %v1134, %v1375
        %v1377 = vpop.f32.mrf.mxu0
        %v1378 = vadd.f32 %v1138, %v1377
        %v1379 = vpop.f32.mrf.mxu0
        %v1380 = vadd.f32 %v1134, %v1379
        %v1381 = vpop.f32.mrf.mxu0
        %v1382 = vadd.f32 %v1138, %v1381
        %1383 = vmatprep.mubr.bf16.mxu0 0
        %1384 = vmatmul.mubr.bf16.gmra.mxu0 %v1110
        %v1385 = vpop.f32.mrf.mxu0
        %v1386 = vadd.f32 %v1134, %v1385
        %v1387 = vpop.f32.mrf.mxu0
        %v1388 = vadd.f32 %v1138, %v1387
        %v1389 = vpop.f32.mrf.mxu0
        %v1390 = vadd.f32 %v1134, %v1389
        %v1391 = vpop.f32.mrf.mxu0
        %v1392 = vadd.f32 %v1138, %v1391
        %1393 = vmatprep.mubr.bf16.mxu0 0
        %1394 = vmatmul.mubr.bf16.gmra.mxu0 %v1111
        %v1395 = vpop.f32.mrf.mxu0
        %v1396 = vadd.f32 %v1134, %v1395
        %v1397 = vpop.f32.mrf.mxu0
        %v1398 = vadd.f32 %v1138, %v1397
        %v1399 = vpop.f32.mrf.mxu0
        %v1400 = vadd.f32 %v1134, %v1399
        %v1401 = vpop.f32.mrf.mxu0
        %v1402 = vadd.f32 %v1138, %v1401
        %1403 = vmatprep.mubr.bf16.mxu0 0
        %1404 = vmatmul.mubr.bf16.gmra.mxu0 %v1112
        %v1405 = vpop.f32.mrf.mxu0
        %v1406 = vadd.f32 %v1134, %v1405
        %v1407 = vpop.f32.mrf.mxu0
        %v1408 = vadd.f32 %v1138, %v1407
        %v1409 = vpop.f32.mrf.mxu0
        %v1410 = vadd.f32 %v1134, %v1409
        %v1411 = vpop.f32.mrf.mxu0
        %v1412 = vadd.f32 %v1138, %v1411
        %1413 = vdwg.mxu0
        %v1414 = vmax.f32 %v1256, %v1260
        %v1415 = vmax.f32 %v1414, %v1266
        %v1416 = vmax.f32 %v1415, %v1270
        %v1417 = vrot.slane %v1416, 4
        %v1418 = vmax.f32 %v1416, %v1417
        %v1419 = vrot.slane %v1418, 2
        %v1420 = vmax.f32 %v1418, %v1419
        %v1421 = vrot.slane %v1420, 1
        %v1422 = vmax.f32 %v1420, %v1421
        %v1423 = vmax.f32 %v1258, %v1262
        %v1424 = vmax.f32 %v1423, %v1268
        %v1425 = vmax.f32 %v1424, %v1272
        %v1426 = vrot.slane %v1425, 4
        %v1427 = vmax.f32 %v1425, %v1426
        %v1428 = vrot.slane %v1427, 2
        %v1429 = vmax.f32 %v1427, %v1428
        %v1430 = vrot.slane %v1429, 1
        %v1431 = vmax.f32 %v1429, %v1430
        %v1432 = vmax.f32 %v1276, %v1280
        %v1433 = vmax.f32 %v1432, %v1286
        %v1434 = vmax.f32 %v1433, %v1290
        %v1435 = vrot.slane %v1434, 4
        %v1436 = vmax.f32 %v1434, %v1435
        %v1437 = vrot.slane %v1436, 2
        %v1438 = vmax.f32 %v1436, %v1437
        %v1439 = vrot.slane %v1438, 1
        %v1440 = vmax.f32 %v1438, %v1439
        %v1441 = vmax.f32 %v1278, %v1282
        %v1442 = vmax.f32 %v1441, %v1288
        %v1443 = vmax.f32 %v1442, %v1292
        %v1444 = vrot.slane %v1443, 4
        %v1445 = vmax.f32 %v1443, %v1444
        %v1446 = vrot.slane %v1445, 2
        %v1447 = vmax.f32 %v1445, %v1446
        %v1448 = vrot.slane %v1447, 1
        %v1449 = vmax.f32 %v1447, %v1448
        %v1450 = vmax.f32 %v1296, %v1300
        %v1451 = vmax.f32 %v1450, %v1306
        %v1452 = vmax.f32 %v1451, %v1310
        %v1453 = vrot.slane %v1452, 4
        %v1454 = vmax.f32 %v1452, %v1453
        %v1455 = vrot.slane %v1454, 2
        %v1456 = vmax.f32 %v1454, %v1455
        %v1457 = vrot.slane %v1456, 1
        %v1458 = vmax.f32 %v1456, %v1457
        %v1459 = vmax.f32 %v1298, %v1302
        %v1460 = vmax.f32 %v1459, %v1308
        %v1461 = vmax.f32 %v1460, %v1312
        %v1462 = vrot.slane %v1461, 4
        %v1463 = vmax.f32 %v1461, %v1462
        %v1464 = vrot.slane %v1463, 2
        %v1465 = vmax.f32 %v1463, %v1464
        %v1466 = vrot.slane %v1465, 1
        %v1467 = vmax.f32 %v1465, %v1466
        %v1468 = vmax.f32 %v1316, %v1320
        %v1469 = vmax.f32 %v1468, %v1326
        %v1470 = vmax.f32 %v1469, %v1330
        %v1471 = vrot.slane %v1470, 4
        %v1472 = vmax.f32 %v1470, %v1471
        %v1473 = vrot.slane %v1472, 2
        %v1474 = vmax.f32 %v1472, %v1473
        %v1475 = vrot.slane %v1474, 1
        %v1476 = vmax.f32 %v1474, %v1475
        %v1477 = vmax.f32 %v1318, %v1322
        %v1478 = vmax.f32 %v1477, %v1328
        %v1479 = vmax.f32 %v1478, %v1332
        %v1480 = vrot.slane %v1479, 4
        %v1481 = vmax.f32 %v1479, %v1480
        %v1482 = vrot.slane %v1481, 2
        %v1483 = vmax.f32 %v1481, %v1482
        %v1484 = vrot.slane %v1483, 1
        %v1485 = vmax.f32 %v1483, %v1484
        %v1486 = vmax.f32 %v1336, %v1340
        %v1487 = vmax.f32 %v1486, %v1346
        %v1488 = vmax.f32 %v1487, %v1350
        %v1489 = vrot.slane %v1488, 4
        %v1490 = vmax.f32 %v1488, %v1489
        %v1491 = vrot.slane %v1490, 2
        %v1492 = vmax.f32 %v1490, %v1491
        %v1493 = vrot.slane %v1492, 1
        %v1494 = vmax.f32 %v1492, %v1493
        %v1495 = vmax.f32 %v1338, %v1342
        %v1496 = vmax.f32 %v1495, %v1348
        %v1497 = vmax.f32 %v1496, %v1352
        %v1498 = vrot.slane %v1497, 4
        %v1499 = vmax.f32 %v1497, %v1498
        %v1500 = vrot.slane %v1499, 2
        %v1501 = vmax.f32 %v1499, %v1500
        %v1502 = vrot.slane %v1501, 1
        %v1503 = vmax.f32 %v1501, %v1502
        %v1504 = vmax.f32 %v1356, %v1360
        %v1505 = vmax.f32 %v1504, %v1366
        %v1506 = vmax.f32 %v1505, %v1370
        %v1507 = vrot.slane %v1506, 4
        %v1508 = vmax.f32 %v1506, %v1507
        %v1509 = vrot.slane %v1508, 2
        %v1510 = vmax.f32 %v1508, %v1509
        %v1511 = vrot.slane %v1510, 1
        %v1512 = vmax.f32 %v1510, %v1511
        %v1513 = vmax.f32 %v1358, %v1362
        %v1514 = vmax.f32 %v1513, %v1368
        %v1515 = vmax.f32 %v1514, %v1372
        %v1516 = vrot.slane %v1515, 4
        %v1517 = vmax.f32 %v1515, %v1516
        %v1518 = vrot.slane %v1517, 2
        %v1519 = vmax.f32 %v1517, %v1518
        %v1520 = vrot.slane %v1519, 1
        %v1521 = vmax.f32 %v1519, %v1520
        %v1522 = vmax.f32 %v1376, %v1380
        %v1523 = vmax.f32 %v1522, %v1386
        %v1524 = vmax.f32 %v1523, %v1390
        %v1525 = vrot.slane %v1524, 4
        %v1526 = vmax.f32 %v1524, %v1525
        %v1527 = vrot.slane %v1526, 2
        %v1528 = vmax.f32 %v1526, %v1527
        %v1529 = vrot.slane %v1528, 1
        %v1530 = vmax.f32 %v1528, %v1529
        %v1531 = vmax.f32 %v1378, %v1382
        %v1532 = vmax.f32 %v1531, %v1388
        %v1533 = vmax.f32 %v1532, %v1392
        %v1534 = vrot.slane %v1533, 4
        %v1535 = vmax.f32 %v1533, %v1534
        %v1536 = vrot.slane %v1535, 2
        %v1537 = vmax.f32 %v1535, %v1536
        %v1538 = vrot.slane %v1537, 1
        %v1539 = vmax.f32 %v1537, %v1538
        %v1540 = vmax.f32 %v1396, %v1400
        %v1541 = vmax.f32 %v1540, %v1406
        %v1542 = vmax.f32 %v1541, %v1410
        %v1543 = vrot.slane %v1542, 4
        %v1544 = vmax.f32 %v1542, %v1543
        %v1545 = vrot.slane %v1544, 2
        %v1546 = vmax.f32 %v1544, %v1545
        %v1547 = vrot.slane %v1546, 1
        %v1548 = vmax.f32 %v1546, %v1547
        %v1549 = vmax.f32 %v1398, %v1402
        %v1550 = vmax.f32 %v1549, %v1408
        %v1551 = vmax.f32 %v1550, %v1412
        %v1552 = vrot.slane %v1551, 4
        %v1553 = vmax.f32 %v1551, %v1552
        %v1554 = vrot.slane %v1553, 2
        %v1555 = vmax.f32 %v1553, %v1554
        %v1556 = vrot.slane %v1555, 1
        %v1557 = vmax.f32 %v1555, %v1556
        %v1558 = vpack.c.bf16 %v1422, %v1422
        %v1559 = vpack.c.bf16 %v1431, %v1431
        %v1560 = vpack.c.bf16 %v1440, %v1440
        %v1561 = vpack.c.bf16 %v1449, %v1449
        %v1562 = vpack.c.bf16 %v1458, %v1458
        %v1563 = vpack.c.bf16 %v1467, %v1467
        %v1564 = vpack.c.bf16 %v1476, %v1476
        %v1565 = vpack.c.bf16 %v1485, %v1485
        %v1566 = vpack.c.bf16 %v1494, %v1494
        %v1567 = vpack.c.bf16 %v1503, %v1503
        %v1568 = vpack.c.bf16 %v1512, %v1512
        %v1569 = vpack.c.bf16 %v1521, %v1521
        %v1570 = vpack.c.bf16 %v1530, %v1530
        %v1571 = vpack.c.bf16 %v1539, %v1539
        %v1572 = vpack.c.bf16 %v1548, %v1548
        %v1573 = vpack.c.bf16 %v1557, %v1557
        %v1574 = vld [vmem:[#allocation5] sm:$0xff]
        %v1575 = vld [vmem:[#allocation5 + $0x8] sm:$0xff]
        %v1576 = vld [vmem:[#allocation5 + $0x10] sm:$0xff]
        %v1577 = vld [vmem:[#allocation5 + $0x18] sm:$0xff]
        %v1578 = vld [vmem:[#allocation5 + $0x20] sm:$0xff]
        %v1579 = vld [vmem:[#allocation5 + $0x28] sm:$0xff]
        %v1580 = vld [vmem:[#allocation5 + $0x30] sm:$0xff]
        %v1581 = vld [vmem:[#allocation5 + $0x38] sm:$0xff]
        %v1582 = vld [vmem:[#allocation5 + $0x40] sm:$0xff]
        %v1583 = vld [vmem:[#allocation5 + $0x48] sm:$0xff]
        %v1584 = vld [vmem:[#allocation5 + $0x50] sm:$0xff]
        %v1585 = vld [vmem:[#allocation5 + $0x58] sm:$0xff]
        %v1586 = vld [vmem:[#allocation5 + $0x60] sm:$0xff]
        %v1587 = vld [vmem:[#allocation5 + $0x68] sm:$0xff]
        %v1588 = vld [vmem:[#allocation5 + $0x70] sm:$0xff]
        %v1589 = vld [vmem:[#allocation5 + $0x78] sm:$0xff]
        %v1590 = vld [vmem:[#allocation5 + $0x80] sm:$0xff]
        %v1591 = vld [vmem:[#allocation5 + $0x88] sm:$0xff]
        %v1592 = vld [vmem:[#allocation5 + $0x90] sm:$0xff]
        %v1593 = vld [vmem:[#allocation5 + $0x98] sm:$0xff]
        %v1594 = vld [vmem:[#allocation5 + $0xa0] sm:$0xff]
        %v1595 = vld [vmem:[#allocation5 + $0xa8] sm:$0xff]
        %v1596 = vld [vmem:[#allocation5 + $0xb0] sm:$0xff]
        %v1597 = vld [vmem:[#allocation5 + $0xb8] sm:$0xff]
        %v1598 = vld [vmem:[#allocation5 + $0xc0] sm:$0xff]
        %v1599 = vld [vmem:[#allocation5 + $0xc8] sm:$0xff]
        %v1600 = vld [vmem:[#allocation5 + $0xd0] sm:$0xff]
        %v1601 = vld [vmem:[#allocation5 + $0xd8] sm:$0xff]
        %v1602 = vld [vmem:[#allocation5 + $0xe0] sm:$0xff]
        %v1603 = vld [vmem:[#allocation5 + $0xe8] sm:$0xff]
        %v1604 = vld [vmem:[#allocation5 + $0xf0] sm:$0xff]
        %v1605 = vld [vmem:[#allocation5 + $0xf8] sm:$0xff]
        %v1606 = vld [vmem:[#allocation5 + $0x100] sm:$0xff]
        %v1607 = vld [vmem:[#allocation5 + $0x108] sm:$0xff]
        %v1608 = vld [vmem:[#allocation5 + $0x110] sm:$0xff]
        %v1609 = vld [vmem:[#allocation5 + $0x118] sm:$0xff]
        %v1610 = vld [vmem:[#allocation5 + $0x120] sm:$0xff]
        %v1611 = vld [vmem:[#allocation5 + $0x128] sm:$0xff]
        %v1612 = vld [vmem:[#allocation5 + $0x130] sm:$0xff]
        %v1613 = vld [vmem:[#allocation5 + $0x138] sm:$0xff]
        %v1614 = vld [vmem:[#allocation5 + $0x140] sm:$0xff]
        %v1615 = vld [vmem:[#allocation5 + $0x148] sm:$0xff]
        %v1616 = vld [vmem:[#allocation5 + $0x150] sm:$0xff]
        %v1617 = vld [vmem:[#allocation5 + $0x158] sm:$0xff]
        %v1618 = vld [vmem:[#allocation5 + $0x160] sm:$0xff]
        %v1619 = vld [vmem:[#allocation5 + $0x168] sm:$0xff]
        %v1620 = vld [vmem:[#allocation5 + $0x170] sm:$0xff]
        %v1621 = vld [vmem:[#allocation5 + $0x178] sm:$0xff]
        %v1622 = vld [vmem:[#allocation5 + $0x180] sm:$0xff]
        %v1623 = vld [vmem:[#allocation5 + $0x188] sm:$0xff]
        %v1624 = vld [vmem:[#allocation5 + $0x190] sm:$0xff]
        %v1625 = vld [vmem:[#allocation5 + $0x198] sm:$0xff]
        %v1626 = vld [vmem:[#allocation5 + $0x1a0] sm:$0xff]
        %v1627 = vld [vmem:[#allocation5 + $0x1a8] sm:$0xff]
        %v1628 = vld [vmem:[#allocation5 + $0x1b0] sm:$0xff]
        %v1629 = vld [vmem:[#allocation5 + $0x1b8] sm:$0xff]
        %v1630 = vld [vmem:[#allocation5 + $0x1c0] sm:$0xff]
        %v1631 = vld [vmem:[#allocation5 + $0x1c8] sm:$0xff]
        %v1632 = vld [vmem:[#allocation5 + $0x1d0] sm:$0xff]
        %v1633 = vld [vmem:[#allocation5 + $0x1d8] sm:$0xff]
        %v1634 = vld [vmem:[#allocation5 + $0x1e0] sm:$0xff]
        %v1635 = vld [vmem:[#allocation5 + $0x1e8] sm:$0xff]
        %v1636 = vld [vmem:[#allocation5 + $0x1f0] sm:$0xff]
        %v1637 = vld [vmem:[#allocation5 + $0x1f8] sm:$0xff]
        %v1654 = vunpack.c.l.b16 %v1558
        %v1655 = vunpack.c.l.b16 %v1559
        %v1656 = vunpack.c.l.b16 %v1560
        %v1657 = vunpack.c.l.b16 %v1561
        %v1658 = vunpack.c.l.b16 %v1562
        %v1659 = vunpack.c.l.b16 %v1563
        %v1660 = vunpack.c.l.b16 %v1564
        %v1661 = vunpack.c.l.b16 %v1565
        %v1662 = vunpack.c.l.b16 %v1566
        %v1663 = vunpack.c.l.b16 %v1567
        %v1664 = vunpack.c.l.b16 %v1568
        %v1665 = vunpack.c.l.b16 %v1569
        %v1666 = vunpack.c.l.b16 %v1570
        %v1667 = vunpack.c.l.b16 %v1571
        %v1668 = vunpack.c.l.b16 %v1572
        %v1669 = vunpack.c.l.b16 %v1573
        %vm1670 = vcmask 1041409
        %v1671 = vsel %vm1670, %v1656, %v1654
        %vm1672 = vcmask 1042434
        %v1673 = vsel %vm1672, %v1658, %v1671
        %vm1674 = vcmask 1043459
        %v1675 = vsel %vm1674, %v1660, %v1673
        %vm1676 = vcmask 1044484
        %v1677 = vsel %vm1676, %v1662, %v1675
        %vm1678 = vcmask 1045509
        %v1679 = vsel %vm1678, %v1664, %v1677
        %vm1680 = vcmask 1046534
        %v1681 = vsel %vm1680, %v1666, %v1679
        %vm1682 = vcmask 1047559
        %v1683 = vsel %vm1682, %v1668, %v1681
        %v1684 = vsel %vm1670, %v1657, %v1655
        %v1685 = vsel %vm1672, %v1659, %v1684
        %v1686 = vsel %vm1674, %v1661, %v1685
        %v1687 = vsel %vm1676, %v1663, %v1686
        %v1688 = vsel %vm1678, %v1665, %v1687
        %v1689 = vsel %vm1680, %v1667, %v1688
        %v1690 = vsel %vm1682, %v1669, %v1689
        %v1691 = vpack.c.b16 %v1683, %v1683
        %v1692 = vpack.c.b16 %v1690, %v1690
        %v1759 = vunpack.c.l.b16 %v1574
        %v1760 = vunpack.c.h.b16 %v1574
        %v1761 = vunpack.c.l.b16 %v1575
        %v1762 = vunpack.c.h.b16 %v1575
        %v1763 = vunpack.c.l.b16 %v1576
        %v1764 = vunpack.c.h.b16 %v1576
        %v1765 = vunpack.c.l.b16 %v1577
        %v1766 = vunpack.c.h.b16 %v1577
        %v1767 = vunpack.c.l.b16 %v1578
        %v1768 = vunpack.c.h.b16 %v1578
        %v1769 = vunpack.c.l.b16 %v1579
        %v1770 = vunpack.c.h.b16 %v1579
        %v1771 = vunpack.c.l.b16 %v1580
        %v1772 = vunpack.c.h.b16 %v1580
        %v1773 = vunpack.c.l.b16 %v1581
        %v1774 = vunpack.c.h.b16 %v1581
        %v1775 = vunpack.c.l.b16 %v1582
        %v1776 = vunpack.c.h.b16 %v1582
        %v1777 = vunpack.c.l.b16 %v1583
        %v1778 = vunpack.c.h.b16 %v1583
        %v1779 = vunpack.c.l.b16 %v1584
        %v1780 = vunpack.c.h.b16 %v1584
        %v1781 = vunpack.c.l.b16 %v1585
        %v1782 = vunpack.c.h.b16 %v1585
        %v1783 = vunpack.c.l.b16 %v1586
        %v1784 = vunpack.c.h.b16 %v1586
        %v1785 = vunpack.c.l.b16 %v1587
        %v1786 = vunpack.c.h.b16 %v1587
        %v1787 = vunpack.c.l.b16 %v1588
        %v1788 = vunpack.c.h.b16 %v1588
        %v1789 = vunpack.c.l.b16 %v1589
        %v1790 = vunpack.c.h.b16 %v1589
        %v1791 = vunpack.c.l.b16 %v1590
        %v1792 = vunpack.c.h.b16 %v1590
        %v1793 = vunpack.c.l.b16 %v1591
        %v1794 = vunpack.c.h.b16 %v1591
        %v1795 = vunpack.c.l.b16 %v1592
        %v1796 = vunpack.c.h.b16 %v1592
        %v1797 = vunpack.c.l.b16 %v1593
        %v1798 = vunpack.c.h.b16 %v1593
        %v1799 = vunpack.c.l.b16 %v1594
        %v1800 = vunpack.c.h.b16 %v1594
        %v1801 = vunpack.c.l.b16 %v1595
        %v1802 = vunpack.c.h.b16 %v1595
        %v1803 = vunpack.c.l.b16 %v1596
        %v1804 = vunpack.c.h.b16 %v1596
        %v1805 = vunpack.c.l.b16 %v1597
        %v1806 = vunpack.c.h.b16 %v1597
        %v1807 = vunpack.c.l.b16 %v1598
        %v1808 = vunpack.c.h.b16 %v1598
        %v1809 = vunpack.c.l.b16 %v1599
        %v1810 = vunpack.c.h.b16 %v1599
        %v1811 = vunpack.c.l.b16 %v1600
        %v1812 = vunpack.c.h.b16 %v1600
        %v1813 = vunpack.c.l.b16 %v1601
        %v1814 = vunpack.c.h.b16 %v1601
        %v1815 = vunpack.c.l.b16 %v1602
        %v1816 = vunpack.c.h.b16 %v1602
        %v1817 = vunpack.c.l.b16 %v1603
        %v1818 = vunpack.c.h.b16 %v1603
        %v1819 = vunpack.c.l.b16 %v1604
        %v1820 = vunpack.c.h.b16 %v1604
        %v1821 = vunpack.c.l.b16 %v1605
        %v1822 = vunpack.c.h.b16 %v1605
        %v1823 = vunpack.c.l.b16 %v1606
        %v1824 = vunpack.c.h.b16 %v1606
        %v1825 = vunpack.c.l.b16 %v1607
        %v1826 = vunpack.c.h.b16 %v1607
        %v1827 = vunpack.c.l.b16 %v1608
        %v1828 = vunpack.c.h.b16 %v1608
        %v1829 = vunpack.c.l.b16 %v1609
        %v1830 = vunpack.c.h.b16 %v1609
        %v1831 = vunpack.c.l.b16 %v1610
        %v1832 = vunpack.c.h.b16 %v1610
        %v1833 = vunpack.c.l.b16 %v1611
        %v1834 = vunpack.c.h.b16 %v1611
        %v1835 = vunpack.c.l.b16 %v1612
        %v1836 = vunpack.c.h.b16 %v1612
        %v1837 = vunpack.c.l.b16 %v1613
        %v1838 = vunpack.c.h.b16 %v1613
        %v1839 = vunpack.c.l.b16 %v1614
        %v1840 = vunpack.c.h.b16 %v1614
        %v1841 = vunpack.c.l.b16 %v1615
        %v1842 = vunpack.c.h.b16 %v1615
        %v1843 = vunpack.c.l.b16 %v1616
        %v1844 = vunpack.c.h.b16 %v1616
        %v1845 = vunpack.c.l.b16 %v1617
        %v1846 = vunpack.c.h.b16 %v1617
        %v1847 = vunpack.c.l.b16 %v1618
        %v1848 = vunpack.c.h.b16 %v1618
        %v1849 = vunpack.c.l.b16 %v1619
        %v1850 = vunpack.c.h.b16 %v1619
        %v1851 = vunpack.c.l.b16 %v1620
        %v1852 = vunpack.c.h.b16 %v1620
        %v1853 = vunpack.c.l.b16 %v1621
        %v1854 = vunpack.c.h.b16 %v1621
        %v1855 = vunpack.c.l.b16 %v1622
        %v1856 = vunpack.c.h.b16 %v1622
        %v1857 = vunpack.c.l.b16 %v1623
        %v1858 = vunpack.c.h.b16 %v1623
        %v1859 = vunpack.c.l.b16 %v1624
        %v1860 = vunpack.c.h.b16 %v1624
        %v1861 = vunpack.c.l.b16 %v1625
        %v1862 = vunpack.c.h.b16 %v1625
        %v1863 = vunpack.c.l.b16 %v1626
        %v1864 = vunpack.c.h.b16 %v1626
        %v1865 = vunpack.c.l.b16 %v1627
        %v1866 = vunpack.c.h.b16 %v1627
        %v1867 = vunpack.c.l.b16 %v1628
        %v1868 = vunpack.c.h.b16 %v1628
        %v1869 = vunpack.c.l.b16 %v1629
        %v1870 = vunpack.c.h.b16 %v1629
        %v1871 = vunpack.c.l.b16 %v1630
        %v1872 = vunpack.c.h.b16 %v1630
        %v1873 = vunpack.c.l.b16 %v1631
        %v1874 = vunpack.c.h.b16 %v1631
        %v1875 = vunpack.c.l.b16 %v1632
        %v1876 = vunpack.c.h.b16 %v1632
        %v1877 = vunpack.c.l.b16 %v1633
        %v1878 = vunpack.c.h.b16 %v1633
        %v1879 = vunpack.c.l.b16 %v1634
        %v1880 = vunpack.c.h.b16 %v1634
        %v1881 = vunpack.c.l.b16 %v1635
        %v1882 = vunpack.c.h.b16 %v1635
        %v1883 = vunpack.c.l.b16 %v1636
        %v1884 = vunpack.c.h.b16 %v1636
        %v1885 = vunpack.c.l.b16 %v1637
        %v1886 = vunpack.c.h.b16 %v1637
        %v1887 = vpack.c.b16 %v1763, %v1759
        %v1888 = vpack.c.b16 %v1764, %v1760
        %v1889 = vpack.c.b16 %v1765, %v1761
        %v1890 = vpack.c.b16 %v1766, %v1762
        %v1891 = vpack.c.b16 %v1771, %v1767
        %v1892 = vpack.c.b16 %v1772, %v1768
        %v1893 = vpack.c.b16 %v1773, %v1769
        %v1894 = vpack.c.b16 %v1774, %v1770
        %v1895 = vpack.c.b16 %v1779, %v1775
        %v1896 = vpack.c.b16 %v1780, %v1776
        %v1897 = vpack.c.b16 %v1781, %v1777
        %v1898 = vpack.c.b16 %v1782, %v1778
        %v1899 = vpack.c.b16 %v1787, %v1783
        %v1900 = vpack.c.b16 %v1788, %v1784
        %v1901 = vpack.c.b16 %v1789, %v1785
        %v1902 = vpack.c.b16 %v1790, %v1786
        %v1903 = vpack.c.b16 %v1795, %v1791
        %v1904 = vpack.c.b16 %v1796, %v1792
        %v1905 = vpack.c.b16 %v1797, %v1793
        %v1906 = vpack.c.b16 %v1798, %v1794
        %v1907 = vpack.c.b16 %v1803, %v1799
        %v1908 = vpack.c.b16 %v1804, %v1800
        %v1909 = vpack.c.b16 %v1805, %v1801
        %v1910 = vpack.c.b16 %v1806, %v1802
        %v1911 = vpack.c.b16 %v1811, %v1807
        %v1912 = vpack.c.b16 %v1812, %v1808
        %v1913 = vpack.c.b16 %v1813, %v1809
        %v1914 = vpack.c.b16 %v1814, %v1810
        %v1915 = vpack.c.b16 %v1819, %v1815
        %v1916 = vpack.c.b16 %v1820, %v1816
        %v1917 = vpack.c.b16 %v1821, %v1817
        %v1918 = vpack.c.b16 %v1822, %v1818
        %v1919 = vpack.c.b16 %v1827, %v1823
        %v1920 = vpack.c.b16 %v1828, %v1824
        %v1921 = vpack.c.b16 %v1829, %v1825
        %v1922 = vpack.c.b16 %v1830, %v1826
        %v1923 = vpack.c.b16 %v1835, %v1831
        %v1924 = vpack.c.b16 %v1836, %v1832
        %v1925 = vpack.c.b16 %v1837, %v1833
        %v1926 = vpack.c.b16 %v1838, %v1834
        %v1927 = vpack.c.b16 %v1843, %v1839
        %v1928 = vpack.c.b16 %v1844, %v1840
        %v1929 = vpack.c.b16 %v1845, %v1841
        %v1930 = vpack.c.b16 %v1846, %v1842
        %v1931 = vpack.c.b16 %v1851, %v1847
        %v1932 = vpack.c.b16 %v1852, %v1848
        %v1933 = vpack.c.b16 %v1853, %v1849
        %v1934 = vpack.c.b16 %v1854, %v1850
        %v1935 = vpack.c.b16 %v1859, %v1855
        %v1936 = vpack.c.b16 %v1860, %v1856
        %v1937 = vpack.c.b16 %v1861, %v1857
        %v1938 = vpack.c.b16 %v1862, %v1858
        %v1939 = vpack.c.b16 %v1867, %v1863
        %v1940 = vpack.c.b16 %v1868, %v1864
        %v1941 = vpack.c.b16 %v1869, %v1865
        %v1942 = vpack.c.b16 %v1870, %v1866
        %v1943 = vpack.c.b16 %v1875, %v1871
        %v1944 = vpack.c.b16 %v1876, %v1872
        %v1945 = vpack.c.b16 %v1877, %v1873
        %v1946 = vpack.c.b16 %v1878, %v1874
        %v1947 = vpack.c.b16 %v1883, %v1879
        %v1948 = vpack.c.b16 %v1884, %v1880
        %v1949 = vpack.c.b16 %v1885, %v1881
        %v1950 = vpack.c.b16 %v1886, %v1882
        %2015 = vmatprep.subr.bf16.mxu0 %v1916
        %2016 = vmatpush1.bf16.msra.mxu0 %v1915
        %2017 = vmatprep.subr.bf16.mxu0 %v1912
        %2018 = vmatpush1.bf16.msra.mxu0 %v1911
        %2019 = vmatprep.subr.bf16.mxu0 %v1908
        %2020 = vmatpush1.bf16.msra.mxu0 %v1907
        %2021 = vmatprep.subr.bf16.mxu0 %v1904
        %2022 = vmatpush1.bf16.msra.mxu0 %v1903
        %2023 = vmatprep.subr.bf16.mxu0 %v1900
        %2024 = vmatpush1.bf16.msra.mxu0 %v1899
        %2025 = vmatprep.subr.bf16.mxu0 %v1896
        %2026 = vmatpush1.bf16.msra.mxu0 %v1895
        %2027 = vmatprep.subr.bf16.mxu0 %v1892
        %2028 = vmatpush1.bf16.msra.mxu0 %v1891
        %2029 = vmatprep.subr.bf16.mxu0 %v1888
        %2030 = vmatpush1.bf16.msra.mxu0 %v1887
        %2031 = vmatprep.subr.bf16.mxu0 %v1948
        %2032 = vmatpush2.bf16.msra.mxu0 %v1947
        %2033 = vmatprep.subr.bf16.mxu0 %v1944
        %2034 = vmatpush2.bf16.msra.mxu0 %v1943
        %2035 = vmatprep.subr.bf16.mxu0 %v1940
        %2036 = vmatpush2.bf16.msra.mxu0 %v1939
        %2037 = vmatprep.subr.bf16.mxu0 %v1936
        %2038 = vmatpush2.bf16.msra.mxu0 %v1935
        %2039 = vmatprep.subr.bf16.mxu0 %v1932
        %2040 = vmatpush2.bf16.msra.mxu0 %v1931
        %2041 = vmatprep.subr.bf16.mxu0 %v1928
        %2042 = vmatpush2.bf16.msra.mxu0 %v1927
        %2043 = vmatprep.subr.bf16.mxu0 %v1924
        %2044 = vmatpush2.bf16.msra.mxu0 %v1923
        %2045 = vmatprep.subr.bf16.mxu0 %v1920
        %2046 = vmatpush2.bf16.msra.mxu0 %v1919
        %2047 = vmatprep.mubr.bf16.mxu0 %v1692
        %2048 = vmatmul.mubr.bf16.gmra.mxu0 %v1691
        %v2049 = vpop.f32.mrf.mxu0
        %v2050 = vadd.f32 0.0, %v2049
        %v2051 = vpop.f32.mrf.mxu0
        %v2052 = vadd.f32 0.0, %v2051
        %v2053 = vpop.f32.mrf.mxu0
        %v2054 = vpop.f32.mrf.mxu0
        %2055 = vdwg.mxu0
        %2056 = vmatprep.subr.bf16.mxu0 %v1918
        %2057 = vmatpush1.bf16.msra.mxu0 %v1917
        %2058 = vmatprep.subr.bf16.mxu0 %v1914
        %2059 = vmatpush1.bf16.msra.mxu0 %v1913
        %2060 = vmatprep.subr.bf16.mxu0 %v1910
        %2061 = vmatpush1.bf16.msra.mxu0 %v1909
        %2062 = vmatprep.subr.bf16.mxu0 %v1906
        %2063 = vmatpush1.bf16.msra.mxu0 %v1905
        %2064 = vmatprep.subr.bf16.mxu0 %v1902
        %2065 = vmatpush1.bf16.msra.mxu0 %v1901
        %2066 = vmatprep.subr.bf16.mxu0 %v1898
        %2067 = vmatpush1.bf16.msra.mxu0 %v1897
        %2068 = vmatprep.subr.bf16.mxu0 %v1894
        %2069 = vmatpush1.bf16.msra.mxu0 %v1893
        %2070 = vmatprep.subr.bf16.mxu0 %v1890
        %2071 = vmatpush1.bf16.msra.mxu0 %v1889
        %2072 = vmatprep.subr.bf16.mxu0 %v1950
        %2073 = vmatpush2.bf16.msra.mxu0 %v1949
        %2074 = vmatprep.subr.bf16.mxu0 %v1946
        %2075 = vmatpush2.bf16.msra.mxu0 %v1945
        %2076 = vmatprep.subr.bf16.mxu0 %v1942
        %2077 = vmatpush2.bf16.msra.mxu0 %v1941
        %2078 = vmatprep.subr.bf16.mxu0 %v1938
        %2079 = vmatpush2.bf16.msra.mxu0 %v1937
        %2080 = vmatprep.subr.bf16.mxu0 %v1934
        %2081 = vmatpush2.bf16.msra.mxu0 %v1933
        %2082 = vmatprep.subr.bf16.mxu0 %v1930
        %2083 = vmatpush2.bf16.msra.mxu0 %v1929
        %2084 = vmatprep.subr.bf16.mxu0 %v1926
        %2085 = vmatpush2.bf16.msra.mxu0 %v1925
        %2086 = vmatprep.subr.bf16.mxu0 %v1922
        %2087 = vmatpush2.bf16.msra.mxu0 %v1921
        %2088 = vmatprep.mubr.bf16.mxu0 %v1692
        %2089 = vmatmul.mubr.bf16.gmra.mxu0 %v1691
        %v2090 = vpop.f32.mrf.mxu0
        %v2091 = vadd.f32 0.0, %v2090
        %v2092 = vpop.f32.mrf.mxu0
        %v2093 = vadd.f32 0.0, %v2092
        %v2094 = vpop.f32.mrf.mxu0
        %v2095 = vpop.f32.mrf.mxu0
        %2096 = vdwg.mxu0
        %v2097 = vpack.c.bf16 %v1260, %v1256
        %v2098 = vpack.c.bf16 %v1262, %v1258
        %v2099 = vpack.c.bf16 %v1270, %v1266
        %v2100 = vpack.c.bf16 %v1272, %v1268
        %v2101 = vpack.c.bf16 %v1280, %v1276
        %v2102 = vpack.c.bf16 %v1282, %v1278
        %v2103 = vpack.c.bf16 %v1290, %v1286
        %v2104 = vpack.c.bf16 %v1292, %v1288
        %v2105 = vpack.c.bf16 %v1300, %v1296
        %v2106 = vpack.c.bf16 %v1302, %v1298
        %v2107 = vpack.c.bf16 %v1310, %v1306
        %v2108 = vpack.c.bf16 %v1312, %v1308
        %v2109 = vpack.c.bf16 %v1320, %v1316
        %v2110 = vpack.c.bf16 %v1322, %v1318
        %v2111 = vpack.c.bf16 %v1330, %v1326
        %v2112 = vpack.c.bf16 %v1332, %v1328
        %v2113 = vpack.c.bf16 %v1340, %v1336
        %v2114 = vpack.c.bf16 %v1342, %v1338
        %v2115 = vpack.c.bf16 %v1350, %v1346
        %v2116 = vpack.c.bf16 %v1352, %v1348
        %v2117 = vpack.c.bf16 %v1360, %v1356
        %v2118 = vpack.c.bf16 %v1362, %v1358
        %v2119 = vpack.c.bf16 %v1370, %v1366
        %v2120 = vpack.c.bf16 %v1372, %v1368
        %v2121 = vpack.c.bf16 %v1380, %v1376
        %v2122 = vpack.c.bf16 %v1382, %v1378
        %v2123 = vpack.c.bf16 %v1390, %v1386
        %v2124 = vpack.c.bf16 %v1392, %v1388
        %v2125 = vpack.c.bf16 %v1400, %v1396
        %v2126 = vpack.c.bf16 %v1402, %v1398
        %v2127 = vpack.c.bf16 %v1410, %v1406
        %v2128 = vpack.c.bf16 %v1412, %v1408
        %v2129 = vld [vmem:[%s5] sm:$0xff]
        %v2130 = vld [vmem:[%s5 + $0x8] sm:$0xff]
        %v2131 = vld [vmem:[%s5 + $0x10] sm:$0xff]
        %v2132 = vld [vmem:[%s5 + $0x18] sm:$0xff]
        %v2133 = vld [vmem:[%s5 + $0x20] sm:$0xff]
        %v2134 = vld [vmem:[%s5 + $0x28] sm:$0xff]
        %v2135 = vld [vmem:[%s5 + $0x30] sm:$0xff]
        %v2136 = vld [vmem:[%s5 + $0x38] sm:$0xff]
        %v2137 = vld [vmem:[%s5 + $0x40] sm:$0xff]
        %v2138 = vld [vmem:[%s5 + $0x48] sm:$0xff]
        %v2139 = vld [vmem:[%s5 + $0x50] sm:$0xff]
        %v2140 = vld [vmem:[%s5 + $0x58] sm:$0xff]
        %v2141 = vld [vmem:[%s5 + $0x60] sm:$0xff]
        %v2142 = vld [vmem:[%s5 + $0x68] sm:$0xff]
        %v2143 = vld [vmem:[%s5 + $0x70] sm:$0xff]
        %v2144 = vld [vmem:[%s5 + $0x78] sm:$0xff]
        %v2145 = vld [vmem:[%s5 + $0x80] sm:$0xff]
        %v2146 = vld [vmem:[%s5 + $0x88] sm:$0xff]
        %v2147 = vld [vmem:[%s5 + $0x90] sm:$0xff]
        %v2148 = vld [vmem:[%s5 + $0x98] sm:$0xff]
        %v2149 = vld [vmem:[%s5 + $0xa0] sm:$0xff]
        %v2150 = vld [vmem:[%s5 + $0xa8] sm:$0xff]
        %v2151 = vld [vmem:[%s5 + $0xb0] sm:$0xff]
        %v2152 = vld [vmem:[%s5 + $0xb8] sm:$0xff]
        %v2153 = vld [vmem:[%s5 + $0xc0] sm:$0xff]
        %v2154 = vld [vmem:[%s5 + $0xc8] sm:$0xff]
        %v2155 = vld [vmem:[%s5 + $0xd0] sm:$0xff]
        %v2156 = vld [vmem:[%s5 + $0xd8] sm:$0xff]
        %v2157 = vld [vmem:[%s5 + $0xe0] sm:$0xff]
        %v2158 = vld [vmem:[%s5 + $0xe8] sm:$0xff]
        %v2159 = vld [vmem:[%s5 + $0xf0] sm:$0xff]
        %v2160 = vld [vmem:[%s5 + $0xf8] sm:$0xff]
        %v2161 = vld [vmem:[%s5 + $0x100] sm:$0xff]
        %v2162 = vld [vmem:[%s5 + $0x108] sm:$0xff]
        %v2163 = vld [vmem:[%s5 + $0x110] sm:$0xff]
        %v2164 = vld [vmem:[%s5 + $0x118] sm:$0xff]
        %v2165 = vld [vmem:[%s5 + $0x120] sm:$0xff]
        %v2166 = vld [vmem:[%s5 + $0x128] sm:$0xff]
        %v2167 = vld [vmem:[%s5 + $0x130] sm:$0xff]
        %v2168 = vld [vmem:[%s5 + $0x138] sm:$0xff]
        %v2169 = vld [vmem:[%s5 + $0x140] sm:$0xff]
        %v2170 = vld [vmem:[%s5 + $0x148] sm:$0xff]
        %v2171 = vld [vmem:[%s5 + $0x150] sm:$0xff]
        %v2172 = vld [vmem:[%s5 + $0x158] sm:$0xff]
        %v2173 = vld [vmem:[%s5 + $0x160] sm:$0xff]
        %v2174 = vld [vmem:[%s5 + $0x168] sm:$0xff]
        %v2175 = vld [vmem:[%s5 + $0x170] sm:$0xff]
        %v2176 = vld [vmem:[%s5 + $0x178] sm:$0xff]
        %v2177 = vld [vmem:[%s5 + $0x180] sm:$0xff]
        %v2178 = vld [vmem:[%s5 + $0x188] sm:$0xff]
        %v2179 = vld [vmem:[%s5 + $0x190] sm:$0xff]
        %v2180 = vld [vmem:[%s5 + $0x198] sm:$0xff]
        %v2181 = vld [vmem:[%s5 + $0x1a0] sm:$0xff]
        %v2182 = vld [vmem:[%s5 + $0x1a8] sm:$0xff]
        %v2183 = vld [vmem:[%s5 + $0x1b0] sm:$0xff]
        %v2184 = vld [vmem:[%s5 + $0x1b8] sm:$0xff]
        %v2185 = vld [vmem:[%s5 + $0x1c0] sm:$0xff]
        %v2186 = vld [vmem:[%s5 + $0x1c8] sm:$0xff]
        %v2187 = vld [vmem:[%s5 + $0x1d0] sm:$0xff]
        %v2188 = vld [vmem:[%s5 + $0x1d8] sm:$0xff]
        %v2189 = vld [vmem:[%s5 + $0x1e0] sm:$0xff]
        %v2190 = vld [vmem:[%s5 + $0x1e8] sm:$0xff]
        %v2191 = vld [vmem:[%s5 + $0x1f0] sm:$0xff]
        %v2192 = vld [vmem:[%s5 + $0x1f8] sm:$0xff]
        %v2197 = vcombine.low %v2050, %v2052
        %v2198 = vcombine.high %v2050, %v2052
        %v2199 = vcombine.low %v2091, %v2093
        %v2200 = vcombine.high %v2091, %v2093
        %v2202 = vunpack.c.l.s4 1966171168
        %v2203 = vunpack.c.0.s8 %v2202
        %v2204 = vlaneseq
        %v2205 = vshrl.u32 %v2204, 7
        %v2206 = vsub.s32 %v2203, %v2205
        %v2207 = vrot.slane %v2197, %v2206
        %v2209 = vunpack.c.l.s4 1966171168
        %v2210 = vunpack.c.0.s8 %v2209
        %v2211 = vlaneseq
        %v2212 = vshrl.u32 %v2211, 7
        %v2213 = vsub.s32 %v2210, %v2212
        %v2214 = vrot.slane %v2198, %v2213
        %v2216 = vunpack.c.l.s4 1966171168
        %v2217 = vunpack.c.0.s8 %v2216
        %v2218 = vlaneseq
        %v2219 = vshrl.u32 %v2218, 7
        %v2220 = vsub.s32 %v2217, %v2219
        %v2221 = vrot.slane %v2199, %v2220
        %v2223 = vunpack.c.l.s4 1966171168
        %v2224 = vunpack.c.0.s8 %v2223
        %v2225 = vlaneseq
        %v2226 = vshrl.u32 %v2225, 7
        %v2227 = vsub.s32 %v2224, %v2226
        %v2228 = vrot.slane %v2200, %v2227
        %v2229 = vcombine.low %v2207, %v2221
        %v2230 = vcombine.high %v2207, %v2221
        %v2231 = vcombine.low %v2214, %v2228
        %v2232 = vcombine.high %v2214, %v2228
        %v2234 = vunpack.c.l.s4 1966171168
        %v2235 = vunpack.c.0.s8 %v2234
        %v2236 = vlaneseq
        %v2237 = vshrl.u32 %v2236, 7
        %v2238 = vsub.s32 %v2235, %v2237
        %v2239 = vrot.slane %v2229, %v2238
        %v2241 = vunpack.c.l.s4 1966171168
        %v2242 = vunpack.c.0.s8 %v2241
        %v2243 = vlaneseq
        %v2244 = vshrl.u32 %v2243, 7
        %v2245 = vsub.s32 %v2242, %v2244
        %v2246 = vrot.slane %v2231, %v2245
        %v2248 = vunpack.c.l.s4 1966171168
        %v2249 = vunpack.c.0.s8 %v2248
        %v2250 = vlaneseq
        %v2251 = vshrl.u32 %v2250, 7
        %v2252 = vsub.s32 %v2249, %v2251
        %v2253 = vrot.slane %v2230, %v2252
        %v2255 = vunpack.c.l.s4 1966171168
        %v2256 = vunpack.c.0.s8 %v2255
        %v2257 = vlaneseq
        %v2258 = vshrl.u32 %v2257, 7
        %v2259 = vsub.s32 %v2256, %v2258
        %v2260 = vrot.slane %v2232, %v2259
        %v2261 = vcombine.high %v2239, %v2239
        %v2262 = vcombine.high %v2246, %v2246
        %v2263 = vcombine.high %v2253, %v2253
        %v2264 = vcombine.high %v2260, %v2260
        %v2265 = vlaneseq
        %v2266 = vshrl.u32 %v2265, 7
        %v2267 = vsub.s32 0, %v2266
        %v2268 = vrot.slane %v2239, %v2267
        %v2269 = vlaneseq
        %v2270 = vshrl.u32 %v2269, 7
        %v2271 = vsub.s32 1, %v2270
        %v2272 = vrot.slane %v2239, %v2271
        %v2273 = vlaneseq
        %v2274 = vshrl.u32 %v2273, 7
        %v2275 = vsub.s32 2, %v2274
        %v2276 = vrot.slane %v2239, %v2275
        %v2277 = vlaneseq
        %v2278 = vshrl.u32 %v2277, 7
        %v2279 = vsub.s32 3, %v2278
        %v2280 = vrot.slane %v2239, %v2279
        %v2281 = vlaneseq
        %v2282 = vshrl.u32 %v2281, 7
        %v2283 = vsub.s32 0, %v2282
        %v2284 = vrot.slane %v2253, %v2283
        %v2285 = vlaneseq
        %v2286 = vshrl.u32 %v2285, 7
        %v2287 = vsub.s32 1, %v2286
        %v2288 = vrot.slane %v2253, %v2287
        %v2289 = vlaneseq
        %v2290 = vshrl.u32 %v2289, 7
        %v2291 = vsub.s32 2, %v2290
        %v2292 = vrot.slane %v2253, %v2291
        %v2293 = vlaneseq
        %v2294 = vshrl.u32 %v2293, 7
        %v2295 = vsub.s32 3, %v2294
        %v2296 = vrot.slane %v2253, %v2295
        %v2297 = vlaneseq
        %v2298 = vshrl.u32 %v2297, 7
        %v2299 = vsub.s32 0, %v2298
        %v2300 = vrot.slane %v2261, %v2299
        %v2301 = vlaneseq
        %v2302 = vshrl.u32 %v2301, 7
        %v2303 = vsub.s32 1, %v2302
        %v2304 = vrot.slane %v2261, %v2303
        %v2305 = vlaneseq
        %v2306 = vshrl.u32 %v2305, 7
        %v2307 = vsub.s32 2, %v2306
        %v2308 = vrot.slane %v2261, %v2307
        %v2309 = vlaneseq
        %v2310 = vshrl.u32 %v2309, 7
        %v2311 = vsub.s32 3, %v2310
        %v2312 = vrot.slane %v2261, %v2311
        %v2313 = vlaneseq
        %v2314 = vshrl.u32 %v2313, 7
        %v2315 = vsub.s32 0, %v2314
        %v2316 = vrot.slane %v2263, %v2315
        %v2317 = vlaneseq
        %v2318 = vshrl.u32 %v2317, 7
        %v2319 = vsub.s32 1, %v2318
        %v2320 = vrot.slane %v2263, %v2319
        %v2321 = vlaneseq
        %v2322 = vshrl.u32 %v2321, 7
        %v2323 = vsub.s32 2, %v2322
        %v2324 = vrot.slane %v2263, %v2323
        %v2325 = vlaneseq
        %v2326 = vshrl.u32 %v2325, 7
        %v2327 = vsub.s32 3, %v2326
        %v2328 = vrot.slane %v2263, %v2327
        %v2329 = vlaneseq
        %v2330 = vshrl.u32 %v2329, 7
        %v2331 = vsub.s32 0, %v2330
        %v2332 = vrot.slane %v2246, %v2331
        %v2333 = vlaneseq
        %v2334 = vshrl.u32 %v2333, 7
        %v2335 = vsub.s32 1, %v2334
        %v2336 = vrot.slane %v2246, %v2335
        %v2337 = vlaneseq
        %v2338 = vshrl.u32 %v2337, 7
        %v2339 = vsub.s32 2, %v2338
        %v2340 = vrot.slane %v2246, %v2339
        %v2341 = vlaneseq
        %v2342 = vshrl.u32 %v2341, 7
        %v2343 = vsub.s32 3, %v2342
        %v2344 = vrot.slane %v2246, %v2343
        %v2345 = vlaneseq
        %v2346 = vshrl.u32 %v2345, 7
        %v2347 = vsub.s32 0, %v2346
        %v2348 = vrot.slane %v2260, %v2347
        %v2349 = vlaneseq
        %v2350 = vshrl.u32 %v2349, 7
        %v2351 = vsub.s32 1, %v2350
        %v2352 = vrot.slane %v2260, %v2351
        %v2353 = vlaneseq
        %v2354 = vshrl.u32 %v2353, 7
        %v2355 = vsub.s32 2, %v2354
        %v2356 = vrot.slane %v2260, %v2355
        %v2357 = vlaneseq
        %v2358 = vshrl.u32 %v2357, 7
        %v2359 = vsub.s32 3, %v2358
        %v2360 = vrot.slane %v2260, %v2359
        %v2361 = vlaneseq
        %v2362 = vshrl.u32 %v2361, 7
        %v2363 = vsub.s32 0, %v2362
        %v2364 = vrot.slane %v2262, %v2363
        %v2365 = vlaneseq
        %v2366 = vshrl.u32 %v2365, 7
        %v2367 = vsub.s32 1, %v2366
        %v2368 = vrot.slane %v2262, %v2367
        %v2369 = vlaneseq
        %v2370 = vshrl.u32 %v2369, 7
        %v2371 = vsub.s32 2, %v2370
        %v2372 = vrot.slane %v2262, %v2371
        %v2373 = vlaneseq
        %v2374 = vshrl.u32 %v2373, 7
        %v2375 = vsub.s32 3, %v2374
        %v2376 = vrot.slane %v2262, %v2375
        %v2377 = vlaneseq
        %v2378 = vshrl.u32 %v2377, 7
        %v2379 = vsub.s32 0, %v2378
        %v2380 = vrot.slane %v2264, %v2379
        %v2381 = vlaneseq
        %v2382 = vshrl.u32 %v2381, 7
        %v2383 = vsub.s32 1, %v2382
        %v2384 = vrot.slane %v2264, %v2383
        %v2385 = vlaneseq
        %v2386 = vshrl.u32 %v2385, 7
        %v2387 = vsub.s32 2, %v2386
        %v2388 = vrot.slane %v2264, %v2387
        %v2389 = vlaneseq
        %v2390 = vshrl.u32 %v2389, 7
        %v2391 = vsub.s32 3, %v2390
        %v2392 = vrot.slane %v2264, %v2391
        %v2489 = vunpack.c.l.b16 %v2129
        %v2490 = vunpack.c.h.b16 %v2129
        %v2491 = vunpack.c.l.b16 %v2130
        %v2492 = vunpack.c.h.b16 %v2130
        %v2493 = vunpack.c.l.b16 %v2131
        %v2494 = vunpack.c.h.b16 %v2131
        %v2495 = vunpack.c.l.b16 %v2132
        %v2496 = vunpack.c.h.b16 %v2132
        %v2497 = vunpack.c.l.b16 %v2133
        %v2498 = vunpack.c.h.b16 %v2133
        %v2499 = vunpack.c.l.b16 %v2134
        %v2500 = vunpack.c.h.b16 %v2134
        %v2501 = vunpack.c.l.b16 %v2135
        %v2502 = vunpack.c.h.b16 %v2135
        %v2503 = vunpack.c.l.b16 %v2136
        %v2504 = vunpack.c.h.b16 %v2136
        %v2505 = vunpack.c.l.b16 %v2137
        %v2506 = vunpack.c.h.b16 %v2137
        %v2507 = vunpack.c.l.b16 %v2138
        %v2508 = vunpack.c.h.b16 %v2138
        %v2509 = vunpack.c.l.b16 %v2139
        %v2510 = vunpack.c.h.b16 %v2139
        %v2511 = vunpack.c.l.b16 %v2140
        %v2512 = vunpack.c.h.b16 %v2140
        %v2513 = vunpack.c.l.b16 %v2141
        %v2514 = vunpack.c.h.b16 %v2141
        %v2515 = vunpack.c.l.b16 %v2142
        %v2516 = vunpack.c.h.b16 %v2142
        %v2517 = vunpack.c.l.b16 %v2143
        %v2518 = vunpack.c.h.b16 %v2143
        %v2519 = vunpack.c.l.b16 %v2144
        %v2520 = vunpack.c.h.b16 %v2144
        %v2521 = vunpack.c.l.b16 %v2145
        %v2522 = vunpack.c.h.b16 %v2145
        %v2523 = vunpack.c.l.b16 %v2146
        %v2524 = vunpack.c.h.b16 %v2146
        %v2525 = vunpack.c.l.b16 %v2147
        %v2526 = vunpack.c.h.b16 %v2147
        %v2527 = vunpack.c.l.b16 %v2148
        %v2528 = vunpack.c.h.b16 %v2148
        %v2529 = vunpack.c.l.b16 %v2149
        %v2530 = vunpack.c.h.b16 %v2149
        %v2531 = vunpack.c.l.b16 %v2150
        %v2532 = vunpack.c.h.b16 %v2150
        %v2533 = vunpack.c.l.b16 %v2151
        %v2534 = vunpack.c.h.b16 %v2151
        %v2535 = vunpack.c.l.b16 %v2152
        %v2536 = vunpack.c.h.b16 %v2152
        %v2537 = vunpack.c.l.b16 %v2153
        %v2538 = vunpack.c.h.b16 %v2153
        %v2539 = vunpack.c.l.b16 %v2154
        %v2540 = vunpack.c.h.b16 %v2154
        %v2541 = vunpack.c.l.b16 %v2155
        %v2542 = vunpack.c.h.b16 %v2155
        %v2543 = vunpack.c.l.b16 %v2156
        %v2544 = vunpack.c.h.b16 %v2156
        %v2545 = vunpack.c.l.b16 %v2157
        %v2546 = vunpack.c.h.b16 %v2157
        %v2547 = vunpack.c.l.b16 %v2158
        %v2548 = vunpack.c.h.b16 %v2158
        %v2549 = vunpack.c.l.b16 %v2159
        %v2550 = vunpack.c.h.b16 %v2159
        %v2551 = vunpack.c.l.b16 %v2160
        %v2552 = vunpack.c.h.b16 %v2160
        %v2553 = vunpack.c.l.b16 %v2161
        %v2554 = vunpack.c.h.b16 %v2161
        %v2555 = vunpack.c.l.b16 %v2162
        %v2556 = vunpack.c.h.b16 %v2162
        %v2557 = vunpack.c.l.b16 %v2163
        %v2558 = vunpack.c.h.b16 %v2163
        %v2559 = vunpack.c.l.b16 %v2164
        %v2560 = vunpack.c.h.b16 %v2164
        %v2561 = vunpack.c.l.b16 %v2165
        %v2562 = vunpack.c.h.b16 %v2165
        %v2563 = vunpack.c.l.b16 %v2166
        %v2564 = vunpack.c.h.b16 %v2166
        %v2565 = vunpack.c.l.b16 %v2167
        %v2566 = vunpack.c.h.b16 %v2167
        %v2567 = vunpack.c.l.b16 %v2168
        %v2568 = vunpack.c.h.b16 %v2168
        %v2569 = vunpack.c.l.b16 %v2169
        %v2570 = vunpack.c.h.b16 %v2169
        %v2571 = vunpack.c.l.b16 %v2170
        %v2572 = vunpack.c.h.b16 %v2170
        %v2573 = vunpack.c.l.b16 %v2171
        %v2574 = vunpack.c.h.b16 %v2171
        %v2575 = vunpack.c.l.b16 %v2172
        %v2576 = vunpack.c.h.b16 %v2172
        %v2577 = vunpack.c.l.b16 %v2173
        %v2578 = vunpack.c.h.b16 %v2173
        %v2579 = vunpack.c.l.b16 %v2174
        %v2580 = vunpack.c.h.b16 %v2174
        %v2581 = vunpack.c.l.b16 %v2175
        %v2582 = vunpack.c.h.b16 %v2175
        %v2583 = vunpack.c.l.b16 %v2176
        %v2584 = vunpack.c.h.b16 %v2176
        %v2585 = vunpack.c.l.b16 %v2177
        %v2586 = vunpack.c.h.b16 %v2177
        %v2587 = vunpack.c.l.b16 %v2178
        %v2588 = vunpack.c.h.b16 %v2178
        %v2589 = vunpack.c.l.b16 %v2179
        %v2590 = vunpack.c.h.b16 %v2179
        %v2591 = vunpack.c.l.b16 %v2180
        %v2592 = vunpack.c.h.b16 %v2180
        %v2593 = vunpack.c.l.b16 %v2181
        %v2594 = vunpack.c.h.b16 %v2181
        %v2595 = vunpack.c.l.b16 %v2182
        %v2596 = vunpack.c.h.b16 %v2182
        %v2597 = vunpack.c.l.b16 %v2183
        %v2598 = vunpack.c.h.b16 %v2183
        %v2599 = vunpack.c.l.b16 %v2184
        %v2600 = vunpack.c.h.b16 %v2184
        %v2601 = vunpack.c.l.b16 %v2185
        %v2602 = vunpack.c.h.b16 %v2185
        %v2603 = vunpack.c.l.b16 %v2186
        %v2604 = vunpack.c.h.b16 %v2186
        %v2605 = vunpack.c.l.b16 %v2187
        %v2606 = vunpack.c.h.b16 %v2187
        %v2607 = vunpack.c.l.b16 %v2188
        %v2608 = vunpack.c.h.b16 %v2188
        %v2609 = vunpack.c.l.b16 %v2189
        %v2610 = vunpack.c.h.b16 %v2189
        %v2611 = vunpack.c.l.b16 %v2190
        %v2612 = vunpack.c.h.b16 %v2190
        %v2613 = vunpack.c.l.b16 %v2191
        %v2614 = vunpack.c.h.b16 %v2191
        %v2615 = vunpack.c.l.b16 %v2192
        %v2616 = vunpack.c.h.b16 %v2192
        %v2617 = vpack.c.b16 %v2493, %v2489
        %v2618 = vpack.c.b16 %v2494, %v2490
        %v2619 = vpack.c.b16 %v2495, %v2491
        %v2620 = vpack.c.b16 %v2496, %v2492
        %v2621 = vpack.c.b16 %v2501, %v2497
        %v2622 = vpack.c.b16 %v2502, %v2498
        %v2623 = vpack.c.b16 %v2503, %v2499
        %v2624 = vpack.c.b16 %v2504, %v2500
        %v2625 = vpack.c.b16 %v2509, %v2505
        %v2626 = vpack.c.b16 %v2510, %v2506
        %v2627 = vpack.c.b16 %v2511, %v2507
        %v2628 = vpack.c.b16 %v2512, %v2508
        %v2629 = vpack.c.b16 %v2517, %v2513
        %v2630 = vpack.c.b16 %v2518, %v2514
        %v2631 = vpack.c.b16 %v2519, %v2515
        %v2632 = vpack.c.b16 %v2520, %v2516
        %v2633 = vpack.c.b16 %v2525, %v2521
        %v2634 = vpack.c.b16 %v2526, %v2522
        %v2635 = vpack.c.b16 %v2527, %v2523
        %v2636 = vpack.c.b16 %v2528, %v2524
        %v2637 = vpack.c.b16 %v2533, %v2529
        %v2638 = vpack.c.b16 %v2534, %v2530
        %v2639 = vpack.c.b16 %v2535, %v2531
        %v2640 = vpack.c.b16 %v2536, %v2532
        %v2641 = vpack.c.b16 %v2541, %v2537
        %v2642 = vpack.c.b16 %v2542, %v2538
        %v2643 = vpack.c.b16 %v2543, %v2539
        %v2644 = vpack.c.b16 %v2544, %v2540
        %v2645 = vpack.c.b16 %v2549, %v2545
        %v2646 = vpack.c.b16 %v2550, %v2546
        %v2647 = vpack.c.b16 %v2551, %v2547
        %v2648 = vpack.c.b16 %v2552, %v2548
        %v2649 = vpack.c.b16 %v2557, %v2553
        %v2650 = vpack.c.b16 %v2558, %v2554
        %v2651 = vpack.c.b16 %v2559, %v2555
        %v2652 = vpack.c.b16 %v2560, %v2556
        %v2653 = vpack.c.b16 %v2565, %v2561
        %v2654 = vpack.c.b16 %v2566, %v2562
        %v2655 = vpack.c.b16 %v2567, %v2563
        %v2656 = vpack.c.b16 %v2568, %v2564
        %v2657 = vpack.c.b16 %v2573, %v2569
        %v2658 = vpack.c.b16 %v2574, %v2570
        %v2659 = vpack.c.b16 %v2575, %v2571
        %v2660 = vpack.c.b16 %v2576, %v2572
        %v2661 = vpack.c.b16 %v2581, %v2577
        %v2662 = vpack.c.b16 %v2582, %v2578
        %v2663 = vpack.c.b16 %v2583, %v2579
        %v2664 = vpack.c.b16 %v2584, %v2580
        %v2665 = vpack.c.b16 %v2589, %v2585
        %v2666 = vpack.c.b16 %v2590, %v2586
        %v2667 = vpack.c.b16 %v2591, %v2587
        %v2668 = vpack.c.b16 %v2592, %v2588
        %v2669 = vpack.c.b16 %v2597, %v2593
        %v2670 = vpack.c.b16 %v2598, %v2594
        %v2671 = vpack.c.b16 %v2599, %v2595
        %v2672 = vpack.c.b16 %v2600, %v2596
        %v2673 = vpack.c.b16 %v2605, %v2601
        %v2674 = vpack.c.b16 %v2606, %v2602
        %v2675 = vpack.c.b16 %v2607, %v2603
        %v2676 = vpack.c.b16 %v2608, %v2604
        %v2677 = vpack.c.b16 %v2613, %v2609
        %v2678 = vpack.c.b16 %v2614, %v2610
        %v2679 = vpack.c.b16 %v2615, %v2611
        %v2680 = vpack.c.b16 %v2616, %v2612
        %2745 = vmatprep.subr.bf16.mxu0 %v2646
        %2746 = vmatpush1.bf16.msra.mxu0 %v2645
        %2747 = vmatprep.subr.bf16.mxu0 %v2642
        %2748 = vmatpush1.bf16.msra.mxu0 %v2641
        %2749 = vmatprep.subr.bf16.mxu0 %v2638
        %2750 = vmatpush1.bf16.msra.mxu0 %v2637
        %2751 = vmatprep.subr.bf16.mxu0 %v2634
        %2752 = vmatpush1.bf16.msra.mxu0 %v2633
        %2753 = vmatprep.subr.bf16.mxu0 %v2630
        %2754 = vmatpush1.bf16.msra.mxu0 %v2629
        %2755 = vmatprep.subr.bf16.mxu0 %v2626
        %2756 = vmatpush1.bf16.msra.mxu0 %v2625
        %2757 = vmatprep.subr.bf16.mxu0 %v2622
        %2758 = vmatpush1.bf16.msra.mxu0 %v2621
        %2759 = vmatprep.subr.bf16.mxu0 %v2618
        %2760 = vmatpush1.bf16.msra.mxu0 %v2617
        %2761 = vmatprep.subr.bf16.mxu0 %v2678
        %2762 = vmatpush2.bf16.msra.mxu0 %v2677
        %2763 = vmatprep.subr.bf16.mxu0 %v2674
        %2764 = vmatpush2.bf16.msra.mxu0 %v2673
        %2765 = vmatprep.subr.bf16.mxu0 %v2670
        %2766 = vmatpush2.bf16.msra.mxu0 %v2669
        %2767 = vmatprep.subr.bf16.mxu0 %v2666
        %2768 = vmatpush2.bf16.msra.mxu0 %v2665
        %2769 = vmatprep.subr.bf16.mxu0 %v2662
        %2770 = vmatpush2.bf16.msra.mxu0 %v2661
        %2771 = vmatprep.subr.bf16.mxu0 %v2658
        %2772 = vmatpush2.bf16.msra.mxu0 %v2657
        %2773 = vmatprep.subr.bf16.mxu0 %v2654
        %2774 = vmatpush2.bf16.msra.mxu0 %v2653
        %2775 = vmatprep.subr.bf16.mxu0 %v2650
        %2776 = vmatpush2.bf16.msra.mxu0 %v2649
        %2777 = vmatprep.mubr.bf16.mxu0 %v2098
        %2778 = vmatmul.mubr.bf16.gmra.mxu0 %v2097
        %v2779 = vpop.f32.mrf.mxu0
        %v2780 = vadd.f32 %v2268, %v2779
        %v2781 = vpop.f32.mrf.mxu0
        %v2782 = vadd.f32 %v2272, %v2781
        %v2783 = vpop.f32.mrf.mxu0
        %v2784 = vadd.f32 %v2268, %v2783
        %v2785 = vpop.f32.mrf.mxu0
        %v2786 = vadd.f32 %v2272, %v2785
        %2787 = vmatprep.mubr.bf16.mxu0 %v2100
        %2788 = vmatmul.mubr.bf16.gmra.mxu0 %v2099
        %v2789 = vpop.f32.mrf.mxu0
        %v2790 = vadd.f32 %v2268, %v2789
        %v2791 = vpop.f32.mrf.mxu0
        %v2792 = vadd.f32 %v2272, %v2791
        %v2793 = vpop.f32.mrf.mxu0
        %v2794 = vadd.f32 %v2268, %v2793
        %v2795 = vpop.f32.mrf.mxu0
        %v2796 = vadd.f32 %v2272, %v2795
        %2797 = vmatprep.mubr.bf16.mxu0 %v2102
        %2798 = vmatmul.mubr.bf16.gmra.mxu0 %v2101
        %v2799 = vpop.f32.mrf.mxu0
        %v2800 = vadd.f32 %v2284, %v2799
        %v2801 = vpop.f32.mrf.mxu0
        %v2802 = vadd.f32 %v2288, %v2801
        %v2803 = vpop.f32.mrf.mxu0
        %v2804 = vadd.f32 %v2284, %v2803
        %v2805 = vpop.f32.mrf.mxu0
        %v2806 = vadd.f32 %v2288, %v2805
        %2807 = vmatprep.mubr.bf16.mxu0 %v2104
        %2808 = vmatmul.mubr.bf16.gmra.mxu0 %v2103
        %v2809 = vpop.f32.mrf.mxu0
        %v2810 = vadd.f32 %v2284, %v2809
        %v2811 = vpop.f32.mrf.mxu0
        %v2812 = vadd.f32 %v2288, %v2811
        %v2813 = vpop.f32.mrf.mxu0
        %v2814 = vadd.f32 %v2284, %v2813
        %v2815 = vpop.f32.mrf.mxu0
        %v2816 = vadd.f32 %v2288, %v2815
        %2817 = vmatprep.mubr.bf16.mxu0 %v2106
        %2818 = vmatmul.mubr.bf16.gmra.mxu0 %v2105
        %v2819 = vpop.f32.mrf.mxu0
        %v2820 = vadd.f32 %v2300, %v2819
        %v2821 = vpop.f32.mrf.mxu0
        %v2822 = vadd.f32 %v2304, %v2821
        %v2823 = vpop.f32.mrf.mxu0
        %v2824 = vadd.f32 %v2300, %v2823
        %v2825 = vpop.f32.mrf.mxu0
        %v2826 = vadd.f32 %v2304, %v2825
        %2827 = vmatprep.mubr.bf16.mxu0 %v2108
        %2828 = vmatmul.mubr.bf16.gmra.mxu0 %v2107
        %v2829 = vpop.f32.mrf.mxu0
        %v2830 = vadd.f32 %v2300, %v2829
        %v2831 = vpop.f32.mrf.mxu0
        %v2832 = vadd.f32 %v2304, %v2831
        %v2833 = vpop.f32.mrf.mxu0
        %v2834 = vadd.f32 %v2300, %v2833
        %v2835 = vpop.f32.mrf.mxu0
        %v2836 = vadd.f32 %v2304, %v2835
        %2837 = vmatprep.mubr.bf16.mxu0 %v2110
        %2838 = vmatmul.mubr.bf16.gmra.mxu0 %v2109
        %v2839 = vpop.f32.mrf.mxu0
        %v2840 = vadd.f32 %v2316, %v2839
        %v2841 = vpop.f32.mrf.mxu0
        %v2842 = vadd.f32 %v2320, %v2841
        %v2843 = vpop.f32.mrf.mxu0
        %v2844 = vadd.f32 %v2316, %v2843
        %v2845 = vpop.f32.mrf.mxu0
        %v2846 = vadd.f32 %v2320, %v2845
        %2847 = vmatprep.mubr.bf16.mxu0 %v2112
        %2848 = vmatmul.mubr.bf16.gmra.mxu0 %v2111
        %v2849 = vpop.f32.mrf.mxu0
        %v2850 = vadd.f32 %v2316, %v2849
        %v2851 = vpop.f32.mrf.mxu0
        %v2852 = vadd.f32 %v2320, %v2851
        %v2853 = vpop.f32.mrf.mxu0
        %v2854 = vadd.f32 %v2316, %v2853
        %v2855 = vpop.f32.mrf.mxu0
        %v2856 = vadd.f32 %v2320, %v2855
        %2857 = vmatprep.mubr.bf16.mxu0 %v2114
        %2858 = vmatmul.mubr.bf16.gmra.mxu0 %v2113
        %v2859 = vpop.f32.mrf.mxu0
        %v2860 = vadd.f32 %v2332, %v2859
        %v2861 = vpop.f32.mrf.mxu0
        %v2862 = vadd.f32 %v2336, %v2861
        %v2863 = vpop.f32.mrf.mxu0
        %v2864 = vadd.f32 %v2332, %v2863
        %v2865 = vpop.f32.mrf.mxu0
        %v2866 = vadd.f32 %v2336, %v2865
        %2867 = vmatprep.mubr.bf16.mxu0 %v2116
        %2868 = vmatmul.mubr.bf16.gmra.mxu0 %v2115
        %v2869 = vpop.f32.mrf.mxu0
        %v2870 = vadd.f32 %v2332, %v2869
        %v2871 = vpop.f32.mrf.mxu0
        %v2872 = vadd.f32 %v2336, %v2871
        %v2873 = vpop.f32.mrf.mxu0
        %v2874 = vadd.f32 %v2332, %v2873
        %v2875 = vpop.f32.mrf.mxu0
        %v2876 = vadd.f32 %v2336, %v2875
        %2877 = vmatprep.mubr.bf16.mxu0 %v2118
        %2878 = vmatmul.mubr.bf16.gmra.mxu0 %v2117
        %v2879 = vpop.f32.mrf.mxu0
        %v2880 = vadd.f32 %v2348, %v2879
        %v2881 = vpop.f32.mrf.mxu0
        %v2882 = vadd.f32 %v2352, %v2881
        %v2883 = vpop.f32.mrf.mxu0
        %v2884 = vadd.f32 %v2348, %v2883
        %v2885 = vpop.f32.mrf.mxu0
        %v2886 = vadd.f32 %v2352, %v2885
        %2887 = vmatprep.mubr.bf16.mxu0 %v2120
        %2888 = vmatmul.mubr.bf16.gmra.mxu0 %v2119
        %v2889 = vpop.f32.mrf.mxu0
        %v2890 = vadd.f32 %v2348, %v2889
        %v2891 = vpop.f32.mrf.mxu0
        %v2892 = vadd.f32 %v2352, %v2891
        %v2893 = vpop.f32.mrf.mxu0
        %v2894 = vadd.f32 %v2348, %v2893
        %v2895 = vpop.f32.mrf.mxu0
        %v2896 = vadd.f32 %v2352, %v2895
        %2897 = vmatprep.mubr.bf16.mxu0 %v2122
        %2898 = vmatmul.mubr.bf16.gmra.mxu0 %v2121
        %v2899 = vpop.f32.mrf.mxu0
        %v2900 = vadd.f32 %v2364, %v2899
        %v2901 = vpop.f32.mrf.mxu0
        %v2902 = vadd.f32 %v2368, %v2901
        %v2903 = vpop.f32.mrf.mxu0
        %v2904 = vadd.f32 %v2364, %v2903
        %v2905 = vpop.f32.mrf.mxu0
        %v2906 = vadd.f32 %v2368, %v2905
        %2907 = vmatprep.mubr.bf16.mxu0 %v2124
        %2908 = vmatmul.mubr.bf16.gmra.mxu0 %v2123
        %v2909 = vpop.f32.mrf.mxu0
        %v2910 = vadd.f32 %v2364, %v2909
        %v2911 = vpop.f32.mrf.mxu0
        %v2912 = vadd.f32 %v2368, %v2911
        %v2913 = vpop.f32.mrf.mxu0
        %v2914 = vadd.f32 %v2364, %v2913
        %v2915 = vpop.f32.mrf.mxu0
        %v2916 = vadd.f32 %v2368, %v2915
        %2917 = vmatprep.mubr.bf16.mxu0 %v2126
        %2918 = vmatmul.mubr.bf16.gmra.mxu0 %v2125
        %v2919 = vpop.f32.mrf.mxu0
        %v2920 = vadd.f32 %v2380, %v2919
        %v2921 = vpop.f32.mrf.mxu0
        %v2922 = vadd.f32 %v2384, %v2921
        %v2923 = vpop.f32.mrf.mxu0
        %v2924 = vadd.f32 %v2380, %v2923
        %v2925 = vpop.f32.mrf.mxu0
        %v2926 = vadd.f32 %v2384, %v2925
        %2927 = vmatprep.mubr.bf16.mxu0 %v2128
        %2928 = vmatmul.mubr.bf16.gmra.mxu0 %v2127
        %v2929 = vpop.f32.mrf.mxu0
        %v2930 = vadd.f32 %v2380, %v2929
        %v2931 = vpop.f32.mrf.mxu0
        %v2932 = vadd.f32 %v2384, %v2931
        %v2933 = vpop.f32.mrf.mxu0
        %v2934 = vadd.f32 %v2380, %v2933
        %v2935 = vpop.f32.mrf.mxu0
        %v2936 = vadd.f32 %v2384, %v2935
        %2937 = vdwg.mxu0
        %2938 = vmatprep.subr.bf16.mxu0 %v2648
        %2939 = vmatpush1.bf16.msra.mxu0 %v2647
        %2940 = vmatprep.subr.bf16.mxu0 %v2644
        %2941 = vmatpush1.bf16.msra.mxu0 %v2643
        %2942 = vmatprep.subr.bf16.mxu0 %v2640
        %2943 = vmatpush1.bf16.msra.mxu0 %v2639
        %2944 = vmatprep.subr.bf16.mxu0 %v2636
        %2945 = vmatpush1.bf16.msra.mxu0 %v2635
        %2946 = vmatprep.subr.bf16.mxu0 %v2632
        %2947 = vmatpush1.bf16.msra.mxu0 %v2631
        %2948 = vmatprep.subr.bf16.mxu0 %v2628
        %2949 = vmatpush1.bf16.msra.mxu0 %v2627
        %2950 = vmatprep.subr.bf16.mxu0 %v2624
        %2951 = vmatpush1.bf16.msra.mxu0 %v2623
        %2952 = vmatprep.subr.bf16.mxu0 %v2620
        %2953 = vmatpush1.bf16.msra.mxu0 %v2619
        %2954 = vmatprep.subr.bf16.mxu0 %v2680
        %2955 = vmatpush2.bf16.msra.mxu0 %v2679
        %2956 = vmatprep.subr.bf16.mxu0 %v2676
        %2957 = vmatpush2.bf16.msra.mxu0 %v2675
        %2958 = vmatprep.subr.bf16.mxu0 %v2672
        %2959 = vmatpush2.bf16.msra.mxu0 %v2671
        %2960 = vmatprep.subr.bf16.mxu0 %v2668
        %2961 = vmatpush2.bf16.msra.mxu0 %v2667
        %2962 = vmatprep.subr.bf16.mxu0 %v2664
        %2963 = vmatpush2.bf16.msra.mxu0 %v2663
        %2964 = vmatprep.subr.bf16.mxu0 %v2660
        %2965 = vmatpush2.bf16.msra.mxu0 %v2659
        %2966 = vmatprep.subr.bf16.mxu0 %v2656
        %2967 = vmatpush2.bf16.msra.mxu0 %v2655
        %2968 = vmatprep.subr.bf16.mxu0 %v2652
        %2969 = vmatpush2.bf16.msra.mxu0 %v2651
        %2970 = vmatprep.mubr.bf16.mxu0 %v2098
        %2971 = vmatmul.mubr.bf16.gmra.mxu0 %v2097
        %v2972 = vpop.f32.mrf.mxu0
        %v2973 = vadd.f32 %v2276, %v2972
        %v2974 = vpop.f32.mrf.mxu0
        %v2975 = vadd.f32 %v2280, %v2974
        %v2976 = vpop.f32.mrf.mxu0
        %v2977 = vadd.f32 %v2276, %v2976
        %v2978 = vpop.f32.mrf.mxu0
        %v2979 = vadd.f32 %v2280, %v2978
        %2980 = vmatprep.mubr.bf16.mxu0 %v2100
        %2981 = vmatmul.mubr.bf16.gmra.mxu0 %v2099
        %v2982 = vpop.f32.mrf.mxu0
        %v2983 = vadd.f32 %v2276, %v2982
        %v2984 = vpop.f32.mrf.mxu0
        %v2985 = vadd.f32 %v2280, %v2984
        %v2986 = vpop.f32.mrf.mxu0
        %v2987 = vadd.f32 %v2276, %v2986
        %v2988 = vpop.f32.mrf.mxu0
        %v2989 = vadd.f32 %v2280, %v2988
        %2990 = vmatprep.mubr.bf16.mxu0 %v2102
        %2991 = vmatmul.mubr.bf16.gmra.mxu0 %v2101
        %v2992 = vpop.f32.mrf.mxu0
        %v2993 = vadd.f32 %v2292, %v2992
        %v2994 = vpop.f32.mrf.mxu0
        %v2995 = vadd.f32 %v2296, %v2994
        %v2996 = vpop.f32.mrf.mxu0
        %v2997 = vadd.f32 %v2292, %v2996
        %v2998 = vpop.f32.mrf.mxu0
        %v2999 = vadd.f32 %v2296, %v2998
        %3000 = vmatprep.mubr.bf16.mxu0 %v2104
        %3001 = vmatmul.mubr.bf16.gmra.mxu0 %v2103
        %v3002 = vpop.f32.mrf.mxu0
        %v3003 = vadd.f32 %v2292, %v3002
        %v3004 = vpop.f32.mrf.mxu0
        %v3005 = vadd.f32 %v2296, %v3004
        %v3006 = vpop.f32.mrf.mxu0
        %v3007 = vadd.f32 %v2292, %v3006
        %v3008 = vpop.f32.mrf.mxu0
        %v3009 = vadd.f32 %v2296, %v3008
        %3010 = vmatprep.mubr.bf16.mxu0 %v2106
        %3011 = vmatmul.mubr.bf16.gmra.mxu0 %v2105
        %v3012 = vpop.f32.mrf.mxu0
        %v3013 = vadd.f32 %v2308, %v3012
        %v3014 = vpop.f32.mrf.mxu0
        %v3015 = vadd.f32 %v2312, %v3014
        %v3016 = vpop.f32.mrf.mxu0
        %v3017 = vadd.f32 %v2308, %v3016
        %v3018 = vpop.f32.mrf.mxu0
        %v3019 = vadd.f32 %v2312, %v3018
        %3020 = vmatprep.mubr.bf16.mxu0 %v2108
        %3021 = vmatmul.mubr.bf16.gmra.mxu0 %v2107
        %v3022 = vpop.f32.mrf.mxu0
        %v3023 = vadd.f32 %v2308, %v3022
        %v3024 = vpop.f32.mrf.mxu0
        %v3025 = vadd.f32 %v2312, %v3024
        %v3026 = vpop.f32.mrf.mxu0
        %v3027 = vadd.f32 %v2308, %v3026
        %v3028 = vpop.f32.mrf.mxu0
        %v3029 = vadd.f32 %v2312, %v3028
        %3030 = vmatprep.mubr.bf16.mxu0 %v2110
        %3031 = vmatmul.mubr.bf16.gmra.mxu0 %v2109
        %v3032 = vpop.f32.mrf.mxu0
        %v3033 = vadd.f32 %v2324, %v3032
        %v3034 = vpop.f32.mrf.mxu0
        %v3035 = vadd.f32 %v2328, %v3034
        %v3036 = vpop.f32.mrf.mxu0
        %v3037 = vadd.f32 %v2324, %v3036
        %v3038 = vpop.f32.mrf.mxu0
        %v3039 = vadd.f32 %v2328, %v3038
        %3040 = vmatprep.mubr.bf16.mxu0 %v2112
        %3041 = vmatmul.mubr.bf16.gmra.mxu0 %v2111
        %v3042 = vpop.f32.mrf.mxu0
        %v3043 = vadd.f32 %v2324, %v3042
        %v3044 = vpop.f32.mrf.mxu0
        %v3045 = vadd.f32 %v2328, %v3044
        %v3046 = vpop.f32.mrf.mxu0
        %v3047 = vadd.f32 %v2324, %v3046
        %v3048 = vpop.f32.mrf.mxu0
        %v3049 = vadd.f32 %v2328, %v3048
        %3050 = vmatprep.mubr.bf16.mxu0 %v2114
        %3051 = vmatmul.mubr.bf16.gmra.mxu0 %v2113
        %v3052 = vpop.f32.mrf.mxu0
        %v3053 = vadd.f32 %v2340, %v3052
        %v3054 = vpop.f32.mrf.mxu0
        %v3055 = vadd.f32 %v2344, %v3054
        %v3056 = vpop.f32.mrf.mxu0
        %v3057 = vadd.f32 %v2340, %v3056
        %v3058 = vpop.f32.mrf.mxu0
        %v3059 = vadd.f32 %v2344, %v3058
        %3060 = vmatprep.mubr.bf16.mxu0 %v2116
        %3061 = vmatmul.mubr.bf16.gmra.mxu0 %v2115
        %v3062 = vpop.f32.mrf.mxu0
        %v3063 = vadd.f32 %v2340, %v3062
        %v3064 = vpop.f32.mrf.mxu0
        %v3065 = vadd.f32 %v2344, %v3064
        %v3066 = vpop.f32.mrf.mxu0
        %v3067 = vadd.f32 %v2340, %v3066
        %v3068 = vpop.f32.mrf.mxu0
        %v3069 = vadd.f32 %v2344, %v3068
        %3070 = vmatprep.mubr.bf16.mxu0 %v2118
        %3071 = vmatmul.mubr.bf16.gmra.mxu0 %v2117
        %v3072 = vpop.f32.mrf.mxu0
        %v3073 = vadd.f32 %v2356, %v3072
        %v3074 = vpop.f32.mrf.mxu0
        %v3075 = vadd.f32 %v2360, %v3074
        %v3076 = vpop.f32.mrf.mxu0
        %v3077 = vadd.f32 %v2356, %v3076
        %v3078 = vpop.f32.mrf.mxu0
        %v3079 = vadd.f32 %v2360, %v3078
        %3080 = vmatprep.mubr.bf16.mxu0 %v2120
        %3081 = vmatmul.mubr.bf16.gmra.mxu0 %v2119
        %v3082 = vpop.f32.mrf.mxu0
        %v3083 = vadd.f32 %v2356, %v3082
        %v3084 = vpop.f32.mrf.mxu0
        %v3085 = vadd.f32 %v2360, %v3084
        %v3086 = vpop.f32.mrf.mxu0
        %v3087 = vadd.f32 %v2356, %v3086
        %v3088 = vpop.f32.mrf.mxu0
        %v3089 = vadd.f32 %v2360, %v3088
        %3090 = vmatprep.mubr.bf16.mxu0 %v2122
        %3091 = vmatmul.mubr.bf16.gmra.mxu0 %v2121
        %v3092 = vpop.f32.mrf.mxu0
        %v3093 = vadd.f32 %v2372, %v3092
        %v3094 = vpop.f32.mrf.mxu0
        %v3095 = vadd.f32 %v2376, %v3094
        %v3096 = vpop.f32.mrf.mxu0
        %v3097 = vadd.f32 %v2372, %v3096
        %v3098 = vpop.f32.mrf.mxu0
        %v3099 = vadd.f32 %v2376, %v3098
        %3100 = vmatprep.mubr.bf16.mxu0 %v2124
        %3101 = vmatmul.mubr.bf16.gmra.mxu0 %v2123
        %v3102 = vpop.f32.mrf.mxu0
        %v3103 = vadd.f32 %v2372, %v3102
        %v3104 = vpop.f32.mrf.mxu0
        %v3105 = vadd.f32 %v2376, %v3104
        %v3106 = vpop.f32.mrf.mxu0
        %v3107 = vadd.f32 %v2372, %v3106
        %v3108 = vpop.f32.mrf.mxu0
        %v3109 = vadd.f32 %v2376, %v3108
        %3110 = vmatprep.mubr.bf16.mxu0 %v2126
        %3111 = vmatmul.mubr.bf16.gmra.mxu0 %v2125
        %v3112 = vpop.f32.mrf.mxu0
        %v3113 = vadd.f32 %v2388, %v3112
        %v3114 = vpop.f32.mrf.mxu0
        %v3115 = vadd.f32 %v2392, %v3114
        %v3116 = vpop.f32.mrf.mxu0
        %v3117 = vadd.f32 %v2388, %v3116
        %v3118 = vpop.f32.mrf.mxu0
        %v3119 = vadd.f32 %v2392, %v3118
        %3120 = vmatprep.mubr.bf16.mxu0 %v2128
        %3121 = vmatmul.mubr.bf16.gmra.mxu0 %v2127
        %v3122 = vpop.f32.mrf.mxu0
        %v3123 = vadd.f32 %v2388, %v3122
        %v3124 = vpop.f32.mrf.mxu0
        %v3125 = vadd.f32 %v2392, %v3124
        %v3126 = vpop.f32.mrf.mxu0
        %v3127 = vadd.f32 %v2388, %v3126
        %v3128 = vpop.f32.mrf.mxu0
        %v3129 = vadd.f32 %v2392, %v3128
        %3130 = vdwg.mxu0
        %v3131 = vld [vmem:[%s7] sm:$0xf]
        %v3133 = vlaneseq
        %v3134 = vshrl.u32 %v3133, 7
        %v3135 = vsub.s32 0, %v3134
        %v3136 = vrot.slane %v3131, %v3135
        %v3137 = vlaneseq
        %v3138 = vshrl.u32 %v3137, 7
        %v3139 = vsub.s32 1, %v3138
        %v3140 = vrot.slane %v3131, %v3139
        %v3141 = vlaneseq
        %v3142 = vshrl.u32 %v3141, 7
        %v3143 = vsub.s32 2, %v3142
        %v3144 = vrot.slane %v3131, %v3143
        %v3145 = vlaneseq
        %v3146 = vshrl.u32 %v3145, 7
        %v3147 = vsub.s32 3, %v3146
        %v3148 = vrot.slane %v3131, %v3147
        %v3153 = vadd.f32 %v2780, %v3136
        %v3154 = vadd.f32 %v2782, %v3140
        %v3155 = vadd.f32 %v2973, %v3144
        %v3156 = vadd.f32 %v2975, %v3148
        %v3157 = vadd.f32 %v2784, %v3136
        %v3158 = vadd.f32 %v2786, %v3140
        %v3159 = vadd.f32 %v2977, %v3144
        %v3160 = vadd.f32 %v2979, %v3148
        %v3161 = vadd.f32 %v2790, %v3136
        %v3162 = vadd.f32 %v2792, %v3140
        %v3163 = vadd.f32 %v2983, %v3144
        %v3164 = vadd.f32 %v2985, %v3148
        %v3165 = vadd.f32 %v2794, %v3136
        %v3166 = vadd.f32 %v2796, %v3140
        %v3167 = vadd.f32 %v2987, %v3144
        %v3168 = vadd.f32 %v2989, %v3148
        %v3169 = vadd.f32 %v2800, %v3136
        %v3170 = vadd.f32 %v2802, %v3140
        %v3171 = vadd.f32 %v2993, %v3144
        %v3172 = vadd.f32 %v2995, %v3148
        %v3173 = vadd.f32 %v2804, %v3136
        %v3174 = vadd.f32 %v2806, %v3140
        %v3175 = vadd.f32 %v2997, %v3144
        %v3176 = vadd.f32 %v2999, %v3148
        %v3177 = vadd.f32 %v2810, %v3136
        %v3178 = vadd.f32 %v2812, %v3140
        %v3179 = vadd.f32 %v3003, %v3144
        %v3180 = vadd.f32 %v3005, %v3148
        %v3181 = vadd.f32 %v2814, %v3136
        %v3182 = vadd.f32 %v2816, %v3140
        %v3183 = vadd.f32 %v3007, %v3144
        %v3184 = vadd.f32 %v3009, %v3148
        %v3185 = vadd.f32 %v2820, %v3136
        %v3186 = vadd.f32 %v2822, %v3140
        %v3187 = vadd.f32 %v3013, %v3144
        %v3188 = vadd.f32 %v3015, %v3148
        %v3189 = vadd.f32 %v2824, %v3136
        %v3190 = vadd.f32 %v2826, %v3140
        %v3191 = vadd.f32 %v3017, %v3144
        %v3192 = vadd.f32 %v3019, %v3148
        %v3193 = vadd.f32 %v2830, %v3136
        %v3194 = vadd.f32 %v2832, %v3140
        %v3195 = vadd.f32 %v3023, %v3144
        %v3196 = vadd.f32 %v3025, %v3148
        %v3197 = vadd.f32 %v2834, %v3136
        %v3198 = vadd.f32 %v2836, %v3140
        %v3199 = vadd.f32 %v3027, %v3144
        %v3200 = vadd.f32 %v3029, %v3148
        %v3201 = vadd.f32 %v2840, %v3136
        %v3202 = vadd.f32 %v2842, %v3140
        %v3203 = vadd.f32 %v3033, %v3144
        %v3204 = vadd.f32 %v3035, %v3148
        %v3205 = vadd.f32 %v2844, %v3136
        %v3206 = vadd.f32 %v2846, %v3140
        %v3207 = vadd.f32 %v3037, %v3144
        %v3208 = vadd.f32 %v3039, %v3148
        %v3209 = vadd.f32 %v2850, %v3136
        %v3210 = vadd.f32 %v2852, %v3140
        %v3211 = vadd.f32 %v3043, %v3144
        %v3212 = vadd.f32 %v3045, %v3148
        %v3213 = vadd.f32 %v2854, %v3136
        %v3214 = vadd.f32 %v2856, %v3140
        %v3215 = vadd.f32 %v3047, %v3144
        %v3216 = vadd.f32 %v3049, %v3148
        %v3217 = vadd.f32 %v2860, %v3136
        %v3218 = vadd.f32 %v2862, %v3140
        %v3219 = vadd.f32 %v3053, %v3144
        %v3220 = vadd.f32 %v3055, %v3148
        %v3221 = vadd.f32 %v2864, %v3136
        %v3222 = vadd.f32 %v2866, %v3140
        %v3223 = vadd.f32 %v3057, %v3144
        %v3224 = vadd.f32 %v3059, %v3148
        %v3225 = vadd.f32 %v2870, %v3136
        %v3226 = vadd.f32 %v2872, %v3140
        %v3227 = vadd.f32 %v3063, %v3144
        %v3228 = vadd.f32 %v3065, %v3148
        %v3229 = vadd.f32 %v2874, %v3136
        %v3230 = vadd.f32 %v2876, %v3140
        %v3231 = vadd.f32 %v3067, %v3144
        %v3232 = vadd.f32 %v3069, %v3148
        %v3233 = vadd.f32 %v2880, %v3136
        %v3234 = vadd.f32 %v2882, %v3140
        %v3235 = vadd.f32 %v3073, %v3144
        %v3236 = vadd.f32 %v3075, %v3148
        %v3237 = vadd.f32 %v2884, %v3136
        %v3238 = vadd.f32 %v2886, %v3140
        %v3239 = vadd.f32 %v3077, %v3144
        %v3240 = vadd.f32 %v3079, %v3148
        %v3241 = vadd.f32 %v2890, %v3136
        %v3242 = vadd.f32 %v2892, %v3140
        %v3243 = vadd.f32 %v3083, %v3144
        %v3244 = vadd.f32 %v3085, %v3148
        %v3245 = vadd.f32 %v2894, %v3136
        %v3246 = vadd.f32 %v2896, %v3140
        %v3247 = vadd.f32 %v3087, %v3144
        %v3248 = vadd.f32 %v3089, %v3148
        %v3249 = vadd.f32 %v2900, %v3136
        %v3250 = vadd.f32 %v2902, %v3140
        %v3251 = vadd.f32 %v3093, %v3144
        %v3252 = vadd.f32 %v3095, %v3148
        %v3253 = vadd.f32 %v2904, %v3136
        %v3254 = vadd.f32 %v2906, %v3140
        %v3255 = vadd.f32 %v3097, %v3144
        %v3256 = vadd.f32 %v3099, %v3148
        %v3257 = vadd.f32 %v2910, %v3136
        %v3258 = vadd.f32 %v2912, %v3140
        %v3259 = vadd.f32 %v3103, %v3144
        %v3260 = vadd.f32 %v3105, %v3148
        %v3261 = vadd.f32 %v2914, %v3136
        %v3262 = vadd.f32 %v2916, %v3140
        %v3263 = vadd.f32 %v3107, %v3144
        %v3264 = vadd.f32 %v3109, %v3148
        %v3265 = vadd.f32 %v2920, %v3136
        %v3266 = vadd.f32 %v2922, %v3140
        %v3267 = vadd.f32 %v3113, %v3144
        %v3268 = vadd.f32 %v3115, %v3148
        %v3269 = vadd.f32 %v2924, %v3136
        %v3270 = vadd.f32 %v2926, %v3140
        %v3271 = vadd.f32 %v3117, %v3144
        %v3272 = vadd.f32 %v3119, %v3148
        %v3273 = vadd.f32 %v2930, %v3136
        %v3274 = vadd.f32 %v2932, %v3140
        %v3275 = vadd.f32 %v3123, %v3144
        %v3276 = vadd.f32 %v3125, %v3148
        %v3277 = vadd.f32 %v2934, %v3136
        %v3278 = vadd.f32 %v2936, %v3140
        %v3279 = vadd.f32 %v3127, %v3144
        %v3280 = vadd.f32 %v3129, %v3148
        %v3281 = vmax.f32 %v3153, 0.0
        %v3282 = vmax.f32 %v3154, 0.0
        %v3283 = vmax.f32 %v3155, 0.0
        %v3284 = vmax.f32 %v3156, 0.0
        %v3285 = vmax.f32 %v3157, 0.0
        %v3286 = vmax.f32 %v3158, 0.0
        %v3287 = vmax.f32 %v3159, 0.0
        %v3288 = vmax.f32 %v3160, 0.0
        %v3289 = vmax.f32 %v3161, 0.0
        %v3290 = vmax.f32 %v3162, 0.0
        %v3291 = vmax.f32 %v3163, 0.0
        %v3292 = vmax.f32 %v3164, 0.0
        %v3293 = vmax.f32 %v3165, 0.0
        %v3294 = vmax.f32 %v3166, 0.0
        %v3295 = vmax.f32 %v3167, 0.0
        %v3296 = vmax.f32 %v3168, 0.0
        %v3297 = vmax.f32 %v3169, 0.0
        %v3298 = vmax.f32 %v3170, 0.0
        %v3299 = vmax.f32 %v3171, 0.0
        %v3300 = vmax.f32 %v3172, 0.0
        %v3301 = vmax.f32 %v3173, 0.0
        %v3302 = vmax.f32 %v3174, 0.0
        %v3303 = vmax.f32 %v3175, 0.0
        %v3304 = vmax.f32 %v3176, 0.0
        %v3305 = vmax.f32 %v3177, 0.0
        %v3306 = vmax.f32 %v3178, 0.0
        %v3307 = vmax.f32 %v3179, 0.0
        %v3308 = vmax.f32 %v3180, 0.0
        %v3309 = vmax.f32 %v3181, 0.0
        %v3310 = vmax.f32 %v3182, 0.0
        %v3311 = vmax.f32 %v3183, 0.0
        %v3312 = vmax.f32 %v3184, 0.0
        %v3313 = vmax.f32 %v3185, 0.0
        %v3314 = vmax.f32 %v3186, 0.0
        %v3315 = vmax.f32 %v3187, 0.0
        %v3316 = vmax.f32 %v3188, 0.0
        %v3317 = vmax.f32 %v3189, 0.0
        %v3318 = vmax.f32 %v3190, 0.0
        %v3319 = vmax.f32 %v3191, 0.0
        %v3320 = vmax.f32 %v3192, 0.0
        %v3321 = vmax.f32 %v3193, 0.0
        %v3322 = vmax.f32 %v3194, 0.0
        %v3323 = vmax.f32 %v3195, 0.0
        %v3324 = vmax.f32 %v3196, 0.0
        %v3325 = vmax.f32 %v3197, 0.0
        %v3326 = vmax.f32 %v3198, 0.0
        %v3327 = vmax.f32 %v3199, 0.0
        %v3328 = vmax.f32 %v3200, 0.0
        %v3329 = vmax.f32 %v3201, 0.0
        %v3330 = vmax.f32 %v3202, 0.0
        %v3331 = vmax.f32 %v3203, 0.0
        %v3332 = vmax.f32 %v3204, 0.0
        %v3333 = vmax.f32 %v3205, 0.0
        %v3334 = vmax.f32 %v3206, 0.0
        %v3335 = vmax.f32 %v3207, 0.0
        %v3336 = vmax.f32 %v3208, 0.0
        %v3337 = vmax.f32 %v3209, 0.0
        %v3338 = vmax.f32 %v3210, 0.0
        %v3339 = vmax.f32 %v3211, 0.0
        %v3340 = vmax.f32 %v3212, 0.0
        %v3341 = vmax.f32 %v3213, 0.0
        %v3342 = vmax.f32 %v3214, 0.0
        %v3343 = vmax.f32 %v3215, 0.0
        %v3344 = vmax.f32 %v3216, 0.0
        %v3345 = vmax.f32 %v3217, 0.0
        %v3346 = vmax.f32 %v3218, 0.0
        %v3347 = vmax.f32 %v3219, 0.0
        %v3348 = vmax.f32 %v3220, 0.0
        %v3349 = vmax.f32 %v3221, 0.0
        %v3350 = vmax.f32 %v3222, 0.0
        %v3351 = vmax.f32 %v3223, 0.0
        %v3352 = vmax.f32 %v3224, 0.0
        %v3353 = vmax.f32 %v3225, 0.0
        %v3354 = vmax.f32 %v3226, 0.0
        %v3355 = vmax.f32 %v3227, 0.0
        %v3356 = vmax.f32 %v3228, 0.0
        %v3357 = vmax.f32 %v3229, 0.0
        %v3358 = vmax.f32 %v3230, 0.0
        %v3359 = vmax.f32 %v3231, 0.0
        %v3360 = vmax.f32 %v3232, 0.0
        %v3361 = vmax.f32 %v3233, 0.0
        %v3362 = vmax.f32 %v3234, 0.0
        %v3363 = vmax.f32 %v3235, 0.0
        %v3364 = vmax.f32 %v3236, 0.0
        %v3365 = vmax.f32 %v3237, 0.0
        %v3366 = vmax.f32 %v3238, 0.0
        %v3367 = vmax.f32 %v3239, 0.0
        %v3368 = vmax.f32 %v3240, 0.0
        %v3369 = vmax.f32 %v3241, 0.0
        %v3370 = vmax.f32 %v3242, 0.0
        %v3371 = vmax.f32 %v3243, 0.0
        %v3372 = vmax.f32 %v3244, 0.0
        %v3373 = vmax.f32 %v3245, 0.0
        %v3374 = vmax.f32 %v3246, 0.0
        %v3375 = vmax.f32 %v3247, 0.0
        %v3376 = vmax.f32 %v3248, 0.0
        %v3377 = vmax.f32 %v3249, 0.0
        %v3378 = vmax.f32 %v3250, 0.0
        %v3379 = vmax.f32 %v3251, 0.0
        %v3380 = vmax.f32 %v3252, 0.0
        %v3381 = vmax.f32 %v3253, 0.0
        %v3382 = vmax.f32 %v3254, 0.0
        %v3383 = vmax.f32 %v3255, 0.0
        %v3384 = vmax.f32 %v3256, 0.0
        %v3385 = vmax.f32 %v3257, 0.0
        %v3386 = vmax.f32 %v3258, 0.0
        %v3387 = vmax.f32 %v3259, 0.0
        %v3388 = vmax.f32 %v3260, 0.0
        %v3389 = vmax.f32 %v3261, 0.0
        %v3390 = vmax.f32 %v3262, 0.0
        %v3391 = vmax.f32 %v3263, 0.0
        %v3392 = vmax.f32 %v3264, 0.0
        %v3393 = vmax.f32 %v3265, 0.0
        %v3394 = vmax.f32 %v3266, 0.0
        %v3395 = vmax.f32 %v3267, 0.0
        %v3396 = vmax.f32 %v3268, 0.0
        %v3397 = vmax.f32 %v3269, 0.0
        %v3398 = vmax.f32 %v3270, 0.0
        %v3399 = vmax.f32 %v3271, 0.0
        %v3400 = vmax.f32 %v3272, 0.0
        %v3401 = vmax.f32 %v3273, 0.0
        %v3402 = vmax.f32 %v3274, 0.0
        %v3403 = vmax.f32 %v3275, 0.0
        %v3404 = vmax.f32 %v3276, 0.0
        %v3405 = vmax.f32 %v3277, 0.0
        %v3406 = vmax.f32 %v3278, 0.0
        %v3407 = vmax.f32 %v3279, 0.0
        %v3408 = vmax.f32 %v3280, 0.0
        %v3409 = vpack.c.bf16 %v3285, %v3281
        %v3410 = vpack.c.bf16 %v3286, %v3282
        %v3411 = vpack.c.bf16 %v3287, %v3283
        %v3412 = vpack.c.bf16 %v3288, %v3284
        %v3413 = vpack.c.bf16 %v3293, %v3289
        %v3414 = vpack.c.bf16 %v3294, %v3290
        %v3415 = vpack.c.bf16 %v3295, %v3291
        %v3416 = vpack.c.bf16 %v3296, %v3292
        %v3417 = vpack.c.bf16 %v3301, %v3297
        %v3418 = vpack.c.bf16 %v3302, %v3298
        %v3419 = vpack.c.bf16 %v3303, %v3299
        %v3420 = vpack.c.bf16 %v3304, %v3300
        %v3421 = vpack.c.bf16 %v3309, %v3305
        %v3422 = vpack.c.bf16 %v3310, %v3306
        %v3423 = vpack.c.bf16 %v3311, %v3307
        %v3424 = vpack.c.bf16 %v3312, %v3308
        %v3425 = vpack.c.bf16 %v3317, %v3313
        %v3426 = vpack.c.bf16 %v3318, %v3314
        %v3427 = vpack.c.bf16 %v3319, %v3315
        %v3428 = vpack.c.bf16 %v3320, %v3316
        %v3429 = vpack.c.bf16 %v3325, %v3321
        %v3430 = vpack.c.bf16 %v3326, %v3322
        %v3431 = vpack.c.bf16 %v3327, %v3323
        %v3432 = vpack.c.bf16 %v3328, %v3324
        %v3433 = vpack.c.bf16 %v3333, %v3329
        %v3434 = vpack.c.bf16 %v3334, %v3330
        %v3435 = vpack.c.bf16 %v3335, %v3331
        %v3436 = vpack.c.bf16 %v3336, %v3332
        %v3437 = vpack.c.bf16 %v3341, %v3337
        %v3438 = vpack.c.bf16 %v3342, %v3338
        %v3439 = vpack.c.bf16 %v3343, %v3339
        %v3440 = vpack.c.bf16 %v3344, %v3340
        %v3441 = vpack.c.bf16 %v3349, %v3345
        %v3442 = vpack.c.bf16 %v3350, %v3346
        %v3443 = vpack.c.bf16 %v3351, %v3347
        %v3444 = vpack.c.bf16 %v3352, %v3348
        %v3445 = vpack.c.bf16 %v3357, %v3353
        %v3446 = vpack.c.bf16 %v3358, %v3354
        %v3447 = vpack.c.bf16 %v3359, %v3355
        %v3448 = vpack.c.bf16 %v3360, %v3356
        %v3449 = vpack.c.bf16 %v3365, %v3361
        %v3450 = vpack.c.bf16 %v3366, %v3362
        %v3451 = vpack.c.bf16 %v3367, %v3363
        %v3452 = vpack.c.bf16 %v3368, %v3364
        %v3453 = vpack.c.bf16 %v3373, %v3369
        %v3454 = vpack.c.bf16 %v3374, %v3370
        %v3455 = vpack.c.bf16 %v3375, %v3371
        %v3456 = vpack.c.bf16 %v3376, %v3372
        %v3457 = vpack.c.bf16 %v3381, %v3377
        %v3458 = vpack.c.bf16 %v3382, %v3378
        %v3459 = vpack.c.bf16 %v3383, %v3379
        %v3460 = vpack.c.bf16 %v3384, %v3380
        %v3461 = vpack.c.bf16 %v3389, %v3385
        %v3462 = vpack.c.bf16 %v3390, %v3386
        %v3463 = vpack.c.bf16 %v3391, %v3387
        %v3464 = vpack.c.bf16 %v3392, %v3388
        %v3465 = vpack.c.bf16 %v3397, %v3393
        %v3466 = vpack.c.bf16 %v3398, %v3394
        %v3467 = vpack.c.bf16 %v3399, %v3395
        %v3468 = vpack.c.bf16 %v3400, %v3396
        %v3469 = vpack.c.bf16 %v3405, %v3401
        %v3470 = vpack.c.bf16 %v3406, %v3402
        %v3471 = vpack.c.bf16 %v3407, %v3403
        %v3472 = vpack.c.bf16 %v3408, %v3404
        %v3473 = vld [vmem:[#allocation7] sm:$0xf]
        %v3474 = vld [vmem:[#allocation7 + $0x4] sm:$0xf]
        %v3475 = vld [vmem:[#allocation7 + $0x8] sm:$0xf]
        %v3476 = vld [vmem:[#allocation7 + $0xc] sm:$0xf]
        %v3477 = vld [vmem:[#allocation7 + $0x10] sm:$0xf]
        %v3478 = vld [vmem:[#allocation7 + $0x14] sm:$0xf]
        %v3479 = vld [vmem:[#allocation7 + $0x18] sm:$0xf]
        %v3480 = vld [vmem:[#allocation7 + $0x1c] sm:$0xf]
        %v3481 = vld [vmem:[#allocation7 + $0x20] sm:$0xf]
        %v3482 = vld [vmem:[#allocation7 + $0x24] sm:$0xf]
        %v3483 = vld [vmem:[#allocation7 + $0x28] sm:$0xf]
        %v3484 = vld [vmem:[#allocation7 + $0x2c] sm:$0xf]
        %v3485 = vld [vmem:[#allocation7 + $0x30] sm:$0xf]
        %v3486 = vld [vmem:[#allocation7 + $0x34] sm:$0xf]
        %v3487 = vld [vmem:[#allocation7 + $0x38] sm:$0xf]
        %v3488 = vld [vmem:[#allocation7 + $0x3c] sm:$0xf]
        %v3489 = vld [vmem:[#allocation7 + $0x40] sm:$0xf]
        %v3490 = vld [vmem:[#allocation7 + $0x44] sm:$0xf]
        %v3491 = vld [vmem:[#allocation7 + $0x48] sm:$0xf]
        %v3492 = vld [vmem:[#allocation7 + $0x4c] sm:$0xf]
        %v3493 = vld [vmem:[#allocation7 + $0x50] sm:$0xf]
        %v3494 = vld [vmem:[#allocation7 + $0x54] sm:$0xf]
        %v3495 = vld [vmem:[#allocation7 + $0x58] sm:$0xf]
        %v3496 = vld [vmem:[#allocation7 + $0x5c] sm:$0xf]
        %v3497 = vld [vmem:[#allocation7 + $0x60] sm:$0xf]
        %v3498 = vld [vmem:[#allocation7 + $0x64] sm:$0xf]
        %v3499 = vld [vmem:[#allocation7 + $0x68] sm:$0xf]
        %v3500 = vld [vmem:[#allocation7 + $0x6c] sm:$0xf]
        %v3501 = vld [vmem:[#allocation7 + $0x70] sm:$0xf]
        %v3502 = vld [vmem:[#allocation7 + $0x74] sm:$0xf]
        %v3503 = vld [vmem:[#allocation7 + $0x78] sm:$0xf]
        %v3504 = vld [vmem:[#allocation7 + $0x7c] sm:$0xf]
        %v3505 = vld [vmem:[#allocation7 + $0x80] sm:$0xf]
        %v3506 = vld [vmem:[#allocation7 + $0x84] sm:$0xf]
        %v3507 = vld [vmem:[#allocation7 + $0x88] sm:$0xf]
        %v3508 = vld [vmem:[#allocation7 + $0x8c] sm:$0xf]
        %v3509 = vld [vmem:[#allocation7 + $0x90] sm:$0xf]
        %v3510 = vld [vmem:[#allocation7 + $0x94] sm:$0xf]
        %v3511 = vld [vmem:[#allocation7 + $0x98] sm:$0xf]
        %v3512 = vld [vmem:[#allocation7 + $0x9c] sm:$0xf]
        %v3513 = vld [vmem:[#allocation7 + $0xa0] sm:$0xf]
        %v3514 = vld [vmem:[#allocation7 + $0xa4] sm:$0xf]
        %v3515 = vld [vmem:[#allocation7 + $0xa8] sm:$0xf]
        %v3516 = vld [vmem:[#allocation7 + $0xac] sm:$0xf]
        %v3517 = vld [vmem:[#allocation7 + $0xb0] sm:$0xf]
        %v3518 = vld [vmem:[#allocation7 + $0xb4] sm:$0xf]
        %v3519 = vld [vmem:[#allocation7 + $0xb8] sm:$0xf]
        %v3520 = vld [vmem:[#allocation7 + $0xbc] sm:$0xf]
        %v3521 = vld [vmem:[#allocation7 + $0xc0] sm:$0xf]
        %v3522 = vld [vmem:[#allocation7 + $0xc4] sm:$0xf]
        %v3523 = vld [vmem:[#allocation7 + $0xc8] sm:$0xf]
        %v3524 = vld [vmem:[#allocation7 + $0xcc] sm:$0xf]
        %v3525 = vld [vmem:[#allocation7 + $0xd0] sm:$0xf]
        %v3526 = vld [vmem:[#allocation7 + $0xd4] sm:$0xf]
        %v3527 = vld [vmem:[#allocation7 + $0xd8] sm:$0xf]
        %v3528 = vld [vmem:[#allocation7 + $0xdc] sm:$0xf]
        %v3529 = vld [vmem:[#allocation7 + $0xe0] sm:$0xf]
        %v3530 = vld [vmem:[#allocation7 + $0xe4] sm:$0xf]
        %v3531 = vld [vmem:[#allocation7 + $0xe8] sm:$0xf]
        %v3532 = vld [vmem:[#allocation7 + $0xec] sm:$0xf]
        %v3533 = vld [vmem:[#allocation7 + $0xf0] sm:$0xf]
        %v3534 = vld [vmem:[#allocation7 + $0xf4] sm:$0xf]
        %v3535 = vld [vmem:[#allocation7 + $0xf8] sm:$0xf]
        %v3536 = vld [vmem:[#allocation7 + $0xfc] sm:$0xf]
        %v3537 = vld [vmem:[%s9] sm:$0x1]
        %v3539 = vlaneseq
        %v3540 = vshrl.u32 %v3539, 7
        %v3541 = vsub.s32 0, %v3540
        %v3542 = vrot.slane %v3537, %v3541
        %v3608 = vunpack.c.l.b16 %v3473
        %v3609 = vunpack.c.l.b16 %v3474
        %v3610 = vunpack.c.l.b16 %v3475
        %v3611 = vunpack.c.l.b16 %v3476
        %v3612 = vunpack.c.l.b16 %v3477
        %v3613 = vunpack.c.l.b16 %v3478
        %v3614 = vunpack.c.l.b16 %v3479
        %v3615 = vunpack.c.l.b16 %v3480
        %v3616 = vunpack.c.l.b16 %v3481
        %v3617 = vunpack.c.l.b16 %v3482
        %v3618 = vunpack.c.l.b16 %v3483
        %v3619 = vunpack.c.l.b16 %v3484
        %v3620 = vunpack.c.l.b16 %v3485
        %v3621 = vunpack.c.l.b16 %v3486
        %v3622 = vunpack.c.l.b16 %v3487
        %v3623 = vunpack.c.l.b16 %v3488
        %v3624 = vunpack.c.l.b16 %v3489
        %v3625 = vunpack.c.l.b16 %v3490
        %v3626 = vunpack.c.l.b16 %v3491
        %v3627 = vunpack.c.l.b16 %v3492
        %v3628 = vunpack.c.l.b16 %v3493
        %v3629 = vunpack.c.l.b16 %v3494
        %v3630 = vunpack.c.l.b16 %v3495
        %v3631 = vunpack.c.l.b16 %v3496
        %v3632 = vunpack.c.l.b16 %v3497
        %v3633 = vunpack.c.l.b16 %v3498
        %v3634 = vunpack.c.l.b16 %v3499
        %v3635 = vunpack.c.l.b16 %v3500
        %v3636 = vunpack.c.l.b16 %v3501
        %v3637 = vunpack.c.l.b16 %v3502
        %v3638 = vunpack.c.l.b16 %v3503
        %v3639 = vunpack.c.l.b16 %v3504
        %v3640 = vunpack.c.l.b16 %v3505
        %v3641 = vunpack.c.l.b16 %v3506
        %v3642 = vunpack.c.l.b16 %v3507
        %v3643 = vunpack.c.l.b16 %v3508
        %v3644 = vunpack.c.l.b16 %v3509
        %v3645 = vunpack.c.l.b16 %v3510
        %v3646 = vunpack.c.l.b16 %v3511
        %v3647 = vunpack.c.l.b16 %v3512
        %v3648 = vunpack.c.l.b16 %v3513
        %v3649 = vunpack.c.l.b16 %v3514
        %v3650 = vunpack.c.l.b16 %v3515
        %v3651 = vunpack.c.l.b16 %v3516
        %v3652 = vunpack.c.l.b16 %v3517
        %v3653 = vunpack.c.l.b16 %v3518
        %v3654 = vunpack.c.l.b16 %v3519
        %v3655 = vunpack.c.l.b16 %v3520
        %v3656 = vunpack.c.l.b16 %v3521
        %v3657 = vunpack.c.l.b16 %v3522
        %v3658 = vunpack.c.l.b16 %v3523
        %v3659 = vunpack.c.l.b16 %v3524
        %v3660 = vunpack.c.l.b16 %v3525
        %v3661 = vunpack.c.l.b16 %v3526
        %v3662 = vunpack.c.l.b16 %v3527
        %v3663 = vunpack.c.l.b16 %v3528
        %v3664 = vunpack.c.l.b16 %v3529
        %v3665 = vunpack.c.l.b16 %v3530
        %v3666 = vunpack.c.l.b16 %v3531
        %v3667 = vunpack.c.l.b16 %v3532
        %v3668 = vunpack.c.l.b16 %v3533
        %v3669 = vunpack.c.l.b16 %v3534
        %v3670 = vunpack.c.l.b16 %v3535
        %v3671 = vunpack.c.l.b16 %v3536
        %v3672 = vpack.c.b16 %v3609, %v3608
        %v3673 = vpack.c.b16 %v3611, %v3610
        %v3674 = vpack.c.b16 %v3613, %v3612
        %v3675 = vpack.c.b16 %v3615, %v3614
        %v3676 = vpack.c.b16 %v3617, %v3616
        %v3677 = vpack.c.b16 %v3619, %v3618
        %v3678 = vpack.c.b16 %v3621, %v3620
        %v3679 = vpack.c.b16 %v3623, %v3622
        %v3680 = vpack.c.b16 %v3625, %v3624
        %v3681 = vpack.c.b16 %v3627, %v3626
        %v3682 = vpack.c.b16 %v3629, %v3628
        %v3683 = vpack.c.b16 %v3631, %v3630
        %v3684 = vpack.c.b16 %v3633, %v3632
        %v3685 = vpack.c.b16 %v3635, %v3634
        %v3686 = vpack.c.b16 %v3637, %v3636
        %v3687 = vpack.c.b16 %v3639, %v3638
        %v3688 = vpack.c.b16 %v3641, %v3640
        %v3689 = vpack.c.b16 %v3643, %v3642
        %v3690 = vpack.c.b16 %v3645, %v3644
        %v3691 = vpack.c.b16 %v3647, %v3646
        %v3692 = vpack.c.b16 %v3649, %v3648
        %v3693 = vpack.c.b16 %v3651, %v3650
        %v3694 = vpack.c.b16 %v3653, %v3652
        %v3695 = vpack.c.b16 %v3655, %v3654
        %v3696 = vpack.c.b16 %v3657, %v3656
        %v3697 = vpack.c.b16 %v3659, %v3658
        %v3698 = vpack.c.b16 %v3661, %v3660
        %v3699 = vpack.c.b16 %v3663, %v3662
        %v3700 = vpack.c.b16 %v3665, %v3664
        %v3701 = vpack.c.b16 %v3667, %v3666
        %v3702 = vpack.c.b16 %v3669, %v3668
        %v3703 = vpack.c.b16 %v3671, %v3670
        %3736 = vmatprep.subr.bf16.mxu0 0
        %3737 = vmatpush1.bf16.msra.mxu0 %v3679
        %3738 = vmatprep.subr.bf16.mxu0 0
        %3739 = vmatpush1.bf16.msra.mxu0 %v3678
        %3740 = vmatprep.subr.bf16.mxu0 0
        %3741 = vmatpush1.bf16.msra.mxu0 %v3677
        %3742 = vmatprep.subr.bf16.mxu0 0
        %3743 = vmatpush1.bf16.msra.mxu0 %v3676
        %3744 = vmatprep.subr.bf16.mxu0 0
        %3745 = vmatpush1.bf16.msra.mxu0 %v3675
        %3746 = vmatprep.subr.bf16.mxu0 0
        %3747 = vmatpush1.bf16.msra.mxu0 %v3674
        %3748 = vmatprep.subr.bf16.mxu0 0
        %3749 = vmatpush1.bf16.msra.mxu0 %v3673
        %3750 = vmatprep.subr.bf16.mxu0 0
        %3751 = vmatpush1.bf16.msra.mxu0 %v3672
        %3752 = vmatprep.subr.bf16.mxu0 0
        %3753 = vmatpush2.bf16.msra.mxu0 %v3687
        %3754 = vmatprep.subr.bf16.mxu0 0
        %3755 = vmatpush2.bf16.msra.mxu0 %v3686
        %3756 = vmatprep.subr.bf16.mxu0 0
        %3757 = vmatpush2.bf16.msra.mxu0 %v3685
        %3758 = vmatprep.subr.bf16.mxu0 0
        %3759 = vmatpush2.bf16.msra.mxu0 %v3684
        %3760 = vmatprep.subr.bf16.mxu0 0
        %3761 = vmatpush2.bf16.msra.mxu0 %v3683
        %3762 = vmatprep.subr.bf16.mxu0 0
        %3763 = vmatpush2.bf16.msra.mxu0 %v3682
        %3764 = vmatprep.subr.bf16.mxu0 0
        %3765 = vmatpush2.bf16.msra.mxu0 %v3681
        %3766 = vmatprep.subr.bf16.mxu0 0
        %3767 = vmatpush2.bf16.msra.mxu0 %v3680
        %3768 = vmatprep.mubr.bf16.mxu0 %v3410
        %3769 = vmatmul.mubr.bf16.gmra.mxu0 %v3409
        %v3770 = vpop.f32.mrf.mxu0
        %v3771 = vadd.f32 %v3542, %v3770
        %v3772 = vpop.f32.mrf.mxu0
        %v3773 = vpop.f32.mrf.mxu0
        %v3774 = vadd.f32 %v3542, %v3773
        %v3775 = vpop.f32.mrf.mxu0
        %3776 = vmatprep.mubr.bf16.mxu0 %v3414
        %3777 = vmatmul.mubr.bf16.gmra.mxu0 %v3413
        %v3778 = vpop.f32.mrf.mxu0
        %v3779 = vadd.f32 %v3542, %v3778
        %v3780 = vpop.f32.mrf.mxu0
        %v3781 = vpop.f32.mrf.mxu0
        %v3782 = vadd.f32 %v3542, %v3781
        %v3783 = vpop.f32.mrf.mxu0
        %3784 = vmatprep.mubr.bf16.mxu0 %v3418
        %3785 = vmatmul.mubr.bf16.gmra.mxu0 %v3417
        %v3786 = vpop.f32.mrf.mxu0
        %v3787 = vadd.f32 %v3542, %v3786
        %v3788 = vpop.f32.mrf.mxu0
        %v3789 = vpop.f32.mrf.mxu0
        %v3790 = vadd.f32 %v3542, %v3789
        %v3791 = vpop.f32.mrf.mxu0
        %3792 = vmatprep.mubr.bf16.mxu0 %v3422
        %3793 = vmatmul.mubr.bf16.gmra.mxu0 %v3421
        %v3794 = vpop.f32.mrf.mxu0
        %v3795 = vadd.f32 %v3542, %v3794
        %v3796 = vpop.f32.mrf.mxu0
        %v3797 = vpop.f32.mrf.mxu0
        %v3798 = vadd.f32 %v3542, %v3797
        %v3799 = vpop.f32.mrf.mxu0
        %3800 = vmatprep.mubr.bf16.mxu0 %v3426
        %3801 = vmatmul.mubr.bf16.gmra.mxu0 %v3425
        %v3802 = vpop.f32.mrf.mxu0
        %v3803 = vadd.f32 %v3542, %v3802
        %v3804 = vpop.f32.mrf.mxu0
        %v3805 = vpop.f32.mrf.mxu0
        %v3806 = vadd.f32 %v3542, %v3805
        %v3807 = vpop.f32.mrf.mxu0
        %3808 = vmatprep.mubr.bf16.mxu0 %v3430
        %3809 = vmatmul.mubr.bf16.gmra.mxu0 %v3429
        %v3810 = vpop.f32.mrf.mxu0
        %v3811 = vadd.f32 %v3542, %v3810
        %v3812 = vpop.f32.mrf.mxu0
        %v3813 = vpop.f32.mrf.mxu0
        %v3814 = vadd.f32 %v3542, %v3813
        %v3815 = vpop.f32.mrf.mxu0
        %3816 = vmatprep.mubr.bf16.mxu0 %v3434
        %3817 = vmatmul.mubr.bf16.gmra.mxu0 %v3433
        %v3818 = vpop.f32.mrf.mxu0
        %v3819 = vadd.f32 %v3542, %v3818
        %v3820 = vpop.f32.mrf.mxu0
        %v3821 = vpop.f32.mrf.mxu0
        %v3822 = vadd.f32 %v3542, %v3821
        %v3823 = vpop.f32.mrf.mxu0
        %3824 = vmatprep.mubr.bf16.mxu0 %v3438
        %3825 = vmatmul.mubr.bf16.gmra.mxu0 %v3437
        %v3826 = vpop.f32.mrf.mxu0
        %v3827 = vadd.f32 %v3542, %v3826
        %v3828 = vpop.f32.mrf.mxu0
        %v3829 = vpop.f32.mrf.mxu0
        %v3830 = vadd.f32 %v3542, %v3829
        %v3831 = vpop.f32.mrf.mxu0
        %3832 = vmatprep.mubr.bf16.mxu0 %v3442
        %3833 = vmatmul.mubr.bf16.gmra.mxu0 %v3441
        %v3834 = vpop.f32.mrf.mxu0
        %v3835 = vadd.f32 %v3542, %v3834
        %v3836 = vpop.f32.mrf.mxu0
        %v3837 = vpop.f32.mrf.mxu0
        %v3838 = vadd.f32 %v3542, %v3837
        %v3839 = vpop.f32.mrf.mxu0
        %3840 = vmatprep.mubr.bf16.mxu0 %v3446
        %3841 = vmatmul.mubr.bf16.gmra.mxu0 %v3445
        %v3842 = vpop.f32.mrf.mxu0
        %v3843 = vadd.f32 %v3542, %v3842
        %v3844 = vpop.f32.mrf.mxu0
        %v3845 = vpop.f32.mrf.mxu0
        %v3846 = vadd.f32 %v3542, %v3845
        %v3847 = vpop.f32.mrf.mxu0
        %3848 = vmatprep.mubr.bf16.mxu0 %v3450
        %3849 = vmatmul.mubr.bf16.gmra.mxu0 %v3449
        %v3850 = vpop.f32.mrf.mxu0
        %v3851 = vadd.f32 %v3542, %v3850
        %v3852 = vpop.f32.mrf.mxu0
        %v3853 = vpop.f32.mrf.mxu0
        %v3854 = vadd.f32 %v3542, %v3853
        %v3855 = vpop.f32.mrf.mxu0
        %3856 = vmatprep.mubr.bf16.mxu0 %v3454
        %3857 = vmatmul.mubr.bf16.gmra.mxu0 %v3453
        %v3858 = vpop.f32.mrf.mxu0
        %v3859 = vadd.f32 %v3542, %v3858
        %v3860 = vpop.f32.mrf.mxu0
        %v3861 = vpop.f32.mrf.mxu0
        %v3862 = vadd.f32 %v3542, %v3861
        %v3863 = vpop.f32.mrf.mxu0
        %3864 = vmatprep.mubr.bf16.mxu0 %v3458
        %3865 = vmatmul.mubr.bf16.gmra.mxu0 %v3457
        %v3866 = vpop.f32.mrf.mxu0
        %v3867 = vadd.f32 %v3542, %v3866
        %v3868 = vpop.f32.mrf.mxu0
        %v3869 = vpop.f32.mrf.mxu0
        %v3870 = vadd.f32 %v3542, %v3869
        %v3871 = vpop.f32.mrf.mxu0
        %3872 = vmatprep.mubr.bf16.mxu0 %v3462
        %3873 = vmatmul.mubr.bf16.gmra.mxu0 %v3461
        %v3874 = vpop.f32.mrf.mxu0
        %v3875 = vadd.f32 %v3542, %v3874
        %v3876 = vpop.f32.mrf.mxu0
        %v3877 = vpop.f32.mrf.mxu0
        %v3878 = vadd.f32 %v3542, %v3877
        %v3879 = vpop.f32.mrf.mxu0
        %3880 = vmatprep.mubr.bf16.mxu0 %v3466
        %3881 = vmatmul.mubr.bf16.gmra.mxu0 %v3465
        %v3882 = vpop.f32.mrf.mxu0
        %v3883 = vadd.f32 %v3542, %v3882
        %v3884 = vpop.f32.mrf.mxu0
        %v3885 = vpop.f32.mrf.mxu0
        %v3886 = vadd.f32 %v3542, %v3885
        %v3887 = vpop.f32.mrf.mxu0
        %3888 = vmatprep.mubr.bf16.mxu0 %v3470
        %3889 = vmatmul.mubr.bf16.gmra.mxu0 %v3469
        %v3890 = vpop.f32.mrf.mxu0
        %v3891 = vadd.f32 %v3542, %v3890
        %v3892 = vpop.f32.mrf.mxu0
        %v3893 = vpop.f32.mrf.mxu0
        %v3894 = vadd.f32 %v3542, %v3893
        %v3895 = vpop.f32.mrf.mxu0
        %3896 = vdwg.mxu0
        %3897 = vmatprep.subr.bf16.mxu0 0
        %3898 = vmatpush1.bf16.msra.mxu0 %v3695
        %3899 = vmatprep.subr.bf16.mxu0 0
        %3900 = vmatpush1.bf16.msra.mxu0 %v3694
        %3901 = vmatprep.subr.bf16.mxu0 0
        %3902 = vmatpush1.bf16.msra.mxu0 %v3693
        %3903 = vmatprep.subr.bf16.mxu0 0
        %3904 = vmatpush1.bf16.msra.mxu0 %v3692
        %3905 = vmatprep.subr.bf16.mxu0 0
        %3906 = vmatpush1.bf16.msra.mxu0 %v3691
        %3907 = vmatprep.subr.bf16.mxu0 0
        %3908 = vmatpush1.bf16.msra.mxu0 %v3690
        %3909 = vmatprep.subr.bf16.mxu0 0
        %3910 = vmatpush1.bf16.msra.mxu0 %v3689
        %3911 = vmatprep.subr.bf16.mxu0 0
        %3912 = vmatpush1.bf16.msra.mxu0 %v3688
        %3913 = vmatprep.subr.bf16.mxu0 0
        %3914 = vmatpush2.bf16.msra.mxu0 %v3703
        %3915 = vmatprep.subr.bf16.mxu0 0
        %3916 = vmatpush2.bf16.msra.mxu0 %v3702
        %3917 = vmatprep.subr.bf16.mxu0 0
        %3918 = vmatpush2.bf16.msra.mxu0 %v3701
        %3919 = vmatprep.subr.bf16.mxu0 0
        %3920 = vmatpush2.bf16.msra.mxu0 %v3700
        %3921 = vmatprep.subr.bf16.mxu0 0
        %3922 = vmatpush2.bf16.msra.mxu0 %v3699
        %3923 = vmatprep.subr.bf16.mxu0 0
        %3924 = vmatpush2.bf16.msra.mxu0 %v3698
        %3925 = vmatprep.subr.bf16.mxu0 0
        %3926 = vmatpush2.bf16.msra.mxu0 %v3697
        %3927 = vmatprep.subr.bf16.mxu0 0
        %3928 = vmatpush2.bf16.msra.mxu0 %v3696
        %3929 = vmatprep.mubr.bf16.mxu0 %v3412
        %3930 = vmatmul.mubr.bf16.gmra.mxu0 %v3411
        %v3931 = vpop.f32.mrf.mxu0
        %v3932 = vadd.f32 %v3771, %v3931
        %v3933 = vpop.f32.mrf.mxu0
        %v3934 = vpop.f32.mrf.mxu0
        %v3935 = vadd.f32 %v3774, %v3934
        %v3936 = vpop.f32.mrf.mxu0
        %3937 = vmatprep.mubr.bf16.mxu0 %v3416
        %3938 = vmatmul.mubr.bf16.gmra.mxu0 %v3415
        %v3939 = vpop.f32.mrf.mxu0
        %v3940 = vadd.f32 %v3779, %v3939
        %v3941 = vpop.f32.mrf.mxu0
        %v3942 = vpop.f32.mrf.mxu0
        %v3943 = vadd.f32 %v3782, %v3942
        %v3944 = vpop.f32.mrf.mxu0
        %3945 = vmatprep.mubr.bf16.mxu0 %v3420
        %3946 = vmatmul.mubr.bf16.gmra.mxu0 %v3419
        %v3947 = vpop.f32.mrf.mxu0
        %v3948 = vadd.f32 %v3787, %v3947
        %v3949 = vpop.f32.mrf.mxu0
        %v3950 = vpop.f32.mrf.mxu0
        %v3951 = vadd.f32 %v3790, %v3950
        %v3952 = vpop.f32.mrf.mxu0
        %3953 = vmatprep.mubr.bf16.mxu0 %v3424
        %3954 = vmatmul.mubr.bf16.gmra.mxu0 %v3423
        %v3955 = vpop.f32.mrf.mxu0
        %v3956 = vadd.f32 %v3795, %v3955
        %v3957 = vpop.f32.mrf.mxu0
        %v3958 = vpop.f32.mrf.mxu0
        %v3959 = vadd.f32 %v3798, %v3958
        %v3960 = vpop.f32.mrf.mxu0
        %3961 = vmatprep.mubr.bf16.mxu0 %v3428
        %3962 = vmatmul.mubr.bf16.gmra.mxu0 %v3427
        %v3963 = vpop.f32.mrf.mxu0
        %v3964 = vadd.f32 %v3803, %v3963
        %v3965 = vpop.f32.mrf.mxu0
        %v3966 = vpop.f32.mrf.mxu0
        %v3967 = vadd.f32 %v3806, %v3966
        %v3968 = vpop.f32.mrf.mxu0
        %3969 = vmatprep.mubr.bf16.mxu0 %v3432
        %3970 = vmatmul.mubr.bf16.gmra.mxu0 %v3431
        %v3971 = vpop.f32.mrf.mxu0
        %v3972 = vadd.f32 %v3811, %v3971
        %v3973 = vpop.f32.mrf.mxu0
        %v3974 = vpop.f32.mrf.mxu0
        %v3975 = vadd.f32 %v3814, %v3974
        %v3976 = vpop.f32.mrf.mxu0
        %3977 = vmatprep.mubr.bf16.mxu0 %v3436
        %3978 = vmatmul.mubr.bf16.gmra.mxu0 %v3435
        %v3979 = vpop.f32.mrf.mxu0
        %v3980 = vadd.f32 %v3819, %v3979
        %v3981 = vpop.f32.mrf.mxu0
        %v3982 = vpop.f32.mrf.mxu0
        %v3983 = vadd.f32 %v3822, %v3982
        %v3984 = vpop.f32.mrf.mxu0
        %3985 = vmatprep.mubr.bf16.mxu0 %v3440
        %3986 = vmatmul.mubr.bf16.gmra.mxu0 %v3439
        %v3987 = vpop.f32.mrf.mxu0
        %v3988 = vadd.f32 %v3827, %v3987
        %v3989 = vpop.f32.mrf.mxu0
        %v3990 = vpop.f32.mrf.mxu0
        %v3991 = vadd.f32 %v3830, %v3990
        %v3992 = vpop.f32.mrf.mxu0
        %3993 = vmatprep.mubr.bf16.mxu0 %v3444
        %3994 = vmatmul.mubr.bf16.gmra.mxu0 %v3443
        %v3995 = vpop.f32.mrf.mxu0
        %v3996 = vadd.f32 %v3835, %v3995
        %v3997 = vpop.f32.mrf.mxu0
        %v3998 = vpop.f32.mrf.mxu0
        %v3999 = vadd.f32 %v3838, %v3998
        %v4000 = vpop.f32.mrf.mxu0
        %4001 = vmatprep.mubr.bf16.mxu0 %v3448
        %4002 = vmatmul.mubr.bf16.gmra.mxu0 %v3447
        %v4003 = vpop.f32.mrf.mxu0
        %v4004 = vadd.f32 %v3843, %v4003
        %v4005 = vpop.f32.mrf.mxu0
        %v4006 = vpop.f32.mrf.mxu0
        %v4007 = vadd.f32 %v3846, %v4006
        %v4008 = vpop.f32.mrf.mxu0
        %4009 = vmatprep.mubr.bf16.mxu0 %v3452
        %4010 = vmatmul.mubr.bf16.gmra.mxu0 %v3451
        %v4011 = vpop.f32.mrf.mxu0
        %v4012 = vadd.f32 %v3851, %v4011
        %v4013 = vpop.f32.mrf.mxu0
        %v4014 = vpop.f32.mrf.mxu0
        %v4015 = vadd.f32 %v3854, %v4014
        %v4016 = vpop.f32.mrf.mxu0
        %4017 = vmatprep.mubr.bf16.mxu0 %v3456
        %4018 = vmatmul.mubr.bf16.gmra.mxu0 %v3455
        %v4019 = vpop.f32.mrf.mxu0
        %v4020 = vadd.f32 %v3859, %v4019
        %v4021 = vpop.f32.mrf.mxu0
        %v4022 = vpop.f32.mrf.mxu0
        %v4023 = vadd.f32 %v3862, %v4022
        %v4024 = vpop.f32.mrf.mxu0
        %4025 = vmatprep.mubr.bf16.mxu0 %v3460
        %4026 = vmatmul.mubr.bf16.gmra.mxu0 %v3459
        %v4027 = vpop.f32.mrf.mxu0
        %v4028 = vadd.f32 %v3867, %v4027
        %v4029 = vpop.f32.mrf.mxu0
        %v4030 = vpop.f32.mrf.mxu0
        %v4031 = vadd.f32 %v3870, %v4030
        %v4032 = vpop.f32.mrf.mxu0
        %4033 = vmatprep.mubr.bf16.mxu0 %v3464
        %4034 = vmatmul.mubr.bf16.gmra.mxu0 %v3463
        %v4035 = vpop.f32.mrf.mxu0
        %v4036 = vadd.f32 %v3875, %v4035
        %v4037 = vpop.f32.mrf.mxu0
        %v4038 = vpop.f32.mrf.mxu0
        %v4039 = vadd.f32 %v3878, %v4038
        %v4040 = vpop.f32.mrf.mxu0
        %4041 = vmatprep.mubr.bf16.mxu0 %v3468
        %4042 = vmatmul.mubr.bf16.gmra.mxu0 %v3467
        %v4043 = vpop.f32.mrf.mxu0
        %v4044 = vadd.f32 %v3883, %v4043
        %v4045 = vpop.f32.mrf.mxu0
        %v4046 = vpop.f32.mrf.mxu0
        %v4047 = vadd.f32 %v3886, %v4046
        %v4048 = vpop.f32.mrf.mxu0
        %4049 = vmatprep.mubr.bf16.mxu0 %v3472
        %4050 = vmatmul.mubr.bf16.gmra.mxu0 %v3471
        %v4051 = vpop.f32.mrf.mxu0
        %v4052 = vadd.f32 %v3891, %v4051
        %v4053 = vpop.f32.mrf.mxu0
        %v4054 = vpop.f32.mrf.mxu0
        %v4055 = vadd.f32 %v3894, %v4054
        %v4056 = vpop.f32.mrf.mxu0
        %4057 = vdwg.mxu0
        %v4058 = vmax.f32 %v3932, %v3935
        %v4059 = vmax.f32 %v4058, %v3940
        %v4060 = vmax.f32 %v4059, %v3943
        %v4061 = vrot.slane %v4060, 4
        %v4062 = vmax.f32 %v4060, %v4061
        %v4063 = vrot.slane %v4062, 2
        %v4064 = vmax.f32 %v4062, %v4063
        %v4065 = vrot.slane %v4064, 1
        %v4066 = vmax.f32 %v4064, %v4065
        %v4067 = vmax.f32 %v3948, %v3951
        %v4068 = vmax.f32 %v4067, %v3956
        %v4069 = vmax.f32 %v4068, %v3959
        %v4070 = vrot.slane %v4069, 4
        %v4071 = vmax.f32 %v4069, %v4070
        %v4072 = vrot.slane %v4071, 2
        %v4073 = vmax.f32 %v4071, %v4072
        %v4074 = vrot.slane %v4073, 1
        %v4075 = vmax.f32 %v4073, %v4074
        %v4076 = vmax.f32 %v3964, %v3967
        %v4077 = vmax.f32 %v4076, %v3972
        %v4078 = vmax.f32 %v4077, %v3975
        %v4079 = vrot.slane %v4078, 4
        %v4080 = vmax.f32 %v4078, %v4079
        %v4081 = vrot.slane %v4080, 2
        %v4082 = vmax.f32 %v4080, %v4081
        %v4083 = vrot.slane %v4082, 1
        %v4084 = vmax.f32 %v4082, %v4083
        %v4085 = vmax.f32 %v3980, %v3983
        %v4086 = vmax.f32 %v4085, %v3988
        %v4087 = vmax.f32 %v4086, %v3991
        %v4088 = vrot.slane %v4087, 4
        %v4089 = vmax.f32 %v4087, %v4088
        %v4090 = vrot.slane %v4089, 2
        %v4091 = vmax.f32 %v4089, %v4090
        %v4092 = vrot.slane %v4091, 1
        %v4093 = vmax.f32 %v4091, %v4092
        %v4094 = vmax.f32 %v3996, %v3999
        %v4095 = vmax.f32 %v4094, %v4004
        %v4096 = vmax.f32 %v4095, %v4007
        %v4097 = vrot.slane %v4096, 4
        %v4098 = vmax.f32 %v4096, %v4097
        %v4099 = vrot.slane %v4098, 2
        %v4100 = vmax.f32 %v4098, %v4099
        %v4101 = vrot.slane %v4100, 1
        %v4102 = vmax.f32 %v4100, %v4101
        %v4103 = vmax.f32 %v4012, %v4015
        %v4104 = vmax.f32 %v4103, %v4020
        %v4105 = vmax.f32 %v4104, %v4023
        %v4106 = vrot.slane %v4105, 4
        %v4107 = vmax.f32 %v4105, %v4106
        %v4108 = vrot.slane %v4107, 2
        %v4109 = vmax.f32 %v4107, %v4108
        %v4110 = vrot.slane %v4109, 1
        %v4111 = vmax.f32 %v4109, %v4110
        %v4112 = vmax.f32 %v4028, %v4031
        %v4113 = vmax.f32 %v4112, %v4036
        %v4114 = vmax.f32 %v4113, %v4039
        %v4115 = vrot.slane %v4114, 4
        %v4116 = vmax.f32 %v4114, %v4115
        %v4117 = vrot.slane %v4116, 2
        %v4118 = vmax.f32 %v4116, %v4117
        %v4119 = vrot.slane %v4118, 1
        %v4120 = vmax.f32 %v4118, %v4119
        %v4121 = vmax.f32 %v4044, %v4047
        %v4122 = vmax.f32 %v4121, %v4052
        %v4123 = vmax.f32 %v4122, %v4055
        %v4124 = vrot.slane %v4123, 4
        %v4125 = vmax.f32 %v4123, %v4124
        %v4126 = vrot.slane %v4125, 2
        %v4127 = vmax.f32 %v4125, %v4126
        %v4128 = vrot.slane %v4127, 1
        %v4129 = vmax.f32 %v4127, %v4128
        %v4138 = vsel %vm1670, %v4075, %v4066
        %v4139 = vsel %vm1672, %v4084, %v4138
        %v4140 = vsel %vm1674, %v4093, %v4139
        %v4141 = vsel %vm1676, %v4102, %v4140
        %v4142 = vsel %vm1678, %v4111, %v4141
        %v4143 = vsel %vm1680, %v4120, %v4142
        %v4144 = vsel %vm1682, %v4129, %v4143
        %4146 = vst [vmem:[%s397] sm:$0xff] %v4144
        %s4147 = sand.u32 %s249, 1
        %s4148 = scalar_lea.sflag [#allocation4], %s4147
        %s4149 = sand.u32 %s249, 1
        %s4150 = smul.addr %s4149, 8
        %s4151 = scalar_lea.vmem [#allocation8], %s4150
        // Predicated region
        $region73: #{tpu_custom_call.1} parent=59 // pred_check
          %p4152 = pneg %p259
        $region74: #{tpu_custom_call.1} parent=59 // pred_check_branch
          %4154 = sbr.rel (%p4152) target = $region76
        $region75: #{tpu_custom_call.1} parent=59 // pred_region
          %s4156 = ssub.s32 128, 128
          %4157 = vsyncadd %s4148, %s4156
          %s4158 = smul.addr %s26, 128
          %s4159 = scalar_lea.hbm %s10, %s4158
          %s4161 = sshll.u32 %s4151, 4
          %s4162 = int_to_ptr.vmem [resolvable:$true] %s4161
          %4164 = dma.vmem_to_hbm [thread:$0]  %s4162, 128, %s4159, %s4148
        $region76: #{tpu_custom_call.1} parent=59 // pred_fallthru
          _
      $region60: #{tpu_custom_call.1} parent=5 // pred_fallthru
        _
      %p4165 = scmp.le.s32.totalorder 2, %s21
      // Predicated region
      $region77: #{tpu_custom_call.1} parent=5 // pred_check
        %p4166 = pneg %p4165
      $region78: #{tpu_custom_call.1} parent=5 // pred_check_branch
        %4168 = sbr.rel (%p4166) target = $region80
      $region79: #{tpu_custom_call.1} parent=5 // pred_region
        %s4169 = ssub.s32 %s21, 2
        // Predicated region
        $region81: #{tpu_custom_call.1} parent=79 // pred_check
          %p4170 = pneg %p265
        $region82: #{tpu_custom_call.1} parent=79 // pred_check_branch
          %4172 = sbr.rel (%p4170) target = $region84
        $region83: #{tpu_custom_call.1} parent=79 // pred_region
          %s4173 = sand.u32 %s250, 1
          %s4174 = scalar_lea.sflag [#allocation4], %s4173
          %s4175 = sand.u32 %s250, 1
          %s4176 = smul.addr %s4175, 8
          %s4177 = scalar_lea.vmem [#allocation8], %s4176
          %4178 = dma.done %s4174, 128
        $region84: #{tpu_custom_call.1} parent=79 // pred_fallthru
          _
      $region80: #{tpu_custom_call.1} parent=5 // pred_fallthru
        _
    $region6: #{tpu_custom_call.1} parent=1 // loop_footer
      %s25 = sadd.s32 1, %s21
    $region7: #{tpu_custom_call.1} parent=1 // loop_footer_branch
      %20 = sbr.rel target = $region3
    $region8: #{tpu_custom_call.1} parent=1 // loop_exit
      _
    %4179 = vsyncpa [#allocation3], 1
    %s4180 = scalar_lea.sflag [#allocation3], 1
    %4181 = vsyncpa %s4180, 1
    %4182 = vsyncpa [#allocation6], 1
    %4183 = vsyncpa [#allocation4], 1
    %s4184 = scalar_lea.sflag [#allocation4], 1
    %4185 = vsyncpa %s4184, 1

</llo_original>
